<compile_context>
chip_gen: v5e
topology: v5e:2x2
jax: 0.10.0
libtpu: 0.0.40
codegen_flags: <defaults>
</compile_context>

<pallas_src>
import numpy as np

import jax
import jax.numpy as jnp
from jax.experimental import pallas as pl
from jax.experimental.pallas import tpu as pltpu

K_BITS = 4  # TODO(synk): ActFn bit-width k is not given in the reference snippet; fixed at 4.


# ----------------------------------------------------------------------------
# Fused Pallas kernel
# ----------------------------------------------------------------------------
def _pact(v, alpha_scalar):
    """PACT ActFn forward: clamp to [0, alpha], then k-bit fake quantization."""
    alpha = jnp.maximum(alpha_scalar, 1e-6)      # guard against alpha <= 0
    levels = 2.0 ** K_BITS - 1.0
    scale = levels / alpha                       # scalar-only division
    inv_scale = alpha / levels                   # scalar-only division
    y = jnp.clip(v, 0.0, alpha)
    return jnp.round(y * scale) * inv_scale


def _mnet_kernel(x_ref, w1_ref, b1_ref, w2_ref, b2_ref, wf_ref, bf_ref,
                 s1_ref, s2_ref, alpha_ref, o_ref):
    # Per-sample input plane (grid axis = batch).
    x = x_ref[0]            # (18, 18)   h on sublanes, w on lanes
    w1 = w1_ref[...]        # (16, 9)    [cout, i*3+j]
    b1 = b1_ref[...]        # (16, 1)
    w2 = w2_ref[...]        # (32, 144)  [cout, (i*3+j)*16 + cin]
    b2 = b2_ref[...]        # (32, 1)
    wf = wf_ref[...]        # (10, 288)  [k, s*32 + c]  with s = ph2*3 + pw2
    bf = bf_ref[...]        # (10, 1)
    s1 = s1_ref[...]        # (127, 64)  0/1 stride-2 lane-selection for pool1
    s2 = s2_ref[...]        # (17, 9)    0/1 stride-2 lane-selection for pool2

    # TODO(synk): the reference model's quant() module class is undefined; treated as identity.

    # ---- conv1 (1 -> 16, 3x3) on the VPU + PACT ---------------------------------
    # o1[c, oh*16 + ow] = b1[c] + sum_{i,j} w1[c, i*3+j] * x[oh+i, ow+j]
    acc1 = None
    for i in range(3):
        for j in range(3):
            # row[0, oh*16 + ow] = x[oh+i, ow+j]  (built from 16 shifted row slices)
            row = jnp.concatenate(
                [x[oh + i:oh + i + 1, j:j + 16] for oh in range(16)], axis=1)   # (1, 256)
            term = w1[:, i * 3 + j:i * 3 + j + 1] * row                          # (16, 256)
            acc1 = term if acc1 is None else acc1 + term
    a1 = _pact(acc1 + b1, alpha_ref[0])          # (16, 256), lane = oh*16 + ow

    # ---- maxpool 2x2 stride 2  -> (16, 64), lane = ph*8 + pw --------------------
    hb1 = [jnp.maximum(a1[:, (2 * p) * 16:(2 * p) * 16 + 16],
                       a1[:, (2 * p + 1) * 16:(2 * p + 1) * 16 + 16])
           for p in range(8)]                    # max over the two rows of each pair
    h1 = jnp.concatenate(hb1, axis=1)            # (16, 128), lane = ph*16 + ow
    wmax1 = jnp.maximum(h1[:, 0:127], h1[:, 1:128])                              # (16, 127)
    p1 = jnp.dot(wmax1, s1, preferred_element_type=jnp.float32)                  # (16, 64)

    # ---- conv2 (16 -> 32, 3x3) on the MXU + PACT --------------------------------
    acc2 = None
    for i in range(3):
        for j in range(3):
            t = i * 3 + j
            # rhs[cin, oh2*6 + ow2] = p1[cin, (oh2+i)*8 + (ow2+j)]
            rhs = jnp.concatenate(
                [p1[:, (oh2 + i) * 8 + j:(oh2 + i) * 8 + j + 6] for oh2 in range(6)],
                axis=1)                                                          # (16, 36)
            term = jnp.dot(w2[:, t * 16:(t + 1) * 16], rhs,
                           preferred_element_type=jnp.float32)                   # (32, 36)
            acc2 = term if acc2 is None else acc2 + term
    a2 = _pact(acc2 + b2, alpha_ref[1])          # (32, 36), lane = oh2*6 + ow2

    # ---- maxpool 2x2 stride 2 -> (32, 9), lane = ph2*3 + pw2 --------------------
    hb2 = [jnp.maximum(a2[:, (2 * p) * 6:(2 * p) * 6 + 6],
                       a2[:, (2 * p + 1) * 6:(2 * p + 1) * 6 + 6])
           for p in range(3)]
    h2 = jnp.concatenate(hb2, axis=1)            # (32, 18)
    wmax2 = jnp.maximum(h2[:, 0:17], h2[:, 1:18])                                # (32, 17)
    p2 = jnp.dot(wmax2, s2, preferred_element_type=jnp.float32)                  # (32, 9)

    # ---- fc1 (flatten order == PyTorch NCHW .view(N, -1)) ------------------------
    out = bf                                     # (10, 1)
    for s in range(9):
        out = out + jnp.dot(wf[:, s * 32:(s + 1) * 32], p2[:, s:s + 1],
                            preferred_element_type=jnp.float32)                  # (10, 1)
    o_ref[0] = out                               # output block (1, 10, 1)


# ----------------------------------------------------------------------------
# Parameters (PyTorch layouts) and one-time packing into kernel layouts
# ----------------------------------------------------------------------------
def init_params(key):
    ks = jax.random.split(key, 6)

    def u(k, shape, fan_in):
        bound = 1.0 / float(np.sqrt(fan_in))
        return jax.random.uniform(k, shape, jnp.float32, -bound, bound)

    return dict(
        w1=u(ks[0], (16, 1, 3, 3), 9),       # PyTorch Conv2d layout (Cout, Cin, kh, kw)
        b1=u(ks[1], (16,), 9),
        alpha1=jnp.asarray(10.0, jnp.float32),
        w2=u(ks[2], (32, 16, 3, 3), 144),
        b2=u(ks[3], (32,), 144),
        alpha2=jnp.asarray(10.0, jnp.float32),
        wf=u(ks[4], (10, 288), 288),         # PyTorch Linear layout (out, in), in = c*9 + ph2*3 + pw2
        bf=u(ks[5], (10,), 288),
    )


def pack_params(p):
    """One-time repack into the kernel's layouts (no per-forward transposes)."""
    # stride-2 selection matrices for the pooled lane down-sample.
    s1 = np.zeros((127, 64), np.float32)
    for m in range(64):                      # m = ph*8 + pw  <-  lane ph*16 + 2*pw
        s1[(m // 8) * 16 + 2 * (m % 8), m] = 1.0
    s2 = np.zeros((17, 9), np.float32)
    for m in range(9):                       # m = ph2*3 + pw2  <-  lane ph2*6 + 2*pw2
        s2[(m // 3) * 6 + 2 * (m % 3), m] = 1.0

    return dict(
        w1=jnp.reshape(p["w1"], (16, 9)),                                   # [cout, i*3+j]
        b1=jnp.reshape(p["b1"], (16, 1)),
        w2=jnp.transpose(p["w2"], (0, 2, 3, 1)).reshape(32, 144),           # [cout, (i*3+j)*16+cin]
        b2=jnp.reshape(p["b2"], (32, 1)),
        wf=jnp.transpose(p["wf"].reshape(10, 32, 9), (0, 2, 1)).reshape(10, 288),  # [k, s*32+c]
        bf=jnp.reshape(p["bf"], (10, 1)),
        alphas=jnp.stack([p["alpha1"], p["alpha2"]]).astype(jnp.float32),   # (2,) SMEM scalars
        s1=jnp.asarray(s1),
        s2=jnp.asarray(s2),
    )


# ----------------------------------------------------------------------------
# Forward: one fused pallas_call, grid over the batch
# ----------------------------------------------------------------------------
def mnet_forward(packed, x_nchw):
    n = x_nchw.shape[0]
    x = x_nchw.reshape(n, 18, 18).astype(jnp.float32)       # NCHW, Cin=1 -> (N, 18, 18)

    out = pl.pallas_call(
        _mnet_kernel,
        out_shape=jax.ShapeDtypeStruct((n, 10, 1), jnp.float32),
        grid=(n,),
        in_specs=[
            pl.BlockSpec((1, 18, 18), lambda i: (i, 0, 0)),   # x (per-sample block)
            pl.BlockSpec((16, 9), lambda i: (0, 0)),          # w1
            pl.BlockSpec((16, 1), lambda i: (0, 0)),          # b1
            pl.BlockSpec((32, 144), lambda i: (0, 0)),        # w2
            pl.BlockSpec((32, 1), lambda i: (0, 0)),          # b2
            pl.BlockSpec((10, 288), lambda i: (0, 0)),        # wf
            pl.BlockSpec((10, 1), lambda i: (0, 0)),          # bf
            pl.BlockSpec((127, 64), lambda i: (0, 0)),        # pool1 selection
            pl.BlockSpec((17, 9), lambda i: (0, 0)),          # pool2 selection
            pl.BlockSpec(memory_space=pltpu.MemorySpace.SMEM),  # alphas (2,) scalars
        ],
        out_specs=pl.BlockSpec((1, 10, 1), lambda i: (i, 0, 0)),
        compiler_params=pltpu.CompilerParams(
            dimension_semantics=("parallel",)),               # batch splits across TCs on v7x
    )(x, packed["w1"], packed["b1"], packed["w2"], packed["b2"],
      packed["wf"], packed["bf"], packed["s1"], packed["s2"], packed["alphas"])

    return out.reshape(n, 10)


if __name__ == "__main__":
    key = jax.random.PRNGKey(0)
    kx, kp = jax.random.split(key)
    params = init_params(kp)
    packed = pack_params(params)          # one-time weight packing (not per forward)

    # 18x18 single-channel input => conv/pool stack yields 32*3*3 = fc1 in-features
    x = jax.random.normal(kx, (2, 1, 18, 18), jnp.float32)

    out = jax.jit(mnet_forward)(packed, x)
    out = jax.block_until_ready(out)
    assert out.shape == (2, 10) and out.dtype == jnp.float32
    print("KERNEL_OK")
</pallas_src>

<mosaic_0001>
module attributes {stable_mosaic.version = 11 : i64} {
  func.func @_mnet_kernel(%arg0: i32, %arg1: memref<1x18x18xf32, #tpu.memory_space<vmem>>, %arg2: memref<16x9xf32, #tpu.memory_space<vmem>>, %arg3: memref<16x1xf32, #tpu.memory_space<vmem>>, %arg4: memref<32x144xf32, #tpu.memory_space<vmem>>, %arg5: memref<32x1xf32, #tpu.memory_space<vmem>>, %arg6: memref<10x288xf32, #tpu.memory_space<vmem>>, %arg7: memref<10x1xf32, #tpu.memory_space<vmem>>, %arg8: memref<127x64xf32, #tpu.memory_space<vmem>>, %arg9: memref<17x9xf32, #tpu.memory_space<vmem>>, %arg10: memref<2xf32, #tpu.memory_space<smem>>, %arg11: memref<1x10x1xf32, #tpu.memory_space<vmem>>) attributes {dimension_semantics = [#tpu.dimension_semantics<parallel>], iteration_bounds = array<i64: 2>, scalar_prefetch = 0 : i64, scratch_operands = 0 : i64, tpu.core_type = #tpu.core_type<tc>, window_params = [{transform_indices = @transform_0, window_bounds = array<i64: 1, 18, 18>}, {pipeline_mode = #tpu.pipeline_mode<synchronous>, transform_indices = @transform_1, window_bounds = array<i64: 16, 9>}, {pipeline_mode = #tpu.pipeline_mode<synchronous>, transform_indices = @transform_2, window_bounds = array<i64: 16, 1>}, {pipeline_mode = #tpu.pipeline_mode<synchronous>, transform_indices = @transform_3, window_bounds = array<i64: 32, 144>}, {pipeline_mode = #tpu.pipeline_mode<synchronous>, transform_indices = @transform_4, window_bounds = array<i64: 32, 1>}, {pipeline_mode = #tpu.pipeline_mode<synchronous>, transform_indices = @transform_5, window_bounds = array<i64: 10, 288>}, {pipeline_mode = #tpu.pipeline_mode<synchronous>, transform_indices = @transform_6, window_bounds = array<i64: 10, 1>}, {pipeline_mode = #tpu.pipeline_mode<synchronous>, transform_indices = @transform_7, window_bounds = array<i64: 127, 64>}, {pipeline_mode = #tpu.pipeline_mode<synchronous>, transform_indices = @transform_8, window_bounds = array<i64: 17, 9>}, {transform_indices = @transform_9, window_bounds = array<i64: 2>}, {transform_indices = @transform_10, window_bounds = array<i64: 1, 10, 1>}]} {
    %c0 = arith.constant 0 : index
    %c0_0 = arith.constant 0 : index
    %c0_1 = arith.constant 0 : index
    %0 = vector.load %arg1[%c0, %c0_0, %c0_1] : memref<1x18x18xf32, #tpu.memory_space<vmem>>, vector<1x18x18xf32>
    %1 = vector.shape_cast %0 : vector<1x18x18xf32> to vector<18x18xf32>
    %c0_2 = arith.constant 0 : index
    %c0_3 = arith.constant 0 : index
    %2 = vector.load %arg2[%c0_2, %c0_3] : memref<16x9xf32, #tpu.memory_space<vmem>>, vector<16x9xf32>
    %c0_4 = arith.constant 0 : index
    %c0_5 = arith.constant 0 : index
    %3 = vector.load %arg3[%c0_4, %c0_5] : memref<16x1xf32, #tpu.memory_space<vmem>>, vector<16x1xf32>
    %c0_6 = arith.constant 0 : index
    %c0_7 = arith.constant 0 : index
    %4 = vector.load %arg4[%c0_6, %c0_7] : memref<32x144xf32, #tpu.memory_space<vmem>>, vector<32x144xf32>
    %c0_8 = arith.constant 0 : index
    %c0_9 = arith.constant 0 : index
    %5 = vector.load %arg5[%c0_8, %c0_9] : memref<32x1xf32, #tpu.memory_space<vmem>>, vector<32x1xf32>
    %c0_10 = arith.constant 0 : index
    %c0_11 = arith.constant 0 : index
    %6 = vector.load %arg6[%c0_10, %c0_11] : memref<10x288xf32, #tpu.memory_space<vmem>>, vector<10x288xf32>
    %c0_12 = arith.constant 0 : index
    %c0_13 = arith.constant 0 : index
    %7 = vector.load %arg7[%c0_12, %c0_13] : memref<10x1xf32, #tpu.memory_space<vmem>>, vector<10x1xf32>
    %c0_14 = arith.constant 0 : index
    %c0_15 = arith.constant 0 : index
    %8 = vector.load %arg8[%c0_14, %c0_15] : memref<127x64xf32, #tpu.memory_space<vmem>>, vector<127x64xf32>
    %c0_16 = arith.constant 0 : index
    %c0_17 = arith.constant 0 : index
    %9 = vector.load %arg9[%c0_16, %c0_17] : memref<17x9xf32, #tpu.memory_space<vmem>>, vector<17x9xf32>
    %10 = vector.extract_strided_slice %1 {offsets = [0, 0], sizes = [1, 16], strides = [1, 1]} : vector<18x18xf32> to vector<1x16xf32>
    %11 = vector.extract_strided_slice %1 {offsets = [1, 0], sizes = [1, 16], strides = [1, 1]} : vector<18x18xf32> to vector<1x16xf32>
    %12 = vector.extract_strided_slice %1 {offsets = [2, 0], sizes = [1, 16], strides = [1, 1]} : vector<18x18xf32> to vector<1x16xf32>
    %13 = vector.extract_strided_slice %1 {offsets = [3, 0], sizes = [1, 16], strides = [1, 1]} : vector<18x18xf32> to vector<1x16xf32>
    %14 = vector.extract_strided_slice %1 {offsets = [4, 0], sizes = [1, 16], strides = [1, 1]} : vector<18x18xf32> to vector<1x16xf32>
    %15 = vector.extract_strided_slice %1 {offsets = [5, 0], sizes = [1, 16], strides = [1, 1]} : vector<18x18xf32> to vector<1x16xf32>
    %16 = vector.extract_strided_slice %1 {offsets = [6, 0], sizes = [1, 16], strides = [1, 1]} : vector<18x18xf32> to vector<1x16xf32>
    %17 = vector.extract_strided_slice %1 {offsets = [7, 0], sizes = [1, 16], strides = [1, 1]} : vector<18x18xf32> to vector<1x16xf32>
    %18 = vector.extract_strided_slice %1 {offsets = [8, 0], sizes = [1, 16], strides = [1, 1]} : vector<18x18xf32> to vector<1x16xf32>
    %19 = vector.extract_strided_slice %1 {offsets = [9, 0], sizes = [1, 16], strides = [1, 1]} : vector<18x18xf32> to vector<1x16xf32>
    %20 = vector.extract_strided_slice %1 {offsets = [10, 0], sizes = [1, 16], strides = [1, 1]} : vector<18x18xf32> to vector<1x16xf32>
    %21 = vector.extract_strided_slice %1 {offsets = [11, 0], sizes = [1, 16], strides = [1, 1]} : vector<18x18xf32> to vector<1x16xf32>
    %22 = vector.extract_strided_slice %1 {offsets = [12, 0], sizes = [1, 16], strides = [1, 1]} : vector<18x18xf32> to vector<1x16xf32>
    %23 = vector.extract_strided_slice %1 {offsets = [13, 0], sizes = [1, 16], strides = [1, 1]} : vector<18x18xf32> to vector<1x16xf32>
    %24 = vector.extract_strided_slice %1 {offsets = [14, 0], sizes = [1, 16], strides = [1, 1]} : vector<18x18xf32> to vector<1x16xf32>
    %25 = vector.extract_strided_slice %1 {offsets = [15, 0], sizes = [1, 16], strides = [1, 1]} : vector<18x18xf32> to vector<1x16xf32>
    %26 = tpu.concatenate %10, %11, %12, %13, %14, %15, %16, %17, %18, %19, %20, %21, %22, %23, %24, %25 in 1 : vector<1x16xf32>, vector<1x16xf32>, vector<1x16xf32>, vector<1x16xf32>, vector<1x16xf32>, vector<1x16xf32>, vector<1x16xf32>, vector<1x16xf32>, vector<1x16xf32>, vector<1x16xf32>, vector<1x16xf32>, vector<1x16xf32>, vector<1x16xf32>, vector<1x16xf32>, vector<1x16xf32>, vector<1x16xf32> -> vector<1x256xf32>
    %27 = vector.extract_strided_slice %2 {offsets = [0, 0], sizes = [16, 1], strides = [1, 1]} : vector<16x9xf32> to vector<16x1xf32>
    %28 = vector.broadcast %27 : vector<16x1xf32> to vector<16x256xf32>
    %29 = vector.broadcast %26 : vector<1x256xf32> to vector<16x256xf32>
    %30 = arith.mulf %28, %29 : vector<16x256xf32>
    %31 = vector.extract_strided_slice %1 {offsets = [0, 1], sizes = [1, 16], strides = [1, 1]} : vector<18x18xf32> to vector<1x16xf32>
    %32 = vector.extract_strided_slice %1 {offsets = [1, 1], sizes = [1, 16], strides = [1, 1]} : vector<18x18xf32> to vector<1x16xf32>
    %33 = vector.extract_strided_slice %1 {offsets = [2, 1], sizes = [1, 16], strides = [1, 1]} : vector<18x18xf32> to vector<1x16xf32>
    %34 = vector.extract_strided_slice %1 {offsets = [3, 1], sizes = [1, 16], strides = [1, 1]} : vector<18x18xf32> to vector<1x16xf32>
    %35 = vector.extract_strided_slice %1 {offsets = [4, 1], sizes = [1, 16], strides = [1, 1]} : vector<18x18xf32> to vector<1x16xf32>
    %36 = vector.extract_strided_slice %1 {offsets = [5, 1], sizes = [1, 16], strides = [1, 1]} : vector<18x18xf32> to vector<1x16xf32>
    %37 = vector.extract_strided_slice %1 {offsets = [6, 1], sizes = [1, 16], strides = [1, 1]} : vector<18x18xf32> to vector<1x16xf32>
    %38 = vector.extract_strided_slice %1 {offsets = [7, 1], sizes = [1, 16], strides = [1, 1]} : vector<18x18xf32> to vector<1x16xf32>
    %39 = vector.extract_strided_slice %1 {offsets = [8, 1], sizes = [1, 16], strides = [1, 1]} : vector<18x18xf32> to vector<1x16xf32>
    %40 = vector.extract_strided_slice %1 {offsets = [9, 1], sizes = [1, 16], strides = [1, 1]} : vector<18x18xf32> to vector<1x16xf32>
    %41 = vector.extract_strided_slice %1 {offsets = [10, 1], sizes = [1, 16], strides = [1, 1]} : vector<18x18xf32> to vector<1x16xf32>
    %42 = vector.extract_strided_slice %1 {offsets = [11, 1], sizes = [1, 16], strides = [1, 1]} : vector<18x18xf32> to vector<1x16xf32>
    %43 = vector.extract_strided_slice %1 {offsets = [12, 1], sizes = [1, 16], strides = [1, 1]} : vector<18x18xf32> to vector<1x16xf32>
    %44 = vector.extract_strided_slice %1 {offsets = [13, 1], sizes = [1, 16], strides = [1, 1]} : vector<18x18xf32> to vector<1x16xf32>
    %45 = vector.extract_strided_slice %1 {offsets = [14, 1], sizes = [1, 16], strides = [1, 1]} : vector<18x18xf32> to vector<1x16xf32>
    %46 = vector.extract_strided_slice %1 {offsets = [15, 1], sizes = [1, 16], strides = [1, 1]} : vector<18x18xf32> to vector<1x16xf32>
    %47 = tpu.concatenate %31, %32, %33, %34, %35, %36, %37, %38, %39, %40, %41, %42, %43, %44, %45, %46 in 1 : vector<1x16xf32>, vector<1x16xf32>, vector<1x16xf32>, vector<1x16xf32>, vector<1x16xf32>, vector<1x16xf32>, vector<1x16xf32>, vector<1x16xf32>, vector<1x16xf32>, vector<1x16xf32>, vector<1x16xf32>, vector<1x16xf32>, vector<1x16xf32>, vector<1x16xf32>, vector<1x16xf32>, vector<1x16xf32> -> vector<1x256xf32>
    %48 = vector.extract_strided_slice %2 {offsets = [0, 1], sizes = [16, 1], strides = [1, 1]} : vector<16x9xf32> to vector<16x1xf32>
    %49 = vector.broadcast %48 : vector<16x1xf32> to vector<16x256xf32>
    %50 = vector.broadcast %47 : vector<1x256xf32> to vector<16x256xf32>
    %51 = arith.mulf %49, %50 : vector<16x256xf32>
    %52 = arith.addf %30, %51 : vector<16x256xf32>
    %53 = vector.extract_strided_slice %1 {offsets = [0, 2], sizes = [1, 16], strides = [1, 1]} : vector<18x18xf32> to vector<1x16xf32>
    %54 = vector.extract_strided_slice %1 {offsets = [1, 2], sizes = [1, 16], strides = [1, 1]} : vector<18x18xf32> to vector<1x16xf32>
    %55 = vector.extract_strided_slice %1 {offsets = [2, 2], sizes = [1, 16], strides = [1, 1]} : vector<18x18xf32> to vector<1x16xf32>
    %56 = vector.extract_strided_slice %1 {offsets = [3, 2], sizes = [1, 16], strides = [1, 1]} : vector<18x18xf32> to vector<1x16xf32>
    %57 = vector.extract_strided_slice %1 {offsets = [4, 2], sizes = [1, 16], strides = [1, 1]} : vector<18x18xf32> to vector<1x16xf32>
    %58 = vector.extract_strided_slice %1 {offsets = [5, 2], sizes = [1, 16], strides = [1, 1]} : vector<18x18xf32> to vector<1x16xf32>
    %59 = vector.extract_strided_slice %1 {offsets = [6, 2], sizes = [1, 16], strides = [1, 1]} : vector<18x18xf32> to vector<1x16xf32>
    %60 = vector.extract_strided_slice %1 {offsets = [7, 2], sizes = [1, 16], strides = [1, 1]} : vector<18x18xf32> to vector<1x16xf32>
    %61 = vector.extract_strided_slice %1 {offsets = [8, 2], sizes = [1, 16], strides = [1, 1]} : vector<18x18xf32> to vector<1x16xf32>
    %62 = vector.extract_strided_slice %1 {offsets = [9, 2], sizes = [1, 16], strides = [1, 1]} : vector<18x18xf32> to vector<1x16xf32>
    %63 = vector.extract_strided_slice %1 {offsets = [10, 2], sizes = [1, 16], strides = [1, 1]} : vector<18x18xf32> to vector<1x16xf32>
    %64 = vector.extract_strided_slice %1 {offsets = [11, 2], sizes = [1, 16], strides = [1, 1]} : vector<18x18xf32> to vector<1x16xf32>
    %65 = vector.extract_strided_slice %1 {offsets = [12, 2], sizes = [1, 16], strides = [1, 1]} : vector<18x18xf32> to vector<1x16xf32>
    %66 = vector.extract_strided_slice %1 {offsets = [13, 2], sizes = [1, 16], strides = [1, 1]} : vector<18x18xf32> to vector<1x16xf32>
    %67 = vector.extract_strided_slice %1 {offsets = [14, 2], sizes = [1, 16], strides = [1, 1]} : vector<18x18xf32> to vector<1x16xf32>
    %68 = vector.extract_strided_slice %1 {offsets = [15, 2], sizes = [1, 16], strides = [1, 1]} : vector<18x18xf32> to vector<1x16xf32>
    %69 = tpu.concatenate %53, %54, %55, %56, %57, %58, %59, %60, %61, %62, %63, %64, %65, %66, %67, %68 in 1 : vector<1x16xf32>, vector<1x16xf32>, vector<1x16xf32>, vector<1x16xf32>, vector<1x16xf32>, vector<1x16xf32>, vector<1x16xf32>, vector<1x16xf32>, vector<1x16xf32>, vector<1x16xf32>, vector<1x16xf32>, vector<1x16xf32>, vector<1x16xf32>, vector<1x16xf32>, vector<1x16xf32>, vector<1x16xf32> -> vector<1x256xf32>
    %70 = vector.extract_strided_slice %2 {offsets = [0, 2], sizes = [16, 1], strides = [1, 1]} : vector<16x9xf32> to vector<16x1xf32>
    %71 = vector.broadcast %70 : vector<16x1xf32> to vector<16x256xf32>
    %72 = vector.broadcast %69 : vector<1x256xf32> to vector<16x256xf32>
    %73 = arith.mulf %71, %72 : vector<16x256xf32>
    %74 = arith.addf %52, %73 : vector<16x256xf32>
    %75 = vector.extract_strided_slice %1 {offsets = [1, 0], sizes = [1, 16], strides = [1, 1]} : vector<18x18xf32> to vector<1x16xf32>
    %76 = vector.extract_strided_slice %1 {offsets = [2, 0], sizes = [1, 16], strides = [1, 1]} : vector<18x18xf32> to vector<1x16xf32>
    %77 = vector.extract_strided_slice %1 {offsets = [3, 0], sizes = [1, 16], strides = [1, 1]} : vector<18x18xf32> to vector<1x16xf32>
    %78 = vector.extract_strided_slice %1 {offsets = [4, 0], sizes = [1, 16], strides = [1, 1]} : vector<18x18xf32> to vector<1x16xf32>
    %79 = vector.extract_strided_slice %1 {offsets = [5, 0], sizes = [1, 16], strides = [1, 1]} : vector<18x18xf32> to vector<1x16xf32>
    %80 = vector.extract_strided_slice %1 {offsets = [6, 0], sizes = [1, 16], strides = [1, 1]} : vector<18x18xf32> to vector<1x16xf32>
    %81 = vector.extract_strided_slice %1 {offsets = [7, 0], sizes = [1, 16], strides = [1, 1]} : vector<18x18xf32> to vector<1x16xf32>
    %82 = vector.extract_strided_slice %1 {offsets = [8, 0], sizes = [1, 16], strides = [1, 1]} : vector<18x18xf32> to vector<1x16xf32>
    %83 = vector.extract_strided_slice %1 {offsets = [9, 0], sizes = [1, 16], strides = [1, 1]} : vector<18x18xf32> to vector<1x16xf32>
    %84 = vector.extract_strided_slice %1 {offsets = [10, 0], sizes = [1, 16], strides = [1, 1]} : vector<18x18xf32> to vector<1x16xf32>
    %85 = vector.extract_strided_slice %1 {offsets = [11, 0], sizes = [1, 16], strides = [1, 1]} : vector<18x18xf32> to vector<1x16xf32>
    %86 = vector.extract_strided_slice %1 {offsets = [12, 0], sizes = [1, 16], strides = [1, 1]} : vector<18x18xf32> to vector<1x16xf32>
    %87 = vector.extract_strided_slice %1 {offsets = [13, 0], sizes = [1, 16], strides = [1, 1]} : vector<18x18xf32> to vector<1x16xf32>
    %88 = vector.extract_strided_slice %1 {offsets = [14, 0], sizes = [1, 16], strides = [1, 1]} : vector<18x18xf32> to vector<1x16xf32>
    %89 = vector.extract_strided_slice %1 {offsets = [15, 0], sizes = [1, 16], strides = [1, 1]} : vector<18x18xf32> to vector<1x16xf32>
    %90 = vector.extract_strided_slice %1 {offsets = [16, 0], sizes = [1, 16], strides = [1, 1]} : vector<18x18xf32> to vector<1x16xf32>
    %91 = tpu.concatenate %75, %76, %77, %78, %79, %80, %81, %82, %83, %84, %85, %86, %87, %88, %89, %90 in 1 : vector<1x16xf32>, vector<1x16xf32>, vector<1x16xf32>, vector<1x16xf32>, vector<1x16xf32>, vector<1x16xf32>, vector<1x16xf32>, vector<1x16xf32>, vector<1x16xf32>, vector<1x16xf32>, vector<1x16xf32>, vector<1x16xf32>, vector<1x16xf32>, vector<1x16xf32>, vector<1x16xf32>, vector<1x16xf32> -> vector<1x256xf32>
    %92 = vector.extract_strided_slice %2 {offsets = [0, 3], sizes = [16, 1], strides = [1, 1]} : vector<16x9xf32> to vector<16x1xf32>
    %93 = vector.broadcast %92 : vector<16x1xf32> to vector<16x256xf32>
    %94 = vector.broadcast %91 : vector<1x256xf32> to vector<16x256xf32>
    %95 = arith.mulf %93, %94 : vector<16x256xf32>
    %96 = arith.addf %74, %95 : vector<16x256xf32>
    %97 = vector.extract_strided_slice %1 {offsets = [1, 1], sizes = [1, 16], strides = [1, 1]} : vector<18x18xf32> to vector<1x16xf32>
    %98 = vector.extract_strided_slice %1 {offsets = [2, 1], sizes = [1, 16], strides = [1, 1]} : vector<18x18xf32> to vector<1x16xf32>
    %99 = vector.extract_strided_slice %1 {offsets = [3, 1], sizes = [1, 16], strides = [1, 1]} : vector<18x18xf32> to vector<1x16xf32>
    %100 = vector.extract_strided_slice %1 {offsets = [4, 1], sizes = [1, 16], strides = [1, 1]} : vector<18x18xf32> to vector<1x16xf32>
    %101 = vector.extract_strided_slice %1 {offsets = [5, 1], sizes = [1, 16], strides = [1, 1]} : vector<18x18xf32> to vector<1x16xf32>
    %102 = vector.extract_strided_slice %1 {offsets = [6, 1], sizes = [1, 16], strides = [1, 1]} : vector<18x18xf32> to vector<1x16xf32>
    %103 = vector.extract_strided_slice %1 {offsets = [7, 1], sizes = [1, 16], strides = [1, 1]} : vector<18x18xf32> to vector<1x16xf32>
    %104 = vector.extract_strided_slice %1 {offsets = [8, 1], sizes = [1, 16], strides = [1, 1]} : vector<18x18xf32> to vector<1x16xf32>
    %105 = vector.extract_strided_slice %1 {offsets = [9, 1], sizes = [1, 16], strides = [1, 1]} : vector<18x18xf32> to vector<1x16xf32>
    %106 = vector.extract_strided_slice %1 {offsets = [10, 1], sizes = [1, 16], strides = [1, 1]} : vector<18x18xf32> to vector<1x16xf32>
    %107 = vector.extract_strided_slice %1 {offsets = [11, 1], sizes = [1, 16], strides = [1, 1]} : vector<18x18xf32> to vector<1x16xf32>
    %108 = vector.extract_strided_slice %1 {offsets = [12, 1], sizes = [1, 16], strides = [1, 1]} : vector<18x18xf32> to vector<1x16xf32>
    %109 = vector.extract_strided_slice %1 {offsets = [13, 1], sizes = [1, 16], strides = [1, 1]} : vector<18x18xf32> to vector<1x16xf32>
    %110 = vector.extract_strided_slice %1 {offsets = [14, 1], sizes = [1, 16], strides = [1, 1]} : vector<18x18xf32> to vector<1x16xf32>
    %111 = vector.extract_strided_slice %1 {offsets = [15, 1], sizes = [1, 16], strides = [1, 1]} : vector<18x18xf32> to vector<1x16xf32>
    %112 = vector.extract_strided_slice %1 {offsets = [16, 1], sizes = [1, 16], strides = [1, 1]} : vector<18x18xf32> to vector<1x16xf32>
    %113 = tpu.concatenate %97, %98, %99, %100, %101, %102, %103, %104, %105, %106, %107, %108, %109, %110, %111, %112 in 1 : vector<1x16xf32>, vector<1x16xf32>, vector<1x16xf32>, vector<1x16xf32>, vector<1x16xf32>, vector<1x16xf32>, vector<1x16xf32>, vector<1x16xf32>, vector<1x16xf32>, vector<1x16xf32>, vector<1x16xf32>, vector<1x16xf32>, vector<1x16xf32>, vector<1x16xf32>, vector<1x16xf32>, vector<1x16xf32> -> vector<1x256xf32>
    %114 = vector.extract_strided_slice %2 {offsets = [0, 4], sizes = [16, 1], strides = [1, 1]} : vector<16x9xf32> to vector<16x1xf32>
    %115 = vector.broadcast %114 : vector<16x1xf32> to vector<16x256xf32>
    %116 = vector.broadcast %113 : vector<1x256xf32> to vector<16x256xf32>
    %117 = arith.mulf %115, %116 : vector<16x256xf32>
    %118 = arith.addf %96, %117 : vector<16x256xf32>
    %119 = vector.extract_strided_slice %1 {offsets = [1, 2], sizes = [1, 16], strides = [1, 1]} : vector<18x18xf32> to vector<1x16xf32>
    %120 = vector.extract_strided_slice %1 {offsets = [2, 2], sizes = [1, 16], strides = [1, 1]} : vector<18x18xf32> to vector<1x16xf32>
    %121 = vector.extract_strided_slice %1 {offsets = [3, 2], sizes = [1, 16], strides = [1, 1]} : vector<18x18xf32> to vector<1x16xf32>
    %122 = vector.extract_strided_slice %1 {offsets = [4, 2], sizes = [1, 16], strides = [1, 1]} : vector<18x18xf32> to vector<1x16xf32>
    %123 = vector.extract_strided_slice %1 {offsets = [5, 2], sizes = [1, 16], strides = [1, 1]} : vector<18x18xf32> to vector<1x16xf32>
    %124 = vector.extract_strided_slice %1 {offsets = [6, 2], sizes = [1, 16], strides = [1, 1]} : vector<18x18xf32> to vector<1x16xf32>
    %125 = vector.extract_strided_slice %1 {offsets = [7, 2], sizes = [1, 16], strides = [1, 1]} : vector<18x18xf32> to vector<1x16xf32>
    %126 = vector.extract_strided_slice %1 {offsets = [8, 2], sizes = [1, 16], strides = [1, 1]} : vector<18x18xf32> to vector<1x16xf32>
    %127 = vector.extract_strided_slice %1 {offsets = [9, 2], sizes = [1, 16], strides = [1, 1]} : vector<18x18xf32> to vector<1x16xf32>
    %128 = vector.extract_strided_slice %1 {offsets = [10, 2], sizes = [1, 16], strides = [1, 1]} : vector<18x18xf32> to vector<1x16xf32>
    %129 = vector.extract_strided_slice %1 {offsets = [11, 2], sizes = [1, 16], strides = [1, 1]} : vector<18x18xf32> to vector<1x16xf32>
    %130 = vector.extract_strided_slice %1 {offsets = [12, 2], sizes = [1, 16], strides = [1, 1]} : vector<18x18xf32> to vector<1x16xf32>
    %131 = vector.extract_strided_slice %1 {offsets = [13, 2], sizes = [1, 16], strides = [1, 1]} : vector<18x18xf32> to vector<1x16xf32>
    %132 = vector.extract_strided_slice %1 {offsets = [14, 2], sizes = [1, 16], strides = [1, 1]} : vector<18x18xf32> to vector<1x16xf32>
    %133 = vector.extract_strided_slice %1 {offsets = [15, 2], sizes = [1, 16], strides = [1, 1]} : vector<18x18xf32> to vector<1x16xf32>
    %134 = vector.extract_strided_slice %1 {offsets = [16, 2], sizes = [1, 16], strides = [1, 1]} : vector<18x18xf32> to vector<1x16xf32>
    %135 = tpu.concatenate %119, %120, %121, %122, %123, %124, %125, %126, %127, %128, %129, %130, %131, %132, %133, %134 in 1 : vector<1x16xf32>, vector<1x16xf32>, vector<1x16xf32>, vector<1x16xf32>, vector<1x16xf32>, vector<1x16xf32>, vector<1x16xf32>, vector<1x16xf32>, vector<1x16xf32>, vector<1x16xf32>, vector<1x16xf32>, vector<1x16xf32>, vector<1x16xf32>, vector<1x16xf32>, vector<1x16xf32>, vector<1x16xf32> -> vector<1x256xf32>
    %136 = vector.extract_strided_slice %2 {offsets = [0, 5], sizes = [16, 1], strides = [1, 1]} : vector<16x9xf32> to vector<16x1xf32>
    %137 = vector.broadcast %136 : vector<16x1xf32> to vector<16x256xf32>
    %138 = vector.broadcast %135 : vector<1x256xf32> to vector<16x256xf32>
    %139 = arith.mulf %137, %138 : vector<16x256xf32>
    %140 = arith.addf %118, %139 : vector<16x256xf32>
    %141 = vector.extract_strided_slice %1 {offsets = [2, 0], sizes = [1, 16], strides = [1, 1]} : vector<18x18xf32> to vector<1x16xf32>
    %142 = vector.extract_strided_slice %1 {offsets = [3, 0], sizes = [1, 16], strides = [1, 1]} : vector<18x18xf32> to vector<1x16xf32>
    %143 = vector.extract_strided_slice %1 {offsets = [4, 0], sizes = [1, 16], strides = [1, 1]} : vector<18x18xf32> to vector<1x16xf32>
    %144 = vector.extract_strided_slice %1 {offsets = [5, 0], sizes = [1, 16], strides = [1, 1]} : vector<18x18xf32> to vector<1x16xf32>
    %145 = vector.extract_strided_slice %1 {offsets = [6, 0], sizes = [1, 16], strides = [1, 1]} : vector<18x18xf32> to vector<1x16xf32>
    %146 = vector.extract_strided_slice %1 {offsets = [7, 0], sizes = [1, 16], strides = [1, 1]} : vector<18x18xf32> to vector<1x16xf32>
    %147 = vector.extract_strided_slice %1 {offsets = [8, 0], sizes = [1, 16], strides = [1, 1]} : vector<18x18xf32> to vector<1x16xf32>
    %148 = vector.extract_strided_slice %1 {offsets = [9, 0], sizes = [1, 16], strides = [1, 1]} : vector<18x18xf32> to vector<1x16xf32>
    %149 = vector.extract_strided_slice %1 {offsets = [10, 0], sizes = [1, 16], strides = [1, 1]} : vector<18x18xf32> to vector<1x16xf32>
    %150 = vector.extract_strided_slice %1 {offsets = [11, 0], sizes = [1, 16], strides = [1, 1]} : vector<18x18xf32> to vector<1x16xf32>
    %151 = vector.extract_strided_slice %1 {offsets = [12, 0], sizes = [1, 16], strides = [1, 1]} : vector<18x18xf32> to vector<1x16xf32>
    %152 = vector.extract_strided_slice %1 {offsets = [13, 0], sizes = [1, 16], strides = [1, 1]} : vector<18x18xf32> to vector<1x16xf32>
    %153 = vector.extract_strided_slice %1 {offsets = [14, 0], sizes = [1, 16], strides = [1, 1]} : vector<18x18xf32> to vector<1x16xf32>
    %154 = vector.extract_strided_slice %1 {offsets = [15, 0], sizes = [1, 16], strides = [1, 1]} : vector<18x18xf32> to vector<1x16xf32>
    %155 = vector.extract_strided_slice %1 {offsets = [16, 0], sizes = [1, 16], strides = [1, 1]} : vector<18x18xf32> to vector<1x16xf32>
    %156 = vector.extract_strided_slice %1 {offsets = [17, 0], sizes = [1, 16], strides = [1, 1]} : vector<18x18xf32> to vector<1x16xf32>
    %157 = tpu.concatenate %141, %142, %143, %144, %145, %146, %147, %148, %149, %150, %151, %152, %153, %154, %155, %156 in 1 : vector<1x16xf32>, vector<1x16xf32>, vector<1x16xf32>, vector<1x16xf32>, vector<1x16xf32>, vector<1x16xf32>, vector<1x16xf32>, vector<1x16xf32>, vector<1x16xf32>, vector<1x16xf32>, vector<1x16xf32>, vector<1x16xf32>, vector<1x16xf32>, vector<1x16xf32>, vector<1x16xf32>, vector<1x16xf32> -> vector<1x256xf32>
    %158 = vector.extract_strided_slice %2 {offsets = [0, 6], sizes = [16, 1], strides = [1, 1]} : vector<16x9xf32> to vector<16x1xf32>
    %159 = vector.broadcast %158 : vector<16x1xf32> to vector<16x256xf32>
    %160 = vector.broadcast %157 : vector<1x256xf32> to vector<16x256xf32>
    %161 = arith.mulf %159, %160 : vector<16x256xf32>
    %162 = arith.addf %140, %161 : vector<16x256xf32>
    %163 = vector.extract_strided_slice %1 {offsets = [2, 1], sizes = [1, 16], strides = [1, 1]} : vector<18x18xf32> to vector<1x16xf32>
    %164 = vector.extract_strided_slice %1 {offsets = [3, 1], sizes = [1, 16], strides = [1, 1]} : vector<18x18xf32> to vector<1x16xf32>
    %165 = vector.extract_strided_slice %1 {offsets = [4, 1], sizes = [1, 16], strides = [1, 1]} : vector<18x18xf32> to vector<1x16xf32>
    %166 = vector.extract_strided_slice %1 {offsets = [5, 1], sizes = [1, 16], strides = [1, 1]} : vector<18x18xf32> to vector<1x16xf32>
    %167 = vector.extract_strided_slice %1 {offsets = [6, 1], sizes = [1, 16], strides = [1, 1]} : vector<18x18xf32> to vector<1x16xf32>
    %168 = vector.extract_strided_slice %1 {offsets = [7, 1], sizes = [1, 16], strides = [1, 1]} : vector<18x18xf32> to vector<1x16xf32>
    %169 = vector.extract_strided_slice %1 {offsets = [8, 1], sizes = [1, 16], strides = [1, 1]} : vector<18x18xf32> to vector<1x16xf32>
    %170 = vector.extract_strided_slice %1 {offsets = [9, 1], sizes = [1, 16], strides = [1, 1]} : vector<18x18xf32> to vector<1x16xf32>
    %171 = vector.extract_strided_slice %1 {offsets = [10, 1], sizes = [1, 16], strides = [1, 1]} : vector<18x18xf32> to vector<1x16xf32>
    %172 = vector.extract_strided_slice %1 {offsets = [11, 1], sizes = [1, 16], strides = [1, 1]} : vector<18x18xf32> to vector<1x16xf32>
    %173 = vector.extract_strided_slice %1 {offsets = [12, 1], sizes = [1, 16], strides = [1, 1]} : vector<18x18xf32> to vector<1x16xf32>
    %174 = vector.extract_strided_slice %1 {offsets = [13, 1], sizes = [1, 16], strides = [1, 1]} : vector<18x18xf32> to vector<1x16xf32>
    %175 = vector.extract_strided_slice %1 {offsets = [14, 1], sizes = [1, 16], strides = [1, 1]} : vector<18x18xf32> to vector<1x16xf32>
    %176 = vector.extract_strided_slice %1 {offsets = [15, 1], sizes = [1, 16], strides = [1, 1]} : vector<18x18xf32> to vector<1x16xf32>
    %177 = vector.extract_strided_slice %1 {offsets = [16, 1], sizes = [1, 16], strides = [1, 1]} : vector<18x18xf32> to vector<1x16xf32>
    %178 = vector.extract_strided_slice %1 {offsets = [17, 1], sizes = [1, 16], strides = [1, 1]} : vector<18x18xf32> to vector<1x16xf32>
    %179 = tpu.concatenate %163, %164, %165, %166, %167, %168, %169, %170, %171, %172, %173, %174, %175, %176, %177, %178 in 1 : vector<1x16xf32>, vector<1x16xf32>, vector<1x16xf32>, vector<1x16xf32>, vector<1x16xf32>, vector<1x16xf32>, vector<1x16xf32>, vector<1x16xf32>, vector<1x16xf32>, vector<1x16xf32>, vector<1x16xf32>, vector<1x16xf32>, vector<1x16xf32>, vector<1x16xf32>, vector<1x16xf32>, vector<1x16xf32> -> vector<1x256xf32>
    %180 = vector.extract_strided_slice %2 {offsets = [0, 7], sizes = [16, 1], strides = [1, 1]} : vector<16x9xf32> to vector<16x1xf32>
    %181 = vector.broadcast %180 : vector<16x1xf32> to vector<16x256xf32>
    %182 = vector.broadcast %179 : vector<1x256xf32> to vector<16x256xf32>
    %183 = arith.mulf %181, %182 : vector<16x256xf32>
    %184 = arith.addf %162, %183 : vector<16x256xf32>
    %185 = vector.extract_strided_slice %1 {offsets = [2, 2], sizes = [1, 16], strides = [1, 1]} : vector<18x18xf32> to vector<1x16xf32>
    %186 = vector.extract_strided_slice %1 {offsets = [3, 2], sizes = [1, 16], strides = [1, 1]} : vector<18x18xf32> to vector<1x16xf32>
    %187 = vector.extract_strided_slice %1 {offsets = [4, 2], sizes = [1, 16], strides = [1, 1]} : vector<18x18xf32> to vector<1x16xf32>
    %188 = vector.extract_strided_slice %1 {offsets = [5, 2], sizes = [1, 16], strides = [1, 1]} : vector<18x18xf32> to vector<1x16xf32>
    %189 = vector.extract_strided_slice %1 {offsets = [6, 2], sizes = [1, 16], strides = [1, 1]} : vector<18x18xf32> to vector<1x16xf32>
    %190 = vector.extract_strided_slice %1 {offsets = [7, 2], sizes = [1, 16], strides = [1, 1]} : vector<18x18xf32> to vector<1x16xf32>
    %191 = vector.extract_strided_slice %1 {offsets = [8, 2], sizes = [1, 16], strides = [1, 1]} : vector<18x18xf32> to vector<1x16xf32>
    %192 = vector.extract_strided_slice %1 {offsets = [9, 2], sizes = [1, 16], strides = [1, 1]} : vector<18x18xf32> to vector<1x16xf32>
    %193 = vector.extract_strided_slice %1 {offsets = [10, 2], sizes = [1, 16], strides = [1, 1]} : vector<18x18xf32> to vector<1x16xf32>
    %194 = vector.extract_strided_slice %1 {offsets = [11, 2], sizes = [1, 16], strides = [1, 1]} : vector<18x18xf32> to vector<1x16xf32>
    %195 = vector.extract_strided_slice %1 {offsets = [12, 2], sizes = [1, 16], strides = [1, 1]} : vector<18x18xf32> to vector<1x16xf32>
    %196 = vector.extract_strided_slice %1 {offsets = [13, 2], sizes = [1, 16], strides = [1, 1]} : vector<18x18xf32> to vector<1x16xf32>
    %197 = vector.extract_strided_slice %1 {offsets = [14, 2], sizes = [1, 16], strides = [1, 1]} : vector<18x18xf32> to vector<1x16xf32>
    %198 = vector.extract_strided_slice %1 {offsets = [15, 2], sizes = [1, 16], strides = [1, 1]} : vector<18x18xf32> to vector<1x16xf32>
    %199 = vector.extract_strided_slice %1 {offsets = [16, 2], sizes = [1, 16], strides = [1, 1]} : vector<18x18xf32> to vector<1x16xf32>
    %200 = vector.extract_strided_slice %1 {offsets = [17, 2], sizes = [1, 16], strides = [1, 1]} : vector<18x18xf32> to vector<1x16xf32>
    %201 = tpu.concatenate %185, %186, %187, %188, %189, %190, %191, %192, %193, %194, %195, %196, %197, %198, %199, %200 in 1 : vector<1x16xf32>, vector<1x16xf32>, vector<1x16xf32>, vector<1x16xf32>, vector<1x16xf32>, vector<1x16xf32>, vector<1x16xf32>, vector<1x16xf32>, vector<1x16xf32>, vector<1x16xf32>, vector<1x16xf32>, vector<1x16xf32>, vector<1x16xf32>, vector<1x16xf32>, vector<1x16xf32>, vector<1x16xf32> -> vector<1x256xf32>
    %202 = vector.extract_strided_slice %2 {offsets = [0, 8], sizes = [16, 1], strides = [1, 1]} : vector<16x9xf32> to vector<16x1xf32>
    %203 = vector.broadcast %202 : vector<16x1xf32> to vector<16x256xf32>
    %204 = vector.broadcast %201 : vector<1x256xf32> to vector<16x256xf32>
    %205 = arith.mulf %203, %204 : vector<16x256xf32>
    %206 = arith.addf %184, %205 : vector<16x256xf32>
    %207 = vector.broadcast %3 : vector<16x1xf32> to vector<16x256xf32>
    %208 = arith.addf %206, %207 : vector<16x256xf32>
    %c0_18 = arith.constant 0 : index
    %209 = memref.load %arg10[%c0_18] : memref<2xf32, #tpu.memory_space<smem>>
    %cst = arith.constant 9.99999997E-7 : f32
    %210 = arith.maximumf %209, %cst : f32
    %cst_19 = arith.constant 1.500000e+01 : f32
    %211 = arith.divf %cst_19, %210 : f32
    %cst_20 = arith.constant 1.500000e+01 : f32
    %212 = arith.divf %210, %cst_20 : f32
    %cst_21 = arith.constant 0.000000e+00 : f32
    %213 = vector.broadcast %cst_21 : f32 to vector<16x256xf32>
    %214 = arith.maximumf %213, %208 : vector<16x256xf32>
    %215 = vector.broadcast %210 : f32 to vector<16x256xf32>
    %216 = arith.minimumf %215, %214 : vector<16x256xf32>
    %217 = vector.broadcast %211 : f32 to vector<16x256xf32>
    %218 = arith.mulf %216, %217 : vector<16x256xf32>
    %219 = math.roundeven %218 : vector<16x256xf32>
    %220 = vector.broadcast %212 : f32 to vector<16x256xf32>
    %221 = arith.mulf %219, %220 : vector<16x256xf32>
    %222 = vector.extract_strided_slice %221 {offsets = [0, 0], sizes = [16, 16], strides = [1, 1]} : vector<16x256xf32> to vector<16x16xf32>
    %223 = vector.extract_strided_slice %221 {offsets = [0, 16], sizes = [16, 16], strides = [1, 1]} : vector<16x256xf32> to vector<16x16xf32>
    %224 = arith.maximumf %222, %223 : vector<16x16xf32>
    %225 = vector.extract_strided_slice %221 {offsets = [0, 32], sizes = [16, 16], strides = [1, 1]} : vector<16x256xf32> to vector<16x16xf32>
    %226 = vector.extract_strided_slice %221 {offsets = [0, 48], sizes = [16, 16], strides = [1, 1]} : vector<16x256xf32> to vector<16x16xf32>
    %227 = arith.maximumf %225, %226 : vector<16x16xf32>
    %228 = vector.extract_strided_slice %221 {offsets = [0, 64], sizes = [16, 16], strides = [1, 1]} : vector<16x256xf32> to vector<16x16xf32>
    %229 = vector.extract_strided_slice %221 {offsets = [0, 80], sizes = [16, 16], strides = [1, 1]} : vector<16x256xf32> to vector<16x16xf32>
    %230 = arith.maximumf %228, %229 : vector<16x16xf32>
    %231 = vector.extract_strided_slice %221 {offsets = [0, 96], sizes = [16, 16], strides = [1, 1]} : vector<16x256xf32> to vector<16x16xf32>
    %232 = vector.extract_strided_slice %221 {offsets = [0, 112], sizes = [16, 16], strides = [1, 1]} : vector<16x256xf32> to vector<16x16xf32>
    %233 = arith.maximumf %231, %232 : vector<16x16xf32>
    %234 = vector.extract_strided_slice %221 {offsets = [0, 128], sizes = [16, 16], strides = [1, 1]} : vector<16x256xf32> to vector<16x16xf32>
    %235 = vector.extract_strided_slice %221 {offsets = [0, 144], sizes = [16, 16], strides = [1, 1]} : vector<16x256xf32> to vector<16x16xf32>
    %236 = arith.maximumf %234, %235 : vector<16x16xf32>
    %237 = vector.extract_strided_slice %221 {offsets = [0, 160], sizes = [16, 16], strides = [1, 1]} : vector<16x256xf32> to vector<16x16xf32>
    %238 = vector.extract_strided_slice %221 {offsets = [0, 176], sizes = [16, 16], strides = [1, 1]} : vector<16x256xf32> to vector<16x16xf32>
    %239 = arith.maximumf %237, %238 : vector<16x16xf32>
    %240 = vector.extract_strided_slice %221 {offsets = [0, 192], sizes = [16, 16], strides = [1, 1]} : vector<16x256xf32> to vector<16x16xf32>
    %241 = vector.extract_strided_slice %221 {offsets = [0, 208], sizes = [16, 16], strides = [1, 1]} : vector<16x256xf32> to vector<16x16xf32>
    %242 = arith.maximumf %240, %241 : vector<16x16xf32>
    %243 = vector.extract_strided_slice %221 {offsets = [0, 224], sizes = [16, 16], strides = [1, 1]} : vector<16x256xf32> to vector<16x16xf32>
    %244 = vector.extract_strided_slice %221 {offsets = [0, 240], sizes = [16, 16], strides = [1, 1]} : vector<16x256xf32> to vector<16x16xf32>
    %245 = arith.maximumf %243, %244 : vector<16x16xf32>
    %246 = tpu.concatenate %224, %227, %230, %233, %236, %239, %242, %245 in 1 : vector<16x16xf32>, vector<16x16xf32>, vector<16x16xf32>, vector<16x16xf32>, vector<16x16xf32>, vector<16x16xf32>, vector<16x16xf32>, vector<16x16xf32> -> vector<16x128xf32>
    %247 = vector.extract_strided_slice %246 {offsets = [0, 0], sizes = [16, 127], strides = [1, 1]} : vector<16x128xf32> to vector<16x127xf32>
    %248 = vector.extract_strided_slice %246 {offsets = [0, 1], sizes = [16, 127], strides = [1, 1]} : vector<16x128xf32> to vector<16x127xf32>
    %249 = arith.maximumf %247, %248 : vector<16x127xf32>
    %cst_22 = arith.constant dense<0.000000e+00> : vector<16x64xf32>
    %250 = tpu.matmul %249, %8, %cst_22 {dimension_numbers = #tpu.dot_dimension_numbers<[1], [0], [0], [1], [0, 0, 1, 1], [], []>} : vector<16x127xf32>, vector<127x64xf32>, vector<16x64xf32> -> vector<16x64xf32>
    %251 = vector.extract_strided_slice %250 {offsets = [0, 0], sizes = [16, 6], strides = [1, 1]} : vector<16x64xf32> to vector<16x6xf32>
    %252 = vector.extract_strided_slice %250 {offsets = [0, 8], sizes = [16, 6], strides = [1, 1]} : vector<16x64xf32> to vector<16x6xf32>
    %253 = vector.extract_strided_slice %250 {offsets = [0, 16], sizes = [16, 6], strides = [1, 1]} : vector<16x64xf32> to vector<16x6xf32>
    %254 = vector.extract_strided_slice %250 {offsets = [0, 24], sizes = [16, 6], strides = [1, 1]} : vector<16x64xf32> to vector<16x6xf32>
    %255 = vector.extract_strided_slice %250 {offsets = [0, 32], sizes = [16, 6], strides = [1, 1]} : vector<16x64xf32> to vector<16x6xf32>
    %256 = vector.extract_strided_slice %250 {offsets = [0, 40], sizes = [16, 6], strides = [1, 1]} : vector<16x64xf32> to vector<16x6xf32>
    %257 = tpu.concatenate %251, %252, %253, %254, %255, %256 in 1 : vector<16x6xf32>, vector<16x6xf32>, vector<16x6xf32>, vector<16x6xf32>, vector<16x6xf32>, vector<16x6xf32> -> vector<16x36xf32>
    %258 = vector.extract_strided_slice %4 {offsets = [0, 0], sizes = [32, 16], strides = [1, 1]} : vector<32x144xf32> to vector<32x16xf32>
    %cst_23 = arith.constant dense<0.000000e+00> : vector<32x36xf32>
    %259 = tpu.matmul %258, %257, %cst_23 {dimension_numbers = #tpu.dot_dimension_numbers<[1], [0], [0], [1], [0, 0, 1, 1], [], []>} : vector<32x16xf32>, vector<16x36xf32>, vector<32x36xf32> -> vector<32x36xf32>
    %260 = vector.extract_strided_slice %250 {offsets = [0, 1], sizes = [16, 6], strides = [1, 1]} : vector<16x64xf32> to vector<16x6xf32>
    %261 = vector.extract_strided_slice %250 {offsets = [0, 9], sizes = [16, 6], strides = [1, 1]} : vector<16x64xf32> to vector<16x6xf32>
    %262 = vector.extract_strided_slice %250 {offsets = [0, 17], sizes = [16, 6], strides = [1, 1]} : vector<16x64xf32> to vector<16x6xf32>
    %263 = vector.extract_strided_slice %250 {offsets = [0, 25], sizes = [16, 6], strides = [1, 1]} : vector<16x64xf32> to vector<16x6xf32>
    %264 = vector.extract_strided_slice %250 {offsets = [0, 33], sizes = [16, 6], strides = [1, 1]} : vector<16x64xf32> to vector<16x6xf32>
    %265 = vector.extract_strided_slice %250 {offsets = [0, 41], sizes = [16, 6], strides = [1, 1]} : vector<16x64xf32> to vector<16x6xf32>
    %266 = tpu.concatenate %260, %261, %262, %263, %264, %265 in 1 : vector<16x6xf32>, vector<16x6xf32>, vector<16x6xf32>, vector<16x6xf32>, vector<16x6xf32>, vector<16x6xf32> -> vector<16x36xf32>
    %267 = vector.extract_strided_slice %4 {offsets = [0, 16], sizes = [32, 16], strides = [1, 1]} : vector<32x144xf32> to vector<32x16xf32>
    %cst_24 = arith.constant dense<0.000000e+00> : vector<32x36xf32>
    %268 = tpu.matmul %267, %266, %cst_24 {dimension_numbers = #tpu.dot_dimension_numbers<[1], [0], [0], [1], [0, 0, 1, 1], [], []>} : vector<32x16xf32>, vector<16x36xf32>, vector<32x36xf32> -> vector<32x36xf32>
    %269 = arith.addf %259, %268 : vector<32x36xf32>
    %270 = vector.extract_strided_slice %250 {offsets = [0, 2], sizes = [16, 6], strides = [1, 1]} : vector<16x64xf32> to vector<16x6xf32>
    %271 = vector.extract_strided_slice %250 {offsets = [0, 10], sizes = [16, 6], strides = [1, 1]} : vector<16x64xf32> to vector<16x6xf32>
    %272 = vector.extract_strided_slice %250 {offsets = [0, 18], sizes = [16, 6], strides = [1, 1]} : vector<16x64xf32> to vector<16x6xf32>
    %273 = vector.extract_strided_slice %250 {offsets = [0, 26], sizes = [16, 6], strides = [1, 1]} : vector<16x64xf32> to vector<16x6xf32>
    %274 = vector.extract_strided_slice %250 {offsets = [0, 34], sizes = [16, 6], strides = [1, 1]} : vector<16x64xf32> to vector<16x6xf32>
    %275 = vector.extract_strided_slice %250 {offsets = [0, 42], sizes = [16, 6], strides = [1, 1]} : vector<16x64xf32> to vector<16x6xf32>
    %276 = tpu.concatenate %270, %271, %272, %273, %274, %275 in 1 : vector<16x6xf32>, vector<16x6xf32>, vector<16x6xf32>, vector<16x6xf32>, vector<16x6xf32>, vector<16x6xf32> -> vector<16x36xf32>
    %277 = vector.extract_strided_slice %4 {offsets = [0, 32], sizes = [32, 16], strides = [1, 1]} : vector<32x144xf32> to vector<32x16xf32>
    %cst_25 = arith.constant dense<0.000000e+00> : vector<32x36xf32>
    %278 = tpu.matmul %277, %276, %cst_25 {dimension_numbers = #tpu.dot_dimension_numbers<[1], [0], [0], [1], [0, 0, 1, 1], [], []>} : vector<32x16xf32>, vector<16x36xf32>, vector<32x36xf32> -> vector<32x36xf32>
    %279 = arith.addf %269, %278 : vector<32x36xf32>
    %280 = vector.extract_strided_slice %250 {offsets = [0, 8], sizes = [16, 6], strides = [1, 1]} : vector<16x64xf32> to vector<16x6xf32>
    %281 = vector.extract_strided_slice %250 {offsets = [0, 16], sizes = [16, 6], strides = [1, 1]} : vector<16x64xf32> to vector<16x6xf32>
    %282 = vector.extract_strided_slice %250 {offsets = [0, 24], sizes = [16, 6], strides = [1, 1]} : vector<16x64xf32> to vector<16x6xf32>
    %283 = vector.extract_strided_slice %250 {offsets = [0, 32], sizes = [16, 6], strides = [1, 1]} : vector<16x64xf32> to vector<16x6xf32>
    %284 = vector.extract_strided_slice %250 {offsets = [0, 40], sizes = [16, 6], strides = [1, 1]} : vector<16x64xf32> to vector<16x6xf32>
    %285 = vector.extract_strided_slice %250 {offsets = [0, 48], sizes = [16, 6], strides = [1, 1]} : vector<16x64xf32> to vector<16x6xf32>
    %286 = tpu.concatenate %280, %281, %282, %283, %284, %285 in 1 : vector<16x6xf32>, vector<16x6xf32>, vector<16x6xf32>, vector<16x6xf32>, vector<16x6xf32>, vector<16x6xf32> -> vector<16x36xf32>
    %287 = vector.extract_strided_slice %4 {offsets = [0, 48], sizes = [32, 16], strides = [1, 1]} : vector<32x144xf32> to vector<32x16xf32>
    %cst_26 = arith.constant dense<0.000000e+00> : vector<32x36xf32>
    %288 = tpu.matmul %287, %286, %cst_26 {dimension_numbers = #tpu.dot_dimension_numbers<[1], [0], [0], [1], [0, 0, 1, 1], [], []>} : vector<32x16xf32>, vector<16x36xf32>, vector<32x36xf32> -> vector<32x36xf32>
    %289 = arith.addf %279, %288 : vector<32x36xf32>
    %290 = vector.extract_strided_slice %250 {offsets = [0, 9], sizes = [16, 6], strides = [1, 1]} : vector<16x64xf32> to vector<16x6xf32>
    %291 = vector.extract_strided_slice %250 {offsets = [0, 17], sizes = [16, 6], strides = [1, 1]} : vector<16x64xf32> to vector<16x6xf32>
    %292 = vector.extract_strided_slice %250 {offsets = [0, 25], sizes = [16, 6], strides = [1, 1]} : vector<16x64xf32> to vector<16x6xf32>
    %293 = vector.extract_strided_slice %250 {offsets = [0, 33], sizes = [16, 6], strides = [1, 1]} : vector<16x64xf32> to vector<16x6xf32>
    %294 = vector.extract_strided_slice %250 {offsets = [0, 41], sizes = [16, 6], strides = [1, 1]} : vector<16x64xf32> to vector<16x6xf32>
    %295 = vector.extract_strided_slice %250 {offsets = [0, 49], sizes = [16, 6], strides = [1, 1]} : vector<16x64xf32> to vector<16x6xf32>
    %296 = tpu.concatenate %290, %291, %292, %293, %294, %295 in 1 : vector<16x6xf32>, vector<16x6xf32>, vector<16x6xf32>, vector<16x6xf32>, vector<16x6xf32>, vector<16x6xf32> -> vector<16x36xf32>
    %297 = vector.extract_strided_slice %4 {offsets = [0, 64], sizes = [32, 16], strides = [1, 1]} : vector<32x144xf32> to vector<32x16xf32>
    %cst_27 = arith.constant dense<0.000000e+00> : vector<32x36xf32>
    %298 = tpu.matmul %297, %296, %cst_27 {dimension_numbers = #tpu.dot_dimension_numbers<[1], [0], [0], [1], [0, 0, 1, 1], [], []>} : vector<32x16xf32>, vector<16x36xf32>, vector<32x36xf32> -> vector<32x36xf32>
    %299 = arith.addf %289, %298 : vector<32x36xf32>
    %300 = vector.extract_strided_slice %250 {offsets = [0, 10], sizes = [16, 6], strides = [1, 1]} : vector<16x64xf32> to vector<16x6xf32>
    %301 = vector.extract_strided_slice %250 {offsets = [0, 18], sizes = [16, 6], strides = [1, 1]} : vector<16x64xf32> to vector<16x6xf32>
    %302 = vector.extract_strided_slice %250 {offsets = [0, 26], sizes = [16, 6], strides = [1, 1]} : vector<16x64xf32> to vector<16x6xf32>
    %303 = vector.extract_strided_slice %250 {offsets = [0, 34], sizes = [16, 6], strides = [1, 1]} : vector<16x64xf32> to vector<16x6xf32>
    %304 = vector.extract_strided_slice %250 {offsets = [0, 42], sizes = [16, 6], strides = [1, 1]} : vector<16x64xf32> to vector<16x6xf32>
    %305 = vector.extract_strided_slice %250 {offsets = [0, 50], sizes = [16, 6], strides = [1, 1]} : vector<16x64xf32> to vector<16x6xf32>
    %306 = tpu.concatenate %300, %301, %302, %303, %304, %305 in 1 : vector<16x6xf32>, vector<16x6xf32>, vector<16x6xf32>, vector<16x6xf32>, vector<16x6xf32>, vector<16x6xf32> -> vector<16x36xf32>
    %307 = vector.extract_strided_slice %4 {offsets = [0, 80], sizes = [32, 16], strides = [1, 1]} : vector<32x144xf32> to vector<32x16xf32>
    %cst_28 = arith.constant dense<0.000000e+00> : vector<32x36xf32>
    %308 = tpu.matmul %307, %306, %cst_28 {dimension_numbers = #tpu.dot_dimension_numbers<[1], [0], [0], [1], [0, 0, 1, 1], [], []>} : vector<32x16xf32>, vector<16x36xf32>, vector<32x36xf32> -> vector<32x36xf32>
    %309 = arith.addf %299, %308 : vector<32x36xf32>
    %310 = vector.extract_strided_slice %250 {offsets = [0, 16], sizes = [16, 6], strides = [1, 1]} : vector<16x64xf32> to vector<16x6xf32>
    %311 = vector.extract_strided_slice %250 {offsets = [0, 24], sizes = [16, 6], strides = [1, 1]} : vector<16x64xf32> to vector<16x6xf32>
    %312 = vector.extract_strided_slice %250 {offsets = [0, 32], sizes = [16, 6], strides = [1, 1]} : vector<16x64xf32> to vector<16x6xf32>
    %313 = vector.extract_strided_slice %250 {offsets = [0, 40], sizes = [16, 6], strides = [1, 1]} : vector<16x64xf32> to vector<16x6xf32>
    %314 = vector.extract_strided_slice %250 {offsets = [0, 48], sizes = [16, 6], strides = [1, 1]} : vector<16x64xf32> to vector<16x6xf32>
    %315 = vector.extract_strided_slice %250 {offsets = [0, 56], sizes = [16, 6], strides = [1, 1]} : vector<16x64xf32> to vector<16x6xf32>
    %316 = tpu.concatenate %310, %311, %312, %313, %314, %315 in 1 : vector<16x6xf32>, vector<16x6xf32>, vector<16x6xf32>, vector<16x6xf32>, vector<16x6xf32>, vector<16x6xf32> -> vector<16x36xf32>
    %317 = vector.extract_strided_slice %4 {offsets = [0, 96], sizes = [32, 16], strides = [1, 1]} : vector<32x144xf32> to vector<32x16xf32>
    %cst_29 = arith.constant dense<0.000000e+00> : vector<32x36xf32>
    %318 = tpu.matmul %317, %316, %cst_29 {dimension_numbers = #tpu.dot_dimension_numbers<[1], [0], [0], [1], [0, 0, 1, 1], [], []>} : vector<32x16xf32>, vector<16x36xf32>, vector<32x36xf32> -> vector<32x36xf32>
    %319 = arith.addf %309, %318 : vector<32x36xf32>
    %320 = vector.extract_strided_slice %250 {offsets = [0, 17], sizes = [16, 6], strides = [1, 1]} : vector<16x64xf32> to vector<16x6xf32>
    %321 = vector.extract_strided_slice %250 {offsets = [0, 25], sizes = [16, 6], strides = [1, 1]} : vector<16x64xf32> to vector<16x6xf32>
    %322 = vector.extract_strided_slice %250 {offsets = [0, 33], sizes = [16, 6], strides = [1, 1]} : vector<16x64xf32> to vector<16x6xf32>
    %323 = vector.extract_strided_slice %250 {offsets = [0, 41], sizes = [16, 6], strides = [1, 1]} : vector<16x64xf32> to vector<16x6xf32>
    %324 = vector.extract_strided_slice %250 {offsets = [0, 49], sizes = [16, 6], strides = [1, 1]} : vector<16x64xf32> to vector<16x6xf32>
    %325 = vector.extract_strided_slice %250 {offsets = [0, 57], sizes = [16, 6], strides = [1, 1]} : vector<16x64xf32> to vector<16x6xf32>
    %326 = tpu.concatenate %320, %321, %322, %323, %324, %325 in 1 : vector<16x6xf32>, vector<16x6xf32>, vector<16x6xf32>, vector<16x6xf32>, vector<16x6xf32>, vector<16x6xf32> -> vector<16x36xf32>
    %327 = vector.extract_strided_slice %4 {offsets = [0, 112], sizes = [32, 16], strides = [1, 1]} : vector<32x144xf32> to vector<32x16xf32>
    %cst_30 = arith.constant dense<0.000000e+00> : vector<32x36xf32>
    %328 = tpu.matmul %327, %326, %cst_30 {dimension_numbers = #tpu.dot_dimension_numbers<[1], [0], [0], [1], [0, 0, 1, 1], [], []>} : vector<32x16xf32>, vector<16x36xf32>, vector<32x36xf32> -> vector<32x36xf32>
    %329 = arith.addf %319, %328 : vector<32x36xf32>
    %330 = vector.extract_strided_slice %250 {offsets = [0, 18], sizes = [16, 6], strides = [1, 1]} : vector<16x64xf32> to vector<16x6xf32>
    %331 = vector.extract_strided_slice %250 {offsets = [0, 26], sizes = [16, 6], strides = [1, 1]} : vector<16x64xf32> to vector<16x6xf32>
    %332 = vector.extract_strided_slice %250 {offsets = [0, 34], sizes = [16, 6], strides = [1, 1]} : vector<16x64xf32> to vector<16x6xf32>
    %333 = vector.extract_strided_slice %250 {offsets = [0, 42], sizes = [16, 6], strides = [1, 1]} : vector<16x64xf32> to vector<16x6xf32>
    %334 = vector.extract_strided_slice %250 {offsets = [0, 50], sizes = [16, 6], strides = [1, 1]} : vector<16x64xf32> to vector<16x6xf32>
    %335 = vector.extract_strided_slice %250 {offsets = [0, 58], sizes = [16, 6], strides = [1, 1]} : vector<16x64xf32> to vector<16x6xf32>
    %336 = tpu.concatenate %330, %331, %332, %333, %334, %335 in 1 : vector<16x6xf32>, vector<16x6xf32>, vector<16x6xf32>, vector<16x6xf32>, vector<16x6xf32>, vector<16x6xf32> -> vector<16x36xf32>
    %337 = vector.extract_strided_slice %4 {offsets = [0, 128], sizes = [32, 16], strides = [1, 1]} : vector<32x144xf32> to vector<32x16xf32>
    %cst_31 = arith.constant dense<0.000000e+00> : vector<32x36xf32>
    %338 = tpu.matmul %337, %336, %cst_31 {dimension_numbers = #tpu.dot_dimension_numbers<[1], [0], [0], [1], [0, 0, 1, 1], [], []>} : vector<32x16xf32>, vector<16x36xf32>, vector<32x36xf32> -> vector<32x36xf32>
    %339 = arith.addf %329, %338 : vector<32x36xf32>
    %340 = vector.broadcast %5 : vector<32x1xf32> to vector<32x36xf32>
    %341 = arith.addf %339, %340 : vector<32x36xf32>
    %c1 = arith.constant 1 : index
    %342 = memref.load %arg10[%c1] : memref<2xf32, #tpu.memory_space<smem>>
    %cst_32 = arith.constant 9.99999997E-7 : f32
    %343 = arith.maximumf %342, %cst_32 : f32
    %cst_33 = arith.constant 1.500000e+01 : f32
    %344 = arith.divf %cst_33, %343 : f32
    %cst_34 = arith.constant 1.500000e+01 : f32
    %345 = arith.divf %343, %cst_34 : f32
    %cst_35 = arith.constant 0.000000e+00 : f32
    %346 = vector.broadcast %cst_35 : f32 to vector<32x36xf32>
    %347 = arith.maximumf %346, %341 : vector<32x36xf32>
    %348 = vector.broadcast %343 : f32 to vector<32x36xf32>
    %349 = arith.minimumf %348, %347 : vector<32x36xf32>
    %350 = vector.broadcast %344 : f32 to vector<32x36xf32>
    %351 = arith.mulf %349, %350 : vector<32x36xf32>
    %352 = math.roundeven %351 : vector<32x36xf32>
    %353 = vector.broadcast %345 : f32 to vector<32x36xf32>
    %354 = arith.mulf %352, %353 : vector<32x36xf32>
    %355 = vector.extract_strided_slice %354 {offsets = [0, 0], sizes = [32, 6], strides = [1, 1]} : vector<32x36xf32> to vector<32x6xf32>
    %356 = vector.extract_strided_slice %354 {offsets = [0, 6], sizes = [32, 6], strides = [1, 1]} : vector<32x36xf32> to vector<32x6xf32>
    %357 = arith.maximumf %355, %356 : vector<32x6xf32>
    %358 = vector.extract_strided_slice %354 {offsets = [0, 12], sizes = [32, 6], strides = [1, 1]} : vector<32x36xf32> to vector<32x6xf32>
    %359 = vector.extract_strided_slice %354 {offsets = [0, 18], sizes = [32, 6], strides = [1, 1]} : vector<32x36xf32> to vector<32x6xf32>
    %360 = arith.maximumf %358, %359 : vector<32x6xf32>
    %361 = vector.extract_strided_slice %354 {offsets = [0, 24], sizes = [32, 6], strides = [1, 1]} : vector<32x36xf32> to vector<32x6xf32>
    %362 = vector.extract_strided_slice %354 {offsets = [0, 30], sizes = [32, 6], strides = [1, 1]} : vector<32x36xf32> to vector<32x6xf32>
    %363 = arith.maximumf %361, %362 : vector<32x6xf32>
    %364 = tpu.concatenate %357, %360, %363 in 1 : vector<32x6xf32>, vector<32x6xf32>, vector<32x6xf32> -> vector<32x18xf32>
    %365 = vector.extract_strided_slice %364 {offsets = [0, 0], sizes = [32, 17], strides = [1, 1]} : vector<32x18xf32> to vector<32x17xf32>
    %366 = vector.extract_strided_slice %364 {offsets = [0, 1], sizes = [32, 17], strides = [1, 1]} : vector<32x18xf32> to vector<32x17xf32>
    %367 = arith.maximumf %365, %366 : vector<32x17xf32>
    %cst_36 = arith.constant dense<0.000000e+00> : vector<32x9xf32>
    %368 = tpu.matmul %367, %9, %cst_36 {dimension_numbers = #tpu.dot_dimension_numbers<[1], [0], [0], [1], [0, 0, 1, 1], [], []>} : vector<32x17xf32>, vector<17x9xf32>, vector<32x9xf32> -> vector<32x9xf32>
    %369 = vector.extract_strided_slice %6 {offsets = [0, 0], sizes = [10, 32], strides = [1, 1]} : vector<10x288xf32> to vector<10x32xf32>
    %370 = vector.extract_strided_slice %368 {offsets = [0, 0], sizes = [32, 1], strides = [1, 1]} : vector<32x9xf32> to vector<32x1xf32>
    %cst_37 = arith.constant dense<0.000000e+00> : vector<10x1xf32>
    %371 = tpu.matmul %369, %370, %cst_37 {dimension_numbers = #tpu.dot_dimension_numbers<[1], [0], [0], [1], [0, 0, 1, 1], [], []>} : vector<10x32xf32>, vector<32x1xf32>, vector<10x1xf32> -> vector<10x1xf32>
    %372 = arith.addf %7, %371 : vector<10x1xf32>
    %373 = vector.extract_strided_slice %6 {offsets = [0, 32], sizes = [10, 32], strides = [1, 1]} : vector<10x288xf32> to vector<10x32xf32>
    %374 = vector.extract_strided_slice %368 {offsets = [0, 1], sizes = [32, 1], strides = [1, 1]} : vector<32x9xf32> to vector<32x1xf32>
    %cst_38 = arith.constant dense<0.000000e+00> : vector<10x1xf32>
    %375 = tpu.matmul %373, %374, %cst_38 {dimension_numbers = #tpu.dot_dimension_numbers<[1], [0], [0], [1], [0, 0, 1, 1], [], []>} : vector<10x32xf32>, vector<32x1xf32>, vector<10x1xf32> -> vector<10x1xf32>
    %376 = arith.addf %372, %375 : vector<10x1xf32>
    %377 = vector.extract_strided_slice %6 {offsets = [0, 64], sizes = [10, 32], strides = [1, 1]} : vector<10x288xf32> to vector<10x32xf32>
    %378 = vector.extract_strided_slice %368 {offsets = [0, 2], sizes = [32, 1], strides = [1, 1]} : vector<32x9xf32> to vector<32x1xf32>
    %cst_39 = arith.constant dense<0.000000e+00> : vector<10x1xf32>
    %379 = tpu.matmul %377, %378, %cst_39 {dimension_numbers = #tpu.dot_dimension_numbers<[1], [0], [0], [1], [0, 0, 1, 1], [], []>} : vector<10x32xf32>, vector<32x1xf32>, vector<10x1xf32> -> vector<10x1xf32>
    %380 = arith.addf %376, %379 : vector<10x1xf32>
    %381 = vector.extract_strided_slice %6 {offsets = [0, 96], sizes = [10, 32], strides = [1, 1]} : vector<10x288xf32> to vector<10x32xf32>
    %382 = vector.extract_strided_slice %368 {offsets = [0, 3], sizes = [32, 1], strides = [1, 1]} : vector<32x9xf32> to vector<32x1xf32>
    %cst_40 = arith.constant dense<0.000000e+00> : vector<10x1xf32>
    %383 = tpu.matmul %381, %382, %cst_40 {dimension_numbers = #tpu.dot_dimension_numbers<[1], [0], [0], [1], [0, 0, 1, 1], [], []>} : vector<10x32xf32>, vector<32x1xf32>, vector<10x1xf32> -> vector<10x1xf32>
    %384 = arith.addf %380, %383 : vector<10x1xf32>
    %385 = vector.extract_strided_slice %6 {offsets = [0, 128], sizes = [10, 32], strides = [1, 1]} : vector<10x288xf32> to vector<10x32xf32>
    %386 = vector.extract_strided_slice %368 {offsets = [0, 4], sizes = [32, 1], strides = [1, 1]} : vector<32x9xf32> to vector<32x1xf32>
    %cst_41 = arith.constant dense<0.000000e+00> : vector<10x1xf32>
    %387 = tpu.matmul %385, %386, %cst_41 {dimension_numbers = #tpu.dot_dimension_numbers<[1], [0], [0], [1], [0, 0, 1, 1], [], []>} : vector<10x32xf32>, vector<32x1xf32>, vector<10x1xf32> -> vector<10x1xf32>
    %388 = arith.addf %384, %387 : vector<10x1xf32>
    %389 = vector.extract_strided_slice %6 {offsets = [0, 160], sizes = [10, 32], strides = [1, 1]} : vector<10x288xf32> to vector<10x32xf32>
    %390 = vector.extract_strided_slice %368 {offsets = [0, 5], sizes = [32, 1], strides = [1, 1]} : vector<32x9xf32> to vector<32x1xf32>
    %cst_42 = arith.constant dense<0.000000e+00> : vector<10x1xf32>
    %391 = tpu.matmul %389, %390, %cst_42 {dimension_numbers = #tpu.dot_dimension_numbers<[1], [0], [0], [1], [0, 0, 1, 1], [], []>} : vector<10x32xf32>, vector<32x1xf32>, vector<10x1xf32> -> vector<10x1xf32>
    %392 = arith.addf %388, %391 : vector<10x1xf32>
    %393 = vector.extract_strided_slice %6 {offsets = [0, 192], sizes = [10, 32], strides = [1, 1]} : vector<10x288xf32> to vector<10x32xf32>
    %394 = vector.extract_strided_slice %368 {offsets = [0, 6], sizes = [32, 1], strides = [1, 1]} : vector<32x9xf32> to vector<32x1xf32>
    %cst_43 = arith.constant dense<0.000000e+00> : vector<10x1xf32>
    %395 = tpu.matmul %393, %394, %cst_43 {dimension_numbers = #tpu.dot_dimension_numbers<[1], [0], [0], [1], [0, 0, 1, 1], [], []>} : vector<10x32xf32>, vector<32x1xf32>, vector<10x1xf32> -> vector<10x1xf32>
    %396 = arith.addf %392, %395 : vector<10x1xf32>
    %397 = vector.extract_strided_slice %6 {offsets = [0, 224], sizes = [10, 32], strides = [1, 1]} : vector<10x288xf32> to vector<10x32xf32>
    %398 = vector.extract_strided_slice %368 {offsets = [0, 7], sizes = [32, 1], strides = [1, 1]} : vector<32x9xf32> to vector<32x1xf32>
    %cst_44 = arith.constant dense<0.000000e+00> : vector<10x1xf32>
    %399 = tpu.matmul %397, %398, %cst_44 {dimension_numbers = #tpu.dot_dimension_numbers<[1], [0], [0], [1], [0, 0, 1, 1], [], []>} : vector<10x32xf32>, vector<32x1xf32>, vector<10x1xf32> -> vector<10x1xf32>
    %400 = arith.addf %396, %399 : vector<10x1xf32>
    %401 = vector.extract_strided_slice %6 {offsets = [0, 256], sizes = [10, 32], strides = [1, 1]} : vector<10x288xf32> to vector<10x32xf32>
    %402 = vector.extract_strided_slice %368 {offsets = [0, 8], sizes = [32, 1], strides = [1, 1]} : vector<32x9xf32> to vector<32x1xf32>
    %cst_45 = arith.constant dense<0.000000e+00> : vector<10x1xf32>
    %403 = tpu.matmul %401, %402, %cst_45 {dimension_numbers = #tpu.dot_dimension_numbers<[1], [0], [0], [1], [0, 0, 1, 1], [], []>} : vector<10x32xf32>, vector<32x1xf32>, vector<10x1xf32> -> vector<10x1xf32>
    %404 = arith.addf %400, %403 : vector<10x1xf32>
    %c0_46 = arith.constant 0 : index
    %c0_47 = arith.constant 0 : index
    %c0_48 = arith.constant 0 : index
    %405 = vector.load %arg11[%c0_46, %c0_47, %c0_48] : memref<1x10x1xf32, #tpu.memory_space<vmem>>, vector<1x10x1xf32>
    %406 = vector.shape_cast %405 : vector<1x10x1xf32> to vector<10x1xf32>
    %407 = vector.shape_cast %404 : vector<10x1xf32> to vector<1x10x1xf32>
    tpu.vector_store %arg11[%c0_46, %c0_47, %c0_48], %407 {strides = array<i32>} : memref<1x10x1xf32, #tpu.memory_space<vmem>>, vector<1x10x1xf32>,
    return
  }
  func.func @transform_0(%arg0: i32) -> (i32, i32, i32) {
    %c0_i32 = arith.constant 0 : i32
    %c0_i32_0 = arith.constant 0 : i32
    %c0_i32_1 = arith.constant 0 : i32
    return %arg0, %c0_i32, %c0_i32_0 : i32, i32, i32
  }
  func.func @transform_1(%arg0: i32) -> (i32, i32) {
    %c0_i32 = arith.constant 0 : i32
    %c0_i32_0 = arith.constant 0 : i32
    %c0_i32_1 = arith.constant 0 : i32
    return %c0_i32, %c0_i32_0 : i32, i32
  }
  func.func @transform_2(%arg0: i32) -> (i32, i32) {
    %c0_i32 = arith.constant 0 : i32
    %c0_i32_0 = arith.constant 0 : i32
    %c0_i32_1 = arith.constant 0 : i32
    return %c0_i32, %c0_i32_0 : i32, i32
  }
  func.func @transform_3(%arg0: i32) -> (i32, i32) {
    %c0_i32 = arith.constant 0 : i32
    %c0_i32_0 = arith.constant 0 : i32
    %c0_i32_1 = arith.constant 0 : i32
    return %c0_i32, %c0_i32_0 : i32, i32
  }
  func.func @transform_4(%arg0: i32) -> (i32, i32) {
    %c0_i32 = arith.constant 0 : i32
    %c0_i32_0 = arith.constant 0 : i32
    %c0_i32_1 = arith.constant 0 : i32
    return %c0_i32, %c0_i32_0 : i32, i32
  }
  func.func @transform_5(%arg0: i32) -> (i32, i32) {
    %c0_i32 = arith.constant 0 : i32
    %c0_i32_0 = arith.constant 0 : i32
    %c0_i32_1 = arith.constant 0 : i32
    return %c0_i32, %c0_i32_0 : i32, i32
  }
  func.func @transform_6(%arg0: i32) -> (i32, i32) {
    %c0_i32 = arith.constant 0 : i32
    %c0_i32_0 = arith.constant 0 : i32
    %c0_i32_1 = arith.constant 0 : i32
    return %c0_i32, %c0_i32_0 : i32, i32
  }
  func.func @transform_7(%arg0: i32) -> (i32, i32) {
    %c0_i32 = arith.constant 0 : i32
    %c0_i32_0 = arith.constant 0 : i32
    %c0_i32_1 = arith.constant 0 : i32
    return %c0_i32, %c0_i32_0 : i32, i32
  }
  func.func @transform_8(%arg0: i32) -> (i32, i32) {
    %c0_i32 = arith.constant 0 : i32
    %c0_i32_0 = arith.constant 0 : i32
    %c0_i32_1 = arith.constant 0 : i32
    return %c0_i32, %c0_i32_0 : i32, i32
  }
  func.func @transform_9(%arg0: i32) -> i32 {
    %c0_i32 = arith.constant 0 : i32
    %c0_i32_0 = arith.constant 0 : i32
    return %c0_i32 : i32
  }
  func.func @transform_10(%arg0: i32) -> (i32, i32, i32) {
    %c0_i32 = arith.constant 0 : i32
    %c0_i32_0 = arith.constant 0 : i32
    %c0_i32_1 = arith.constant 0 : i32
    return %arg0, %c0_i32, %c0_i32_0 : i32, i32, i32
  }
}

</mosaic_0001>

<llo_original>
// kernel: mnet_forward.1
$region0: #{mnet_forward.1}
  #allocation0 [shape = 'u32[]', space=smem, size = 0x4, offset = 0x4, fixed_abs, tag = 'smem constant byte address 0x4 - core index']
  #allocation1 [shape = 'u32[72,128]{1,0:T(1,128)}', space=vmem, size = 0x9000, scoped, tag = 'internal scratch']
  %s0 = inlined_call_operand.vmem [shape: f32[2,18,18], index: 0, kind: input, shape index: {}]
  %s1 = inlined_call_operand.vmem [shape: f32[16,9], index: 1, kind: input, shape index: {}]
  %s2 = inlined_call_operand.vmem [shape: f32[16,1], index: 2, kind: input, shape index: {}]
  %s3 = inlined_call_operand.vmem [shape: f32[32,144], index: 3, kind: input, shape index: {}]
  %s4 = inlined_call_operand.vmem [shape: f32[32,1], index: 4, kind: input, shape index: {}]
  %s5 = inlined_call_operand.vmem [shape: f32[10,288], index: 5, kind: input, shape index: {}]
  %s6 = inlined_call_operand.vmem [shape: f32[10,1], index: 6, kind: input, shape index: {}]
  %s7 = inlined_call_operand.vmem [shape: f32[127,64], index: 7, kind: input, shape index: {}]
  %s8 = inlined_call_operand.vmem [shape: f32[17,9], index: 8, kind: input, shape index: {}]
  %s9 = inlined_call_operand.vmem [shape: f32[2], index: 9, kind: input, shape index: {}]
  %s10 = inlined_call_operand.vmem [shape: f32[2,10,1], index: 10, kind: output, shape index: {}]
  %s11 = sld [smem:[#allocation0]]
  $region77: #{mnet_forward.1} parent=0
    _
  %s13 = ssub.s32 1, %s11
  %s14 = scalar_select 0, %s13, %s11
  $region1: #{mnet_forward.1} parent=0
    #allocation2 [shape = 'u8[512]{0}', space=smem, size = 0x200, scoped, tag = 'input window, operand 9, single buffered']
    #allocation3 [shape = 's32[2]{0}', space=sflag, size = 0x8, scoped, tag = 'scoped memory for mnet_forward.1']
    %15 = vsyncpa [#allocation3], 0
    loop: start=0, step=1, limit=4
    $region2: #{mnet_forward.1} parent=1 // loop_pre_header
      _
    $region3: #{mnet_forward.1} parent=1 // loop_header
      %s17 = sphi 0, %s21
      %p18 = scmp.ge.s32.totalorder %s17, 4
      %s27 = sphi 0, %s29
      %s30 = sphi 0, %s27
      %s31 = sphi 0, %s30
      %s47 = sphi 0, %s31
      %s51 = sphi 0, %s51
      %s53 = sphi 0, %s51
      %s54 = sphi 0, %s53
      %s68 = sphi 0, %s54
      %s72 = sphi 0, %s72
      %s74 = sphi 0, %s72
      %s75 = sphi 0, %s74
      %s89 = sphi 0, %s75
      %s93 = sphi 0, %s93
      %s95 = sphi 0, %s93
      %s96 = sphi 0, %s95
      %s110 = sphi 0, %s96
      %s114 = sphi 0, %s114
      %s116 = sphi 0, %s114
      %s117 = sphi 0, %s116
      %s131 = sphi 0, %s117
      %s135 = sphi 0, %s135
      %s137 = sphi 0, %s135
      %s138 = sphi 0, %s137
      %s152 = sphi 0, %s138
      %s156 = sphi 0, %s156
      %s158 = sphi 0, %s156
      %s159 = sphi 0, %s158
      %s173 = sphi 0, %s159
      %s177 = sphi 0, %s177
      %s179 = sphi 0, %s177
      %s180 = sphi 0, %s179
      %s194 = sphi 0, %s180
      %s198 = sphi 0, %s198
      %s200 = sphi 0, %s198
      %s201 = sphi 0, %s200
      %s215 = sphi 0, %s201
      %s219 = sphi 0, %s219
      %s221 = sphi 0, %s219
      %s222 = sphi 0, %s221
      %s236 = sphi 0, %s222
      %s242 = sphi 0, %s244
      %s245 = sphi 0, %s242
      %s246 = sphi 0, %s245
      %s262 = sphi 0, %s246
    $region4: #{mnet_forward.1} parent=1 // loop_header_branch
      %20 = sbr.rel (%p18) target = $region8
    $region5: #{mnet_forward.1} parent=1 // loop_body
      %s22 = ssub.s32 %s17, 1
      %s23 = ssub.s32 %s17, 2
      %s24 = sadd.s32 %s17, 1
      %s25 = ssub.s32 %s17, %s24
      %p26 = scmp.eq.s32.totalorder %s25, 0
      %s28 = sadd.s32 %s27, 1
      %s29 = scalar_select %p26, %s27, %s28
      %p32 = pneg %p26
      %p33 = scmp.eq.s32.totalorder %s17, 1
      %p34 = por %p32, %p33
      %p35 = scmp.ne.s32.totalorder %s27, %s30
      %p36 = scmp.eq.s32.totalorder %s17, 0
      %p37 = por %p35, %p36
      %p38 = scmp.ne.s32.totalorder %s27, %s30
      %p39 = scmp.eq.s32.totalorder %s22, 1
      %p40 = por %p38, %p39
      %p41 = scmp.ne.s32.totalorder %s30, %s31
      %p42 = scmp.eq.s32.totalorder %s22, 0
      %p43 = por %p41, %p42
      %p44 = scmp.ne.s32.totalorder %s30, %s31
      %p45 = scmp.eq.s32.totalorder %s23, 1
      %p46 = por %p44, %p45
      %p48 = scmp.ne.s32.totalorder %s31, %s47
      %p49 = scmp.eq.s32.totalorder %s23, 0
      %p50 = por %p48, %p49
      %s52 = sadd.s32 %s51, 1
      %p55 = scmp.eq.s32.totalorder %s17, 1
      %p56 = scmp.ne.s32.totalorder %s51, %s53
      %p57 = scmp.eq.s32.totalorder %s17, 0
      %p58 = por %p56, %p57
      %p59 = scmp.ne.s32.totalorder %s51, %s53
      %p60 = scmp.eq.s32.totalorder %s22, 1
      %p61 = por %p59, %p60
      %p62 = scmp.ne.s32.totalorder %s53, %s54
      %p63 = scmp.eq.s32.totalorder %s22, 0
      %p64 = por %p62, %p63
      %p65 = scmp.ne.s32.totalorder %s53, %s54
      %p66 = scmp.eq.s32.totalorder %s23, 1
      %p67 = por %p65, %p66
      %p69 = scmp.ne.s32.totalorder %s54, %s68
      %p70 = scmp.eq.s32.totalorder %s23, 0
      %p71 = por %p69, %p70
      %s73 = sadd.s32 %s72, 1
      %p76 = scmp.eq.s32.totalorder %s17, 1
      %p77 = scmp.ne.s32.totalorder %s72, %s74
      %p78 = scmp.eq.s32.totalorder %s17, 0
      %p79 = por %p77, %p78
      %p80 = scmp.ne.s32.totalorder %s72, %s74
      %p81 = scmp.eq.s32.totalorder %s22, 1
      %p82 = por %p80, %p81
      %p83 = scmp.ne.s32.totalorder %s74, %s75
      %p84 = scmp.eq.s32.totalorder %s22, 0
      %p85 = por %p83, %p84
      %p86 = scmp.ne.s32.totalorder %s74, %s75
      %p87 = scmp.eq.s32.totalorder %s23, 1
      %p88 = por %p86, %p87
      %p90 = scmp.ne.s32.totalorder %s75, %s89
      %p91 = scmp.eq.s32.totalorder %s23, 0
      %p92 = por %p90, %p91
      %s94 = sadd.s32 %s93, 1
      %p97 = scmp.eq.s32.totalorder %s17, 1
      %p98 = scmp.ne.s32.totalorder %s93, %s95
      %p99 = scmp.eq.s32.totalorder %s17, 0
      %p100 = por %p98, %p99
      %p101 = scmp.ne.s32.totalorder %s93, %s95
      %p102 = scmp.eq.s32.totalorder %s22, 1
      %p103 = por %p101, %p102
      %p104 = scmp.ne.s32.totalorder %s95, %s96
      %p105 = scmp.eq.s32.totalorder %s22, 0
      %p106 = por %p104, %p105
      %p107 = scmp.ne.s32.totalorder %s95, %s96
      %p108 = scmp.eq.s32.totalorder %s23, 1
      %p109 = por %p107, %p108
      %p111 = scmp.ne.s32.totalorder %s96, %s110
      %p112 = scmp.eq.s32.totalorder %s23, 0
      %p113 = por %p111, %p112
      %s115 = sadd.s32 %s114, 1
      %p118 = scmp.eq.s32.totalorder %s17, 1
      %p119 = scmp.ne.s32.totalorder %s114, %s116
      %p120 = scmp.eq.s32.totalorder %s17, 0
      %p121 = por %p119, %p120
      %p122 = scmp.ne.s32.totalorder %s114, %s116
      %p123 = scmp.eq.s32.totalorder %s22, 1
      %p124 = por %p122, %p123
      %p125 = scmp.ne.s32.totalorder %s116, %s117
      %p126 = scmp.eq.s32.totalorder %s22, 0
      %p127 = por %p125, %p126
      %p128 = scmp.ne.s32.totalorder %s116, %s117
      %p129 = scmp.eq.s32.totalorder %s23, 1
      %p130 = por %p128, %p129
      %p132 = scmp.ne.s32.totalorder %s117, %s131
      %p133 = scmp.eq.s32.totalorder %s23, 0
      %p134 = por %p132, %p133
      %s136 = sadd.s32 %s135, 1
      %p139 = scmp.eq.s32.totalorder %s17, 1
      %p140 = scmp.ne.s32.totalorder %s135, %s137
      %p141 = scmp.eq.s32.totalorder %s17, 0
      %p142 = por %p140, %p141
      %p143 = scmp.ne.s32.totalorder %s135, %s137
      %p144 = scmp.eq.s32.totalorder %s22, 1
      %p145 = por %p143, %p144
      %p146 = scmp.ne.s32.totalorder %s137, %s138
      %p147 = scmp.eq.s32.totalorder %s22, 0
      %p148 = por %p146, %p147
      %p149 = scmp.ne.s32.totalorder %s137, %s138
      %p150 = scmp.eq.s32.totalorder %s23, 1
      %p151 = por %p149, %p150
      %p153 = scmp.ne.s32.totalorder %s138, %s152
      %p154 = scmp.eq.s32.totalorder %s23, 0
      %p155 = por %p153, %p154
      %s157 = sadd.s32 %s156, 1
      %p160 = scmp.eq.s32.totalorder %s17, 1
      %p161 = scmp.ne.s32.totalorder %s156, %s158
      %p162 = scmp.eq.s32.totalorder %s17, 0
      %p163 = por %p161, %p162
      %p164 = scmp.ne.s32.totalorder %s156, %s158
      %p165 = scmp.eq.s32.totalorder %s22, 1
      %p166 = por %p164, %p165
      %p167 = scmp.ne.s32.totalorder %s158, %s159
      %p168 = scmp.eq.s32.totalorder %s22, 0
      %p169 = por %p167, %p168
      %p170 = scmp.ne.s32.totalorder %s158, %s159
      %p171 = scmp.eq.s32.totalorder %s23, 1
      %p172 = por %p170, %p171
      %p174 = scmp.ne.s32.totalorder %s159, %s173
      %p175 = scmp.eq.s32.totalorder %s23, 0
      %p176 = por %p174, %p175
      %s178 = sadd.s32 %s177, 1
      %p181 = scmp.eq.s32.totalorder %s17, 1
      %p182 = scmp.ne.s32.totalorder %s177, %s179
      %p183 = scmp.eq.s32.totalorder %s17, 0
      %p184 = por %p182, %p183
      %p185 = scmp.ne.s32.totalorder %s177, %s179
      %p186 = scmp.eq.s32.totalorder %s22, 1
      %p187 = por %p185, %p186
      %p188 = scmp.ne.s32.totalorder %s179, %s180
      %p189 = scmp.eq.s32.totalorder %s22, 0
      %p190 = por %p188, %p189
      %p191 = scmp.ne.s32.totalorder %s179, %s180
      %p192 = scmp.eq.s32.totalorder %s23, 1
      %p193 = por %p191, %p192
      %p195 = scmp.ne.s32.totalorder %s180, %s194
      %p196 = scmp.eq.s32.totalorder %s23, 0
      %p197 = por %p195, %p196
      %s199 = sadd.s32 %s198, 1
      %p202 = scmp.eq.s32.totalorder %s17, 1
      %p203 = scmp.ne.s32.totalorder %s198, %s200
      %p204 = scmp.eq.s32.totalorder %s17, 0
      %p205 = por %p203, %p204
      %p206 = scmp.ne.s32.totalorder %s198, %s200
      %p207 = scmp.eq.s32.totalorder %s22, 1
      %p208 = por %p206, %p207
      %p209 = scmp.ne.s32.totalorder %s200, %s201
      %p210 = scmp.eq.s32.totalorder %s22, 0
      %p211 = por %p209, %p210
      %p212 = scmp.ne.s32.totalorder %s200, %s201
      %p213 = scmp.eq.s32.totalorder %s23, 1
      %p214 = por %p212, %p213
      %p216 = scmp.ne.s32.totalorder %s201, %s215
      %p217 = scmp.eq.s32.totalorder %s23, 0
      %p218 = por %p216, %p217
      %s220 = sadd.s32 %s219, 1
      %p223 = scmp.eq.s32.totalorder %s17, 1
      %p224 = scmp.ne.s32.totalorder %s219, %s221
      %p225 = scmp.eq.s32.totalorder %s17, 0
      %p226 = por %p224, %p225
      %p227 = scmp.ne.s32.totalorder %s219, %s221
      %p228 = scmp.eq.s32.totalorder %s22, 1
      %p229 = por %p227, %p228
      %p230 = scmp.ne.s32.totalorder %s221, %s222
      %p231 = scmp.eq.s32.totalorder %s22, 0
      %p232 = por %p230, %p231
      %p233 = scmp.ne.s32.totalorder %s221, %s222
      %p234 = scmp.eq.s32.totalorder %s23, 1
      %p235 = por %p233, %p234
      %p237 = scmp.ne.s32.totalorder %s222, %s236
      %p238 = scmp.eq.s32.totalorder %s23, 0
      %p239 = por %p237, %p238
      %s240 = ssub.s32 %s17, %s24
      %p241 = scmp.eq.s32.totalorder %s240, 0
      %s243 = sadd.s32 %s242, 1
      %s244 = scalar_select %p241, %s242, %s243
      %p247 = pneg %p241
      %p248 = scmp.eq.s32.totalorder %s17, 1
      %p249 = por %p247, %p248
      %p250 = scmp.ne.s32.totalorder %s242, %s245
      %p251 = scmp.eq.s32.totalorder %s17, 0
      %p252 = por %p250, %p251
      %p253 = scmp.ne.s32.totalorder %s242, %s245
      %p254 = scmp.eq.s32.totalorder %s22, 1
      %p255 = por %p253, %p254
      %p256 = scmp.ne.s32.totalorder %s245, %s246
      %p257 = scmp.eq.s32.totalorder %s22, 0
      %p258 = por %p256, %p257
      %p259 = scmp.ne.s32.totalorder %s245, %s246
      %p260 = scmp.eq.s32.totalorder %s23, 1
      %p261 = por %p259, %p260
      %p263 = scmp.ne.s32.totalorder %s246, %s262
      %p264 = scmp.eq.s32.totalorder %s23, 0
      %p265 = por %p263, %p264
      %p266 = scmp.le.s32.totalorder 1, %s17
      %p267 = scmp.lt.s32.totalorder %s17, 3
      %p268 = pnand %p266, %p267
      %p269 = pneg %p268
      // Predicated region
      $region9: #{mnet_forward.1} parent=5 // pred_check
        _
      $region10: #{mnet_forward.1} parent=5 // pred_check_branch
        %271 = sbr.rel (%p268) target = $region12
      $region11: #{mnet_forward.1} parent=5 // pred_region
        %s272 = ssub.s32 %s17, 1
        // Predicated region
        $region13: #{mnet_forward.1} parent=11 // pred_check
          %p273 = pneg %p64
        $region14: #{mnet_forward.1} parent=11 // pred_check_branch
          %275 = sbr.rel (%p273) target = $region16
        $region15: #{mnet_forward.1} parent=11 // pred_region
          _
        $region16: #{mnet_forward.1} parent=11 // pred_fallthru
          _
        // Predicated region
        $region17: #{mnet_forward.1} parent=11 // pred_check
          %p276 = pneg %p85
        $region18: #{mnet_forward.1} parent=11 // pred_check_branch
          %278 = sbr.rel (%p276) target = $region20
        $region19: #{mnet_forward.1} parent=11 // pred_region
          _
        $region20: #{mnet_forward.1} parent=11 // pred_fallthru
          _
        // Predicated region
        $region21: #{mnet_forward.1} parent=11 // pred_check
          %p279 = pneg %p106
        $region22: #{mnet_forward.1} parent=11 // pred_check_branch
          %281 = sbr.rel (%p279) target = $region24
        $region23: #{mnet_forward.1} parent=11 // pred_region
          _
        $region24: #{mnet_forward.1} parent=11 // pred_fallthru
          _
        // Predicated region
        $region25: #{mnet_forward.1} parent=11 // pred_check
          %p282 = pneg %p127
        $region26: #{mnet_forward.1} parent=11 // pred_check_branch
          %284 = sbr.rel (%p282) target = $region28
        $region27: #{mnet_forward.1} parent=11 // pred_region
          _
        $region28: #{mnet_forward.1} parent=11 // pred_fallthru
          _
        // Predicated region
        $region29: #{mnet_forward.1} parent=11 // pred_check
          %p285 = pneg %p148
        $region30: #{mnet_forward.1} parent=11 // pred_check_branch
          %287 = sbr.rel (%p285) target = $region32
        $region31: #{mnet_forward.1} parent=11 // pred_region
          _
        $region32: #{mnet_forward.1} parent=11 // pred_fallthru
          _
        // Predicated region
        $region33: #{mnet_forward.1} parent=11 // pred_check
          %p288 = pneg %p169
        $region34: #{mnet_forward.1} parent=11 // pred_check_branch
          %290 = sbr.rel (%p288) target = $region36
        $region35: #{mnet_forward.1} parent=11 // pred_region
          _
        $region36: #{mnet_forward.1} parent=11 // pred_fallthru
          _
        // Predicated region
        $region37: #{mnet_forward.1} parent=11 // pred_check
          %p291 = pneg %p190
        $region38: #{mnet_forward.1} parent=11 // pred_check_branch
          %293 = sbr.rel (%p291) target = $region40
        $region39: #{mnet_forward.1} parent=11 // pred_region
          _
        $region40: #{mnet_forward.1} parent=11 // pred_fallthru
          _
        // Predicated region
        $region41: #{mnet_forward.1} parent=11 // pred_check
          %p294 = pneg %p211
        $region42: #{mnet_forward.1} parent=11 // pred_check_branch
          %296 = sbr.rel (%p294) target = $region44
        $region43: #{mnet_forward.1} parent=11 // pred_region
          _
        $region44: #{mnet_forward.1} parent=11 // pred_fallthru
          _
        // Predicated region
        $region45: #{mnet_forward.1} parent=11 // pred_check
          %p297 = pneg %p232
        $region46: #{mnet_forward.1} parent=11 // pred_check_branch
          %299 = sbr.rel (%p297) target = $region48
        $region47: #{mnet_forward.1} parent=11 // pred_region
          %301 = vsyncadd [#allocation3], 0
          %s303 = sshll.u32 %s9, 4
          %s304 = int_to_ptr.vmem [resolvable:$true] %s303
          %306 = dma.vmem_to_smem %s304, 16, [#allocation2], [#allocation3]
        $region48: #{mnet_forward.1} parent=11 // pred_fallthru
          _
      $region12: #{mnet_forward.1} parent=5 // pred_fallthru
        _
      %p307 = scmp.lt.s32.totalorder %s17, 2
      // Predicated region
      $region49: #{mnet_forward.1} parent=5 // pred_check
        %p308 = pneg %p307
      $region50: #{mnet_forward.1} parent=5 // pred_check_branch
        %310 = sbr.rel (%p308) target = $region52
      $region51: #{mnet_forward.1} parent=5 // pred_region
        // Predicated region
        $region53: #{mnet_forward.1} parent=51 // pred_check
          %p311 = pneg %p37
        $region54: #{mnet_forward.1} parent=51 // pred_check_branch
          %313 = sbr.rel (%p311) target = $region56
        $region55: #{mnet_forward.1} parent=51 // pred_region
          %p314 = scmp.lt.s32.totalorder %s17, 1
          %s315 = scalar_select %p314, %s17, 1
          %s316 = smul.addr %s315, 3
          %s317 = smul.addr %s316, 8
          %s318 = scalar_lea.vmem %s0, %s317
        $region56: #{mnet_forward.1} parent=51 // pred_fallthru
          _
      $region52: #{mnet_forward.1} parent=5 // pred_fallthru
        _
      %p319 = scmp.le.s32.totalorder 1, %s17
      %p320 = scmp.lt.s32.totalorder %s17, 3
      %p321 = pnand %p319, %p320
      %p322 = pneg %p321
      // Predicated region
      $region57: #{mnet_forward.1} parent=5 // pred_check
        _
      $region58: #{mnet_forward.1} parent=5 // pred_check_branch
        %324 = sbr.rel (%p321) target = $region60
      $region59: #{mnet_forward.1} parent=5 // pred_region
        %s325 = ssub.s32 %s17, 1
        // Predicated region
        $region61: #{mnet_forward.1} parent=59 // pred_check
          %p326 = pneg %p232
        $region62: #{mnet_forward.1} parent=59 // pred_check_branch
          %328 = sbr.rel (%p326) target = $region64
        $region63: #{mnet_forward.1} parent=59 // pred_region
          %330 = dma.done [#allocation3], 16
        $region64: #{mnet_forward.1} parent=59 // pred_fallthru
          _
        %331 = sfence
        %p332 = scmp.lt.s32.totalorder %s22, 1
        %s333 = scalar_select %p332, %s22, 1
        %s334 = smul.addr %s333, 3
        %s335 = smul.addr %s334, 8
        %s336 = scalar_lea.vmem %s0, %s335
        %p337 = pneg %p43
        %p338 = pneg %p40
        %p339 = pneg %p64
        %p340 = pneg %p61
        %p341 = pneg %p85
        %p342 = pneg %p82
        %p343 = pneg %p106
        %p344 = pneg %p103
        %p345 = pneg %p127
        %p346 = pneg %p124
        %p347 = pneg %p148
        %p348 = pneg %p145
        %p349 = pneg %p169
        %p350 = pneg %p166
        %p351 = pneg %p190
        %p352 = pneg %p187
        %p353 = pneg %p211
        %p354 = pneg %p208
        %p355 = pneg %p232
        %p356 = pneg %p229
        %p357 = pneg %p258
        %p358 = pneg %p255
        %p359 = scmp.lt.s32.totalorder %s22, 1
        %s360 = scalar_select %p359, %s22, 1
        %s361 = smul.addr %s360, 2
        %s362 = smul.addr %s361, 8
        %s363 = scalar_lea.vmem %s10, %s362
        %p364 = scmp.lt.s32.totalorder %s22, 1
        %s365 = scalar_select %p364, %s22, 1
        %s366 = smul.addr %s365, 3
        %s367 = smul.addr %s366, 8
        %s368 = scalar_lea.vmem %s0, %s367
        %p369 = scmp.lt.s32.totalorder %s22, 1
        %s370 = scalar_select %p369, %s22, 1
        %s371 = smul.addr %s370, 2
        %s372 = smul.addr %s371, 8
        %s373 = scalar_lea.vmem %s10, %s372
        %v374 = vld [vmem:[%s368] sm:$0xff]
        %v375 = vld [vmem:[%s368 + $0x8] sm:$0xff]
        %v376 = vld [vmem:[%s368 + $0x10] sm:$0x3]
        %v377 = vld [vmem:[%s1] sm:$0xff]
        %v378 = vld [vmem:[%s1 + $0x8] sm:$0xff]
        %v379 = vld [vmem:[%s2] sm:$0xff]
        %v380 = vld [vmem:[%s2 + $0x8] sm:$0xff]
        %v381 = vld [vmem:[%s3] sm:$0xff]
        %v382 = vld [vmem:[%s3 + $0x8] sm:$0xff]
        %v383 = vld [vmem:[%s3 + $0x10] sm:$0xff]
        %v384 = vld [vmem:[%s3 + $0x18] sm:$0xff]
        %v385 = vld [vmem:[%s3 + $0x20] sm:$0xff]
        %v386 = vld [vmem:[%s3 + $0x28] sm:$0xff]
        %v387 = vld [vmem:[%s3 + $0x30] sm:$0xff]
        %v388 = vld [vmem:[%s3 + $0x38] sm:$0xff]
        %v389 = vld [vmem:[%s4] sm:$0xff]
        %v390 = vld [vmem:[%s4 + $0x8] sm:$0xff]
        %v391 = vld [vmem:[%s4 + $0x10] sm:$0xff]
        %v392 = vld [vmem:[%s4 + $0x18] sm:$0xff]
        %v393 = vld [vmem:[%s5] sm:$0xff]
        %v394 = vld [vmem:[%s5 + $0x8] sm:$0xff]
        %v395 = vld [vmem:[%s5 + $0x10] sm:$0xff]
        %v396 = vld [vmem:[%s5 + $0x18] sm:$0x3]
        %v397 = vld [vmem:[%s5 + $0x20] sm:$0x3]
        %v398 = vld [vmem:[%s5 + $0x28] sm:$0x3]
        %v399 = vld [vmem:[%s6] sm:$0xff]
        %v400 = vld [vmem:[%s6 + $0x8] sm:$0x3]
        %v401 = vld [vmem:[%s7] sm:$0xff]
        %v402 = vld [vmem:[%s7 + $0x8] sm:$0xff]
        %v403 = vld [vmem:[%s7 + $0x10] sm:$0xff]
        %v404 = vld [vmem:[%s7 + $0x18] sm:$0xff]
        %v405 = vld [vmem:[%s7 + $0x20] sm:$0xff]
        %v406 = vld [vmem:[%s7 + $0x28] sm:$0xff]
        %v407 = vld [vmem:[%s7 + $0x30] sm:$0xff]
        %v408 = vld [vmem:[%s7 + $0x38] sm:$0xff]
        %v409 = vld [vmem:[%s7 + $0x40] sm:$0xff]
        %v410 = vld [vmem:[%s7 + $0x48] sm:$0xff]
        %v411 = vld [vmem:[%s7 + $0x50] sm:$0xff]
        %v412 = vld [vmem:[%s7 + $0x58] sm:$0xff]
        %v413 = vld [vmem:[%s7 + $0x60] sm:$0xff]
        %v414 = vld [vmem:[%s7 + $0x68] sm:$0xff]
        %v415 = vld [vmem:[%s7 + $0x70] sm:$0xff]
        %v416 = vld [vmem:[%s7 + $0x78] sm:$0x7f]
        %v417 = vld [vmem:[%s8] sm:$0xff]
        %v418 = vld [vmem:[%s8 + $0x8] sm:$0xff]
        %v419 = vld [vmem:[%s8 + $0x10] sm:$0x1]
        %v421 = vrot.slane %v374, 1
        %422 = vrot.lane.b32.xlu0 %v421, 16
        %v423 = vpop.permute.xlu0 %422
        %v425 = vrot.slane %v374, 2
        %426 = vrot.lane.b32.xlu0 %v425, 32
        %v427 = vpop.permute.xlu0 %426
        %v429 = vrot.slane %v374, 3
        %430 = vrot.lane.b32.xlu0 %v429, 48
        %v431 = vpop.permute.xlu0 %430
        %v433 = vrot.slane %v374, 4
        %434 = vrot.lane.b32.xlu0 %v433, 64
        %v435 = vpop.permute.xlu0 %434
        %v437 = vrot.slane %v374, 5
        %438 = vrot.lane.b32.xlu0 %v437, 80
        %v439 = vpop.permute.xlu0 %438
        %v441 = vrot.slane %v374, 6
        %442 = vrot.lane.b32.xlu0 %v441, 96
        %v443 = vpop.permute.xlu0 %442
        %v445 = vrot.slane %v374, 7
        %446 = vrot.lane.b32.xlu0 %v445, 112
        %v447 = vpop.permute.xlu0 %446
        %v450 = vrot.slane %v375, 1
        %451 = vrot.lane.b32.xlu0 %v450, 16
        %v452 = vpop.permute.xlu0 %451
        %v454 = vrot.slane %v375, 2
        %455 = vrot.lane.b32.xlu0 %v454, 32
        %v456 = vpop.permute.xlu0 %455
        %v458 = vrot.slane %v375, 3
        %459 = vrot.lane.b32.xlu0 %v458, 48
        %v460 = vpop.permute.xlu0 %459
        %v462 = vrot.slane %v375, 4
        %463 = vrot.lane.b32.xlu0 %v462, 64
        %v464 = vpop.permute.xlu0 %463
        %v466 = vrot.slane %v375, 5
        %467 = vrot.lane.b32.xlu0 %v466, 80
        %v468 = vpop.permute.xlu0 %467
        %v470 = vrot.slane %v375, 6
        %471 = vrot.lane.b32.xlu0 %v470, 96
        %v472 = vpop.permute.xlu0 %471
        %v474 = vrot.slane %v375, 7
        %475 = vrot.lane.b32.xlu0 %v474, 112
        %v476 = vpop.permute.xlu0 %475
        %vm478 = vcmask 130048
        %v479 = vsel %vm478, %v374, %v423
        %vm480 = vcmask 261120
        %v481 = vsel %vm480, %v479, %v427
        %vm482 = vcmask 392192
        %v483 = vsel %vm482, %v481, %v431
        %vm484 = vcmask 523264
        %v485 = vsel %vm484, %v483, %v435
        %vm486 = vcmask 654336
        %v487 = vsel %vm486, %v485, %v439
        %vm488 = vcmask 785408
        %v489 = vsel %vm488, %v487, %v443
        %vm490 = vcmask 916480
        %v491 = vsel %vm490, %v489, %v447
        %v492 = vsel %vm478, %v375, %v452
        %v493 = vsel %vm480, %v492, %v456
        %v494 = vsel %vm482, %v493, %v460
        %v495 = vsel %vm484, %v494, %v464
        %v496 = vsel %vm486, %v495, %v468
        %v497 = vsel %vm488, %v496, %v472
        %v498 = vsel %vm490, %v497, %v476
        %500 = vset.pattern.permute.xlu0 0
        %501 = vperm.xlu0 %500, %v377
        %v502 = vpop.permute.xlu0 %501
        %505 = vset.pattern.permute.xlu0 0
        %506 = vperm.xlu0 %505, %v378
        %v507 = vpop.permute.xlu0 %506
        %v509 = vperm.slane %v491, 0
        %v510 = vperm.slane %v498, 0
        %v511 = vmul.f32 %v502, %v509
        %v512 = vmul.f32 %v502, %v510
        %v513 = vmul.f32 %v507, %v509
        %v514 = vmul.f32 %v507, %v510
        %515 = vrot.lane.b32.xlu0 %v374, 127
        %v516 = vpop.permute.xlu0 %515
        %518 = vrot.lane.b32.xlu0 %v421, 15
        %v519 = vpop.permute.xlu0 %518
        %521 = vrot.lane.b32.xlu0 %v425, 31
        %v522 = vpop.permute.xlu0 %521
        %524 = vrot.lane.b32.xlu0 %v429, 47
        %v525 = vpop.permute.xlu0 %524
        %527 = vrot.lane.b32.xlu0 %v433, 63
        %v528 = vpop.permute.xlu0 %527
        %530 = vrot.lane.b32.xlu0 %v437, 79
        %v531 = vpop.permute.xlu0 %530
        %533 = vrot.lane.b32.xlu0 %v441, 95
        %v534 = vpop.permute.xlu0 %533
        %536 = vrot.lane.b32.xlu0 %v445, 111
        %v537 = vpop.permute.xlu0 %536
        %539 = vrot.lane.b32.xlu0 %v375, 127
        %v540 = vpop.permute.xlu0 %539
        %542 = vrot.lane.b32.xlu0 %v450, 15
        %v543 = vpop.permute.xlu0 %542
        %545 = vrot.lane.b32.xlu0 %v454, 31
        %v546 = vpop.permute.xlu0 %545
        %548 = vrot.lane.b32.xlu0 %v458, 47
        %v549 = vpop.permute.xlu0 %548
        %551 = vrot.lane.b32.xlu0 %v462, 63
        %v552 = vpop.permute.xlu0 %551
        %554 = vrot.lane.b32.xlu0 %v466, 79
        %v555 = vpop.permute.xlu0 %554
        %557 = vrot.lane.b32.xlu0 %v470, 95
        %v558 = vpop.permute.xlu0 %557
        %560 = vrot.lane.b32.xlu0 %v474, 111
        %v561 = vpop.permute.xlu0 %560
        %v563 = vsel %vm478, %v516, %v519
        %v564 = vsel %vm480, %v563, %v522
        %v565 = vsel %vm482, %v564, %v525
        %v566 = vsel %vm484, %v565, %v528
        %v567 = vsel %vm486, %v566, %v531
        %v568 = vsel %vm488, %v567, %v534
        %v569 = vsel %vm490, %v568, %v537
        %v570 = vsel %vm478, %v540, %v543
        %v571 = vsel %vm480, %v570, %v546
        %v572 = vsel %vm482, %v571, %v549
        %v573 = vsel %vm484, %v572, %v552
        %v574 = vsel %vm486, %v573, %v555
        %v575 = vsel %vm488, %v574, %v558
        %v576 = vsel %vm490, %v575, %v561
        %577 = vset.pattern.permute.xlu0 1
        %578 = vperm.xlu0 %577, %v377
        %v579 = vpop.permute.xlu0 %578
        %581 = vset.pattern.permute.xlu0 1
        %582 = vperm.xlu0 %581, %v378
        %v583 = vpop.permute.xlu0 %582
        %v585 = vperm.slane %v569, 0
        %v586 = vperm.slane %v576, 0
        %v587 = vmul.f32 %v579, %v585
        %v588 = vmul.f32 %v579, %v586
        %v589 = vmul.f32 %v583, %v585
        %v590 = vmul.f32 %v583, %v586
        %v591 = vadd.f32 %v511, %v587
        %v592 = vadd.f32 %v512, %v588
        %v593 = vadd.f32 %v513, %v589
        %v594 = vadd.f32 %v514, %v590
        %595 = vrot.lane.b32.xlu0 %v374, 126
        %v596 = vpop.permute.xlu0 %595
        %598 = vrot.lane.b32.xlu0 %v421, 14
        %v599 = vpop.permute.xlu0 %598
        %601 = vrot.lane.b32.xlu0 %v425, 30
        %v602 = vpop.permute.xlu0 %601
        %604 = vrot.lane.b32.xlu0 %v429, 46
        %v605 = vpop.permute.xlu0 %604
        %607 = vrot.lane.b32.xlu0 %v433, 62
        %v608 = vpop.permute.xlu0 %607
        %610 = vrot.lane.b32.xlu0 %v437, 78
        %v611 = vpop.permute.xlu0 %610
        %613 = vrot.lane.b32.xlu0 %v441, 94
        %v614 = vpop.permute.xlu0 %613
        %616 = vrot.lane.b32.xlu0 %v445, 110
        %v617 = vpop.permute.xlu0 %616
        %619 = vrot.lane.b32.xlu0 %v375, 126
        %v620 = vpop.permute.xlu0 %619
        %622 = vrot.lane.b32.xlu0 %v450, 14
        %v623 = vpop.permute.xlu0 %622
        %625 = vrot.lane.b32.xlu0 %v454, 30
        %v626 = vpop.permute.xlu0 %625
        %628 = vrot.lane.b32.xlu0 %v458, 46
        %v629 = vpop.permute.xlu0 %628
        %631 = vrot.lane.b32.xlu0 %v462, 62
        %v632 = vpop.permute.xlu0 %631
        %634 = vrot.lane.b32.xlu0 %v466, 78
        %v635 = vpop.permute.xlu0 %634
        %637 = vrot.lane.b32.xlu0 %v470, 94
        %v638 = vpop.permute.xlu0 %637
        %640 = vrot.lane.b32.xlu0 %v474, 110
        %v641 = vpop.permute.xlu0 %640
        %v643 = vsel %vm478, %v596, %v599
        %v644 = vsel %vm480, %v643, %v602
        %v645 = vsel %vm482, %v644, %v605
        %v646 = vsel %vm484, %v645, %v608
        %v647 = vsel %vm486, %v646, %v611
        %v648 = vsel %vm488, %v647, %v614
        %v649 = vsel %vm490, %v648, %v617
        %v650 = vsel %vm478, %v620, %v623
        %v651 = vsel %vm480, %v650, %v626
        %v652 = vsel %vm482, %v651, %v629
        %v653 = vsel %vm484, %v652, %v632
        %v654 = vsel %vm486, %v653, %v635
        %v655 = vsel %vm488, %v654, %v638
        %v656 = vsel %vm490, %v655, %v641
        %657 = vset.pattern.permute.xlu0 2
        %658 = vperm.xlu0 %657, %v377
        %v659 = vpop.permute.xlu0 %658
        %661 = vset.pattern.permute.xlu0 2
        %662 = vperm.xlu0 %661, %v378
        %v663 = vpop.permute.xlu0 %662
        %v665 = vperm.slane %v649, 0
        %v666 = vperm.slane %v656, 0
        %v667 = vmul.f32 %v659, %v665
        %v668 = vmul.f32 %v659, %v666
        %v669 = vmul.f32 %v663, %v665
        %v670 = vmul.f32 %v663, %v666
        %v671 = vadd.f32 %v591, %v667
        %v672 = vadd.f32 %v592, %v668
        %v673 = vadd.f32 %v593, %v669
        %v674 = vadd.f32 %v594, %v670
        %v676 = vrot.slane %v376, 7
        %677 = vrot.lane.b32.xlu0 %v676, 112
        %v678 = vpop.permute.xlu0 %677
        %v680 = vsel %vm490, %v489, %v476
        %v681 = vsel %vm490, %v497, %v678
        %682 = vset.pattern.permute.xlu0 3
        %683 = vperm.xlu0 %682, %v377
        %v684 = vpop.permute.xlu0 %683
        %686 = vset.pattern.permute.xlu0 3
        %687 = vperm.xlu0 %686, %v378
        %v688 = vpop.permute.xlu0 %687
        %v690 = vperm.slane %v680, 1
        %v691 = vperm.slane %v681, 1
        %v692 = vmul.f32 %v684, %v690
        %v693 = vmul.f32 %v684, %v691
        %v694 = vmul.f32 %v688, %v690
        %v695 = vmul.f32 %v688, %v691
        %v696 = vadd.f32 %v671, %v692
        %v697 = vadd.f32 %v672, %v693
        %v698 = vadd.f32 %v673, %v694
        %v699 = vadd.f32 %v674, %v695
        %700 = vrot.lane.b32.xlu0 %v676, 111
        %v701 = vpop.permute.xlu0 %700
        %v703 = vsel %vm490, %v568, %v561
        %v704 = vsel %vm490, %v575, %v701
        %705 = vset.pattern.permute.xlu0 4
        %706 = vperm.xlu0 %705, %v377
        %v707 = vpop.permute.xlu0 %706
        %709 = vset.pattern.permute.xlu0 4
        %710 = vperm.xlu0 %709, %v378
        %v711 = vpop.permute.xlu0 %710
        %v713 = vperm.slane %v703, 1
        %v714 = vperm.slane %v704, 1
        %v715 = vmul.f32 %v707, %v713
        %v716 = vmul.f32 %v707, %v714
        %v717 = vmul.f32 %v711, %v713
        %v718 = vmul.f32 %v711, %v714
        %v719 = vadd.f32 %v696, %v715
        %v720 = vadd.f32 %v697, %v716
        %v721 = vadd.f32 %v698, %v717
        %v722 = vadd.f32 %v699, %v718
        %723 = vrot.lane.b32.xlu0 %v676, 110
        %v724 = vpop.permute.xlu0 %723
        %v726 = vsel %vm490, %v648, %v641
        %v727 = vsel %vm490, %v655, %v724
        %728 = vset.pattern.permute.xlu0 5
        %729 = vperm.xlu0 %728, %v377
        %v730 = vpop.permute.xlu0 %729
        %732 = vset.pattern.permute.xlu0 5
        %733 = vperm.xlu0 %732, %v378
        %v734 = vpop.permute.xlu0 %733
        %v736 = vperm.slane %v726, 1
        %v737 = vperm.slane %v727, 1
        %v738 = vmul.f32 %v730, %v736
        %v739 = vmul.f32 %v730, %v737
        %v740 = vmul.f32 %v734, %v736
        %v741 = vmul.f32 %v734, %v737
        %v742 = vadd.f32 %v719, %v738
        %v743 = vadd.f32 %v720, %v739
        %v744 = vadd.f32 %v721, %v740
        %v745 = vadd.f32 %v722, %v741
        %v746 = vrot.slane %v376, 6
        %747 = vrot.lane.b32.xlu0 %v746, 96
        %v748 = vpop.permute.xlu0 %747
        %v750 = vsel %vm488, %v487, %v472
        %v751 = vsel %vm490, %v750, %v476
        %v752 = vsel %vm488, %v496, %v748
        %v753 = vsel %vm490, %v752, %v678
        %754 = vset.pattern.permute.xlu0 6
        %755 = vperm.xlu0 %754, %v377
        %v756 = vpop.permute.xlu0 %755
        %758 = vset.pattern.permute.xlu0 6
        %759 = vperm.xlu0 %758, %v378
        %v760 = vpop.permute.xlu0 %759
        %v762 = vperm.slane %v751, 2
        %v763 = vperm.slane %v753, 2
        %v764 = vmul.f32 %v756, %v762
        %v765 = vmul.f32 %v756, %v763
        %v766 = vmul.f32 %v760, %v762
        %v767 = vmul.f32 %v760, %v763
        %v768 = vadd.f32 %v742, %v764
        %v769 = vadd.f32 %v743, %v765
        %v770 = vadd.f32 %v744, %v766
        %v771 = vadd.f32 %v745, %v767
        %772 = vrot.lane.b32.xlu0 %v746, 95
        %v773 = vpop.permute.xlu0 %772
        %v775 = vsel %vm488, %v567, %v558
        %v776 = vsel %vm490, %v775, %v561
        %v777 = vsel %vm488, %v574, %v773
        %v778 = vsel %vm490, %v777, %v701
        %779 = vset.pattern.permute.xlu0 7
        %780 = vperm.xlu0 %779, %v377
        %v781 = vpop.permute.xlu0 %780
        %783 = vset.pattern.permute.xlu0 7
        %784 = vperm.xlu0 %783, %v378
        %v785 = vpop.permute.xlu0 %784
        %v787 = vperm.slane %v776, 2
        %v788 = vperm.slane %v778, 2
        %v789 = vmul.f32 %v781, %v787
        %v790 = vmul.f32 %v781, %v788
        %v791 = vmul.f32 %v785, %v787
        %v792 = vmul.f32 %v785, %v788
        %v793 = vadd.f32 %v768, %v789
        %v794 = vadd.f32 %v769, %v790
        %v795 = vadd.f32 %v770, %v791
        %v796 = vadd.f32 %v771, %v792
        %797 = vrot.lane.b32.xlu0 %v746, 94
        %v798 = vpop.permute.xlu0 %797
        %v800 = vsel %vm488, %v647, %v638
        %v801 = vsel %vm490, %v800, %v641
        %v802 = vsel %vm488, %v654, %v798
        %v803 = vsel %vm490, %v802, %v724
        %804 = vset.pattern.permute.xlu0 8
        %805 = vperm.xlu0 %804, %v377
        %v806 = vpop.permute.xlu0 %805
        %808 = vset.pattern.permute.xlu0 8
        %809 = vperm.xlu0 %808, %v378
        %v810 = vpop.permute.xlu0 %809
        %v812 = vperm.slane %v801, 2
        %v813 = vperm.slane %v803, 2
        %v814 = vmul.f32 %v806, %v812
        %v815 = vmul.f32 %v806, %v813
        %v816 = vmul.f32 %v810, %v812
        %v817 = vmul.f32 %v810, %v813
        %v818 = vadd.f32 %v793, %v814
        %v819 = vadd.f32 %v794, %v815
        %v820 = vadd.f32 %v795, %v816
        %v821 = vadd.f32 %v796, %v817
        %823 = vset.pattern.permute.xlu0 0
        %824 = vperm.xlu0 %823, %v379
        %v825 = vpop.permute.xlu0 %824
        %828 = vset.pattern.permute.xlu0 0
        %829 = vperm.xlu0 %828, %v380
        %v830 = vpop.permute.xlu0 %829
        %v832 = vadd.f32 %v818, %v825
        %v833 = vadd.f32 %v819, %v825
        %v834 = vadd.f32 %v820, %v830
        %v835 = vadd.f32 %v821, %v830
        %s836 = sld [smem:[#allocation2]]
        %s837 = smax.f32 %s836, 1e-06
        %v838 = vstv %s837
        %v839 = vrcp.pop %v838
        %v840 = vmul.f32 %v838, %v839
        %v841 = vsub.f32 1.0, %v840
        %v842 = vmul.f32 %v839, %v841
        %v843 = vadd.f32 %v839, %v842
        %vm844 = vweird.f32 %v838
        %vm845 = vweird.f32 %v839
        %vm846 = vmor %vm844, %vm845
        %v847 = vsel %vm846, %v839, %v843
        %v848 = vand.u32 2147483647, %v838
        %vm849 = vcmp.eq.f32.partialorder %v848, 8.507059e+37
        %v850 = vand.u32 %v838, 2147483648
        %v851 = vor.u32 1.1754944e-38, %v850
        %v852 = vsel %vm849, %v851, %v847
        %s853 = vtos %v852
        %s854 = smul.f32 15.0, %s853
        %v855 = vrcp.pop 15.0
        %v856 = vmul.f32 15.0, %v855
        %v857 = vsub.f32 1.0, %v856
        %v858 = vmul.f32 %v855, %v857
        %v859 = vadd.f32 %v855, %v858
        %vm860 = vweird.f32 %v855
        %v861 = vsel %vm860, %v855, %v859
        %s862 = vtos %v861
        %s863 = smul.f32 %s837, %s862
        %v864 = vmax.f32 %v832, 0.0
        %v865 = vmax.f32 %v833, 0.0
        %v866 = vmax.f32 %v834, 0.0
        %v867 = vmax.f32 %v835, 0.0
        %v868 = vstv %s837
        %v869 = vmin.f32 %v868, %v864
        %v870 = vmin.f32 %v868, %v865
        %v871 = vmin.f32 %v868, %v866
        %v872 = vmin.f32 %v868, %v867
        %v873 = vstv %s854
        %v874 = vmul.f32 %v869, %v873
        %v875 = vmul.f32 %v870, %v873
        %v876 = vmul.f32 %v871, %v873
        %v877 = vmul.f32 %v872, %v873
        %v878 = vround.ne.pseudo %v874
        %v879 = vround.ne.pseudo %v875
        %v880 = vround.ne.pseudo %v876
        %v881 = vround.ne.pseudo %v877
        %v882 = vstv %s863
        %v883 = vmul.f32 %v878, %v882
        %v884 = vmul.f32 %v879, %v882
        %v885 = vmul.f32 %v880, %v882
        %v886 = vmul.f32 %v881, %v882
        %889 = vrot.lane.b32.xlu0 %v883, 112
        %v890 = vpop.permute.xlu0 %889
        %891 = vrot.lane.b32.xlu0 %v885, 112
        %v892 = vpop.permute.xlu0 %891
        %v895 = vmax.f32 %v883, %v890
        %v896 = vmax.f32 %v885, %v892
        %899 = vrot.lane.b32.xlu0 %v884, 112
        %v900 = vpop.permute.xlu0 %899
        %901 = vrot.lane.b32.xlu0 %v886, 112
        %v902 = vpop.permute.xlu0 %901
        %v905 = vmax.f32 %v884, %v900
        %v906 = vmax.f32 %v886, %v902
        %909 = vrot.lane.b32.xlu0 %v895, 112
        %v910 = vpop.permute.xlu0 %909
        %911 = vrot.lane.b32.xlu0 %v896, 112
        %v912 = vpop.permute.xlu0 %911
        %915 = vrot.lane.b32.xlu0 %v895, 96
        %v916 = vpop.permute.xlu0 %915
        %917 = vrot.lane.b32.xlu0 %v896, 96
        %v918 = vpop.permute.xlu0 %917
        %921 = vrot.lane.b32.xlu0 %v895, 80
        %v922 = vpop.permute.xlu0 %921
        %923 = vrot.lane.b32.xlu0 %v896, 80
        %v924 = vpop.permute.xlu0 %923
        %929 = vrot.lane.b32.xlu0 %v905, 64
        %v930 = vpop.permute.xlu0 %929
        %931 = vrot.lane.b32.xlu0 %v906, 64
        %v932 = vpop.permute.xlu0 %931
        %935 = vrot.lane.b32.xlu0 %v905, 48
        %v936 = vpop.permute.xlu0 %935
        %937 = vrot.lane.b32.xlu0 %v906, 48
        %v938 = vpop.permute.xlu0 %937
        %941 = vrot.lane.b32.xlu0 %v905, 32
        %v942 = vpop.permute.xlu0 %941
        %943 = vrot.lane.b32.xlu0 %v906, 32
        %v944 = vpop.permute.xlu0 %943
        %947 = vrot.lane.b32.xlu0 %v905, 16
        %v948 = vpop.permute.xlu0 %947
        %949 = vrot.lane.b32.xlu0 %v906, 16
        %v950 = vpop.permute.xlu0 %949
        %v953 = vsel %vm478, %v895, %v910
        %v954 = vsel %vm478, %v896, %v912
        %v955 = vsel %vm480, %v953, %v916
        %v956 = vsel %vm480, %v954, %v918
        %v957 = vsel %vm482, %v955, %v922
        %v958 = vsel %vm482, %v956, %v924
        %v959 = vsel %vm484, %v957, %v930
        %v960 = vsel %vm484, %v958, %v932
        %v961 = vsel %vm486, %v959, %v936
        %v962 = vsel %vm486, %v960, %v938
        %v963 = vsel %vm488, %v961, %v942
        %v964 = vsel %vm488, %v962, %v944
        %v965 = vsel %vm490, %v963, %v948
        %v966 = vsel %vm490, %v964, %v950
        %969 = vrot.lane.b32.xlu0 %v965, 127
        %v970 = vpop.permute.xlu0 %969
        %971 = vrot.lane.b32.xlu0 %v966, 127
        %v972 = vpop.permute.xlu0 %971
        %v975 = vmax.f32 %v965, %v970
        %v976 = vmax.f32 %v966, %v972
        %vm977 = vcmask 1039360
        %v979 = vsel %vm977, %v975, 0
        %v982 = vsel %vm977, %v976, 0
        %vm984 = vcmask 1046528
        %v986 = vsel %vm984, %v416, 0
        %988 = vmatpush.msra.mxu0 %v986
        %989 = vmatpush.msra.mxu0 %v415
        %990 = vmatpush.msra.mxu0 %v414
        %991 = vmatpush.msra.mxu0 %v413
        %992 = vmatpush.msra.mxu0 %v412
        %993 = vmatpush.msra.mxu0 %v411
        %994 = vmatpush.msra.mxu0 %v410
        %995 = vmatpush.msra.mxu0 %v409
        %996 = vmatpush.msra.mxu0 %v408
        %997 = vmatpush.msra.mxu0 %v407
        %998 = vmatpush.msra.mxu0 %v406
        %999 = vmatpush.msra.mxu0 %v405
        %1000 = vmatpush.msra.mxu0 %v404
        %1001 = vmatpush.msra.mxu0 %v403
        %1002 = vmatpush.msra.mxu0 %v402
        %1003 = vmatpush.msra.mxu0 %v401
        %1004 = vmatmul.f32.gmra.mxu0 %v979
        %v1005 = vpop.f32.mrf.mxu0
        %v1006 = vadd.f32 0.0, %v1005
        %1007 = vmatmul.f32.gmra.mxu0 %v982
        %v1008 = vpop.f32.mrf.mxu0
        %v1009 = vadd.f32 0.0, %v1008
        %1010 = vdwg.mxu0
        %1013 = vrot.lane.b32.xlu0 %v1006, 126
        %v1014 = vpop.permute.xlu0 %1013
        %1015 = vrot.lane.b32.xlu0 %v1009, 126
        %v1016 = vpop.permute.xlu0 %1015
        %1019 = vrot.lane.b32.xlu0 %v1006, 124
        %v1020 = vpop.permute.xlu0 %1019
        %1021 = vrot.lane.b32.xlu0 %v1009, 124
        %v1022 = vpop.permute.xlu0 %1021
        %1025 = vrot.lane.b32.xlu0 %v1006, 122
        %v1026 = vpop.permute.xlu0 %1025
        %1027 = vrot.lane.b32.xlu0 %v1009, 122
        %v1028 = vpop.permute.xlu0 %1027
        %1031 = vrot.lane.b32.xlu0 %v1006, 120
        %v1032 = vpop.permute.xlu0 %1031
        %1033 = vrot.lane.b32.xlu0 %v1009, 120
        %v1034 = vpop.permute.xlu0 %1033
        %1037 = vrot.lane.b32.xlu0 %v1006, 118
        %v1038 = vpop.permute.xlu0 %1037
        %1039 = vrot.lane.b32.xlu0 %v1009, 118
        %v1040 = vpop.permute.xlu0 %1039
        %vm1043 = vcmask 48128
        %v1044 = vsel %vm1043, %v1006, %v1014
        %v1045 = vsel %vm1043, %v1009, %v1016
        %vm1046 = vcmask 97280
        %v1047 = vsel %vm1046, %v1044, %v1020
        %v1048 = vsel %vm1046, %v1045, %v1022
        %vm1049 = vcmask 146432
        %v1050 = vsel %vm1049, %v1047, %v1026
        %v1051 = vsel %vm1049, %v1048, %v1028
        %vm1052 = vcmask 195584
        %v1053 = vsel %vm1052, %v1050, %v1032
        %v1054 = vsel %vm1052, %v1051, %v1034
        %vm1055 = vcmask 244736
        %v1056 = vsel %vm1055, %v1053, %v1038
        %v1057 = vsel %vm1055, %v1054, %v1040
        %1058 = vrot.lane.b32.xlu0 %v1006, 127
        %v1059 = vpop.permute.xlu0 %1058
        %1060 = vrot.lane.b32.xlu0 %v1009, 127
        %v1061 = vpop.permute.xlu0 %1060
        %1064 = vrot.lane.b32.xlu0 %v1006, 125
        %v1065 = vpop.permute.xlu0 %1064
        %1066 = vrot.lane.b32.xlu0 %v1009, 125
        %v1067 = vpop.permute.xlu0 %1066
        %1070 = vrot.lane.b32.xlu0 %v1006, 123
        %v1071 = vpop.permute.xlu0 %1070
        %1072 = vrot.lane.b32.xlu0 %v1009, 123
        %v1073 = vpop.permute.xlu0 %1072
        %1076 = vrot.lane.b32.xlu0 %v1006, 121
        %v1077 = vpop.permute.xlu0 %1076
        %1078 = vrot.lane.b32.xlu0 %v1009, 121
        %v1079 = vpop.permute.xlu0 %1078
        %1082 = vrot.lane.b32.xlu0 %v1006, 119
        %v1083 = vpop.permute.xlu0 %1082
        %1084 = vrot.lane.b32.xlu0 %v1009, 119
        %v1085 = vpop.permute.xlu0 %1084
        %1088 = vrot.lane.b32.xlu0 %v1006, 117
        %v1089 = vpop.permute.xlu0 %1088
        %1090 = vrot.lane.b32.xlu0 %v1009, 117
        %v1091 = vpop.permute.xlu0 %1090
        %v1094 = vsel %vm1043, %v1059, %v1065
        %v1095 = vsel %vm1043, %v1061, %v1067
        %v1096 = vsel %vm1046, %v1094, %v1071
        %v1097 = vsel %vm1046, %v1095, %v1073
        %v1098 = vsel %vm1049, %v1096, %v1077
        %v1099 = vsel %vm1049, %v1097, %v1079
        %v1100 = vsel %vm1052, %v1098, %v1083
        %v1101 = vsel %vm1052, %v1099, %v1085
        %v1102 = vsel %vm1055, %v1100, %v1089
        %v1103 = vsel %vm1055, %v1101, %v1091
        %1108 = vrot.lane.b32.xlu0 %v381, 112
        %v1109 = vpop.permute.xlu0 %1108
        %1110 = vrot.lane.b32.xlu0 %v383, 112
        %v1111 = vpop.permute.xlu0 %1110
        %1112 = vrot.lane.b32.xlu0 %v385, 112
        %v1113 = vpop.permute.xlu0 %1112
        %1114 = vrot.lane.b32.xlu0 %v387, 112
        %v1115 = vpop.permute.xlu0 %1114
        %v1116 = vsel %vm478, %v1109, 0
        %v1118 = vsel %vm478, %v1111, 0
        %v1120 = vsel %vm478, %v1113, 0
        %v1122 = vsel %vm478, %v1115, 0
        %1124 = vmatpush.msra.mxu0 0.0
        %1125 = vmatpush.msra.mxu0 0.0
        %1126 = vmatpush.msra.mxu0 0.0
        %1127 = vmatpush.msra.mxu0 0.0
        %1128 = vmatpush.msra.mxu0 0.0
        %1129 = vmatpush.msra.mxu0 0.0
        %1130 = vmatpush.msra.mxu0 0.0
        %1131 = vmatpush.msra.mxu0 0.0
        %1132 = vmatpush.msra.mxu0 0.0
        %1133 = vmatpush.msra.mxu0 0.0
        %1134 = vmatpush.msra.mxu0 0.0
        %1135 = vmatpush.msra.mxu0 0.0
        %1136 = vmatpush.msra.mxu0 0.0
        %1137 = vmatpush.msra.mxu0 0.0
        %1138 = vmatpush.msra.mxu0 %v1103
        %1139 = vmatpush.msra.mxu0 %v1102
        %1140 = vmatmul.f32.gmra.mxu0 %v1116
        %v1141 = vpop.f32.mrf.mxu0
        %v1142 = vadd.f32 0.0, %v1141
        %1143 = vmatmul.f32.gmra.mxu0 %v1118
        %v1144 = vpop.f32.mrf.mxu0
        %v1145 = vadd.f32 0.0, %v1144
        %1146 = vmatmul.f32.gmra.mxu0 %v1120
        %v1147 = vpop.f32.mrf.mxu0
        %v1148 = vadd.f32 0.0, %v1147
        %1149 = vmatmul.f32.gmra.mxu0 %v1122
        %v1150 = vpop.f32.mrf.mxu0
        %v1151 = vadd.f32 0.0, %v1150
        %1152 = vdwg.mxu0
        %v1153 = vsel %vm478, %v381, 0
        %v1155 = vsel %vm478, %v383, 0
        %v1157 = vsel %vm478, %v385, 0
        %v1159 = vsel %vm478, %v387, 0
        %1161 = vmatpush.msra.mxu0 0.0
        %1162 = vmatpush.msra.mxu0 0.0
        %1163 = vmatpush.msra.mxu0 0.0
        %1164 = vmatpush.msra.mxu0 0.0
        %1165 = vmatpush.msra.mxu0 0.0
        %1166 = vmatpush.msra.mxu0 0.0
        %1167 = vmatpush.msra.mxu0 0.0
        %1168 = vmatpush.msra.mxu0 0.0
        %1169 = vmatpush.msra.mxu0 0.0
        %1170 = vmatpush.msra.mxu0 0.0
        %1171 = vmatpush.msra.mxu0 0.0
        %1172 = vmatpush.msra.mxu0 0.0
        %1173 = vmatpush.msra.mxu0 0.0
        %1174 = vmatpush.msra.mxu0 0.0
        %1175 = vmatpush.msra.mxu0 %v1057
        %1176 = vmatpush.msra.mxu0 %v1056
        %1177 = vmatmul.f32.gmra.mxu0 %v1153
        %v1178 = vpop.f32.mrf.mxu0
        %v1179 = vadd.f32 %v1142, %v1178
        %1180 = vmatmul.f32.gmra.mxu0 %v1155
        %v1181 = vpop.f32.mrf.mxu0
        %v1182 = vadd.f32 %v1145, %v1181
        %1183 = vmatmul.f32.gmra.mxu0 %v1157
        %v1184 = vpop.f32.mrf.mxu0
        %v1185 = vadd.f32 %v1148, %v1184
        %1186 = vmatmul.f32.gmra.mxu0 %v1159
        %v1187 = vpop.f32.mrf.mxu0
        %v1188 = vadd.f32 %v1151, %v1187
        %1189 = vdwg.mxu0
        %1190 = vrot.lane.b32.xlu0 %v1006, 116
        %v1191 = vpop.permute.xlu0 %1190
        %1192 = vrot.lane.b32.xlu0 %v1009, 116
        %v1193 = vpop.permute.xlu0 %1192
        %v1196 = vsel %vm1043, %v1014, %v1020
        %v1197 = vsel %vm1043, %v1016, %v1022
        %v1198 = vsel %vm1046, %v1196, %v1026
        %v1199 = vsel %vm1046, %v1197, %v1028
        %v1200 = vsel %vm1049, %v1198, %v1032
        %v1201 = vsel %vm1049, %v1199, %v1034
        %v1202 = vsel %vm1052, %v1200, %v1038
        %v1203 = vsel %vm1052, %v1201, %v1040
        %v1204 = vsel %vm1055, %v1202, %v1191
        %v1205 = vsel %vm1055, %v1203, %v1193
        %1206 = vrot.lane.b32.xlu0 %v381, 96
        %v1207 = vpop.permute.xlu0 %1206
        %1208 = vrot.lane.b32.xlu0 %v383, 96
        %v1209 = vpop.permute.xlu0 %1208
        %1210 = vrot.lane.b32.xlu0 %v385, 96
        %v1211 = vpop.permute.xlu0 %1210
        %1212 = vrot.lane.b32.xlu0 %v387, 96
        %v1213 = vpop.permute.xlu0 %1212
        %v1214 = vsel %vm478, %v1207, 0
        %v1216 = vsel %vm478, %v1209, 0
        %v1218 = vsel %vm478, %v1211, 0
        %v1220 = vsel %vm478, %v1213, 0
        %1222 = vmatpush.msra.mxu0 0.0
        %1223 = vmatpush.msra.mxu0 0.0
        %1224 = vmatpush.msra.mxu0 0.0
        %1225 = vmatpush.msra.mxu0 0.0
        %1226 = vmatpush.msra.mxu0 0.0
        %1227 = vmatpush.msra.mxu0 0.0
        %1228 = vmatpush.msra.mxu0 0.0
        %1229 = vmatpush.msra.mxu0 0.0
        %1230 = vmatpush.msra.mxu0 0.0
        %1231 = vmatpush.msra.mxu0 0.0
        %1232 = vmatpush.msra.mxu0 0.0
        %1233 = vmatpush.msra.mxu0 0.0
        %1234 = vmatpush.msra.mxu0 0.0
        %1235 = vmatpush.msra.mxu0 0.0
        %1236 = vmatpush.msra.mxu0 %v1205
        %1237 = vmatpush.msra.mxu0 %v1204
        %1238 = vmatmul.f32.gmra.mxu0 %v1214
        %v1239 = vpop.f32.mrf.mxu0
        %v1240 = vadd.f32 0.0, %v1239
        %1241 = vmatmul.f32.gmra.mxu0 %v1216
        %v1242 = vpop.f32.mrf.mxu0
        %v1243 = vadd.f32 0.0, %v1242
        %1244 = vmatmul.f32.gmra.mxu0 %v1218
        %v1245 = vpop.f32.mrf.mxu0
        %v1246 = vadd.f32 0.0, %v1245
        %1247 = vmatmul.f32.gmra.mxu0 %v1220
        %v1248 = vpop.f32.mrf.mxu0
        %v1249 = vadd.f32 0.0, %v1248
        %1250 = vdwg.mxu0
        %v1251 = vadd.f32 %v1179, %v1240
        %v1252 = vadd.f32 %v1182, %v1243
        %v1253 = vadd.f32 %v1185, %v1246
        %v1254 = vadd.f32 %v1188, %v1249
        %1255 = vrot.lane.b32.xlu0 %v1006, 114
        %v1256 = vpop.permute.xlu0 %1255
        %1257 = vrot.lane.b32.xlu0 %v1009, 114
        %v1258 = vpop.permute.xlu0 %1257
        %1261 = vrot.lane.b32.xlu0 %v1006, 112
        %v1262 = vpop.permute.xlu0 %1261
        %1263 = vrot.lane.b32.xlu0 %v1009, 112
        %v1264 = vpop.permute.xlu0 %1263
        %1267 = vrot.lane.b32.xlu0 %v1006, 110
        %v1268 = vpop.permute.xlu0 %1267
        %1269 = vrot.lane.b32.xlu0 %v1009, 110
        %v1270 = vpop.permute.xlu0 %1269
        %v1273 = vsel %vm1043, %v1032, %v1038
        %v1274 = vsel %vm1043, %v1034, %v1040
        %v1275 = vsel %vm1046, %v1273, %v1191
        %v1276 = vsel %vm1046, %v1274, %v1193
        %v1277 = vsel %vm1049, %v1275, %v1256
        %v1278 = vsel %vm1049, %v1276, %v1258
        %v1279 = vsel %vm1052, %v1277, %v1262
        %v1280 = vsel %vm1052, %v1278, %v1264
        %v1281 = vsel %vm1055, %v1279, %v1268
        %v1282 = vsel %vm1055, %v1280, %v1270
        %1283 = vrot.lane.b32.xlu0 %v381, 80
        %v1284 = vpop.permute.xlu0 %1283
        %1285 = vrot.lane.b32.xlu0 %v383, 80
        %v1286 = vpop.permute.xlu0 %1285
        %1287 = vrot.lane.b32.xlu0 %v385, 80
        %v1288 = vpop.permute.xlu0 %1287
        %1289 = vrot.lane.b32.xlu0 %v387, 80
        %v1290 = vpop.permute.xlu0 %1289
        %v1291 = vsel %vm478, %v1284, 0
        %v1293 = vsel %vm478, %v1286, 0
        %v1295 = vsel %vm478, %v1288, 0
        %v1297 = vsel %vm478, %v1290, 0
        %1299 = vmatpush.msra.mxu0 0.0
        %1300 = vmatpush.msra.mxu0 0.0
        %1301 = vmatpush.msra.mxu0 0.0
        %1302 = vmatpush.msra.mxu0 0.0
        %1303 = vmatpush.msra.mxu0 0.0
        %1304 = vmatpush.msra.mxu0 0.0
        %1305 = vmatpush.msra.mxu0 0.0
        %1306 = vmatpush.msra.mxu0 0.0
        %1307 = vmatpush.msra.mxu0 0.0
        %1308 = vmatpush.msra.mxu0 0.0
        %1309 = vmatpush.msra.mxu0 0.0
        %1310 = vmatpush.msra.mxu0 0.0
        %1311 = vmatpush.msra.mxu0 0.0
        %1312 = vmatpush.msra.mxu0 0.0
        %1313 = vmatpush.msra.mxu0 %v1282
        %1314 = vmatpush.msra.mxu0 %v1281
        %1315 = vmatmul.f32.gmra.mxu0 %v1291
        %v1316 = vpop.f32.mrf.mxu0
        %v1317 = vadd.f32 0.0, %v1316
        %1318 = vmatmul.f32.gmra.mxu0 %v1293
        %v1319 = vpop.f32.mrf.mxu0
        %v1320 = vadd.f32 0.0, %v1319
        %1321 = vmatmul.f32.gmra.mxu0 %v1295
        %v1322 = vpop.f32.mrf.mxu0
        %v1323 = vadd.f32 0.0, %v1322
        %1324 = vmatmul.f32.gmra.mxu0 %v1297
        %v1325 = vpop.f32.mrf.mxu0
        %v1326 = vadd.f32 0.0, %v1325
        %1327 = vdwg.mxu0
        %v1328 = vadd.f32 %v1251, %v1317
        %v1329 = vadd.f32 %v1252, %v1320
        %v1330 = vadd.f32 %v1253, %v1323
        %v1331 = vadd.f32 %v1254, %v1326
        %1332 = vrot.lane.b32.xlu0 %v1006, 115
        %v1333 = vpop.permute.xlu0 %1332
        %1334 = vrot.lane.b32.xlu0 %v1009, 115
        %v1335 = vpop.permute.xlu0 %1334
        %1338 = vrot.lane.b32.xlu0 %v1006, 113
        %v1339 = vpop.permute.xlu0 %1338
        %1340 = vrot.lane.b32.xlu0 %v1009, 113
        %v1341 = vpop.permute.xlu0 %1340
        %1344 = vrot.lane.b32.xlu0 %v1006, 111
        %v1345 = vpop.permute.xlu0 %1344
        %1346 = vrot.lane.b32.xlu0 %v1009, 111
        %v1347 = vpop.permute.xlu0 %1346
        %1350 = vrot.lane.b32.xlu0 %v1006, 109
        %v1351 = vpop.permute.xlu0 %1350
        %1352 = vrot.lane.b32.xlu0 %v1009, 109
        %v1353 = vpop.permute.xlu0 %1352
        %v1356 = vsel %vm1043, %v1083, %v1089
        %v1357 = vsel %vm1043, %v1085, %v1091
        %v1358 = vsel %vm1046, %v1356, %v1333
        %v1359 = vsel %vm1046, %v1357, %v1335
        %v1360 = vsel %vm1049, %v1358, %v1339
        %v1361 = vsel %vm1049, %v1359, %v1341
        %v1362 = vsel %vm1052, %v1360, %v1345
        %v1363 = vsel %vm1052, %v1361, %v1347
        %v1364 = vsel %vm1055, %v1362, %v1351
        %v1365 = vsel %vm1055, %v1363, %v1353
        %1366 = vrot.lane.b32.xlu0 %v381, 64
        %v1367 = vpop.permute.xlu0 %1366
        %1368 = vrot.lane.b32.xlu0 %v383, 64
        %v1369 = vpop.permute.xlu0 %1368
        %1370 = vrot.lane.b32.xlu0 %v385, 64
        %v1371 = vpop.permute.xlu0 %1370
        %1372 = vrot.lane.b32.xlu0 %v387, 64
        %v1373 = vpop.permute.xlu0 %1372
        %v1374 = vsel %vm478, %v1367, 0
        %v1376 = vsel %vm478, %v1369, 0
        %v1378 = vsel %vm478, %v1371, 0
        %v1380 = vsel %vm478, %v1373, 0
        %1382 = vmatpush.msra.mxu0 0.0
        %1383 = vmatpush.msra.mxu0 0.0
        %1384 = vmatpush.msra.mxu0 0.0
        %1385 = vmatpush.msra.mxu0 0.0
        %1386 = vmatpush.msra.mxu0 0.0
        %1387 = vmatpush.msra.mxu0 0.0
        %1388 = vmatpush.msra.mxu0 0.0
        %1389 = vmatpush.msra.mxu0 0.0
        %1390 = vmatpush.msra.mxu0 0.0
        %1391 = vmatpush.msra.mxu0 0.0
        %1392 = vmatpush.msra.mxu0 0.0
        %1393 = vmatpush.msra.mxu0 0.0
        %1394 = vmatpush.msra.mxu0 0.0
        %1395 = vmatpush.msra.mxu0 0.0
        %1396 = vmatpush.msra.mxu0 %v1365
        %1397 = vmatpush.msra.mxu0 %v1364
        %1398 = vmatmul.f32.gmra.mxu0 %v1374
        %v1399 = vpop.f32.mrf.mxu0
        %v1400 = vadd.f32 0.0, %v1399
        %1401 = vmatmul.f32.gmra.mxu0 %v1376
        %v1402 = vpop.f32.mrf.mxu0
        %v1403 = vadd.f32 0.0, %v1402
        %1404 = vmatmul.f32.gmra.mxu0 %v1378
        %v1405 = vpop.f32.mrf.mxu0
        %v1406 = vadd.f32 0.0, %v1405
        %1407 = vmatmul.f32.gmra.mxu0 %v1380
        %v1408 = vpop.f32.mrf.mxu0
        %v1409 = vadd.f32 0.0, %v1408
        %1410 = vdwg.mxu0
        %v1411 = vadd.f32 %v1328, %v1400
        %v1412 = vadd.f32 %v1329, %v1403
        %v1413 = vadd.f32 %v1330, %v1406
        %v1414 = vadd.f32 %v1331, %v1409
        %1415 = vrot.lane.b32.xlu0 %v1006, 108
        %v1416 = vpop.permute.xlu0 %1415
        %1417 = vrot.lane.b32.xlu0 %v1009, 108
        %v1418 = vpop.permute.xlu0 %1417
        %v1421 = vsel %vm1043, %v1038, %v1191
        %v1422 = vsel %vm1043, %v1040, %v1193
        %v1423 = vsel %vm1046, %v1421, %v1256
        %v1424 = vsel %vm1046, %v1422, %v1258
        %v1425 = vsel %vm1049, %v1423, %v1262
        %v1426 = vsel %vm1049, %v1424, %v1264
        %v1427 = vsel %vm1052, %v1425, %v1268
        %v1428 = vsel %vm1052, %v1426, %v1270
        %v1429 = vsel %vm1055, %v1427, %v1416
        %v1430 = vsel %vm1055, %v1428, %v1418
        %1431 = vrot.lane.b32.xlu0 %v381, 48
        %v1432 = vpop.permute.xlu0 %1431
        %1433 = vrot.lane.b32.xlu0 %v383, 48
        %v1434 = vpop.permute.xlu0 %1433
        %1435 = vrot.lane.b32.xlu0 %v385, 48
        %v1436 = vpop.permute.xlu0 %1435
        %1437 = vrot.lane.b32.xlu0 %v387, 48
        %v1438 = vpop.permute.xlu0 %1437
        %v1439 = vsel %vm478, %v1432, 0
        %v1441 = vsel %vm478, %v1434, 0
        %v1443 = vsel %vm478, %v1436, 0
        %v1445 = vsel %vm478, %v1438, 0
        %1447 = vmatpush.msra.mxu0 0.0
        %1448 = vmatpush.msra.mxu0 0.0
        %1449 = vmatpush.msra.mxu0 0.0
        %1450 = vmatpush.msra.mxu0 0.0
        %1451 = vmatpush.msra.mxu0 0.0
        %1452 = vmatpush.msra.mxu0 0.0
        %1453 = vmatpush.msra.mxu0 0.0
        %1454 = vmatpush.msra.mxu0 0.0
        %1455 = vmatpush.msra.mxu0 0.0
        %1456 = vmatpush.msra.mxu0 0.0
        %1457 = vmatpush.msra.mxu0 0.0
        %1458 = vmatpush.msra.mxu0 0.0
        %1459 = vmatpush.msra.mxu0 0.0
        %1460 = vmatpush.msra.mxu0 0.0
        %1461 = vmatpush.msra.mxu0 %v1430
        %1462 = vmatpush.msra.mxu0 %v1429
        %1463 = vmatmul.f32.gmra.mxu0 %v1439
        %v1464 = vpop.f32.mrf.mxu0
        %v1465 = vadd.f32 0.0, %v1464
        %1466 = vmatmul.f32.gmra.mxu0 %v1441
        %v1467 = vpop.f32.mrf.mxu0
        %v1468 = vadd.f32 0.0, %v1467
        %1469 = vmatmul.f32.gmra.mxu0 %v1443
        %v1470 = vpop.f32.mrf.mxu0
        %v1471 = vadd.f32 0.0, %v1470
        %1472 = vmatmul.f32.gmra.mxu0 %v1445
        %v1473 = vpop.f32.mrf.mxu0
        %v1474 = vadd.f32 0.0, %v1473
        %1475 = vdwg.mxu0
        %v1476 = vadd.f32 %v1411, %v1465
        %v1477 = vadd.f32 %v1412, %v1468
        %v1478 = vadd.f32 %v1413, %v1471
        %v1479 = vadd.f32 %v1414, %v1474
        %1480 = vrot.lane.b32.xlu0 %v1006, 106
        %v1481 = vpop.permute.xlu0 %1480
        %1482 = vrot.lane.b32.xlu0 %v1009, 106
        %v1483 = vpop.permute.xlu0 %1482
        %1486 = vrot.lane.b32.xlu0 %v1006, 104
        %v1487 = vpop.permute.xlu0 %1486
        %1488 = vrot.lane.b32.xlu0 %v1009, 104
        %v1489 = vpop.permute.xlu0 %1488
        %1492 = vrot.lane.b32.xlu0 %v1006, 102
        %v1493 = vpop.permute.xlu0 %1492
        %1494 = vrot.lane.b32.xlu0 %v1009, 102
        %v1495 = vpop.permute.xlu0 %1494
        %v1498 = vsel %vm1043, %v1262, %v1268
        %v1499 = vsel %vm1043, %v1264, %v1270
        %v1500 = vsel %vm1046, %v1498, %v1416
        %v1501 = vsel %vm1046, %v1499, %v1418
        %v1502 = vsel %vm1049, %v1500, %v1481
        %v1503 = vsel %vm1049, %v1501, %v1483
        %v1504 = vsel %vm1052, %v1502, %v1487
        %v1505 = vsel %vm1052, %v1503, %v1489
        %v1506 = vsel %vm1055, %v1504, %v1493
        %v1507 = vsel %vm1055, %v1505, %v1495
        %1508 = vrot.lane.b32.xlu0 %v381, 32
        %v1509 = vpop.permute.xlu0 %1508
        %1510 = vrot.lane.b32.xlu0 %v383, 32
        %v1511 = vpop.permute.xlu0 %1510
        %1512 = vrot.lane.b32.xlu0 %v385, 32
        %v1513 = vpop.permute.xlu0 %1512
        %1514 = vrot.lane.b32.xlu0 %v387, 32
        %v1515 = vpop.permute.xlu0 %1514
        %v1516 = vsel %vm478, %v1509, 0
        %v1518 = vsel %vm478, %v1511, 0
        %v1520 = vsel %vm478, %v1513, 0
        %v1522 = vsel %vm478, %v1515, 0
        %1524 = vmatpush.msra.mxu0 0.0
        %1525 = vmatpush.msra.mxu0 0.0
        %1526 = vmatpush.msra.mxu0 0.0
        %1527 = vmatpush.msra.mxu0 0.0
        %1528 = vmatpush.msra.mxu0 0.0
        %1529 = vmatpush.msra.mxu0 0.0
        %1530 = vmatpush.msra.mxu0 0.0
        %1531 = vmatpush.msra.mxu0 0.0
        %1532 = vmatpush.msra.mxu0 0.0
        %1533 = vmatpush.msra.mxu0 0.0
        %1534 = vmatpush.msra.mxu0 0.0
        %1535 = vmatpush.msra.mxu0 0.0
        %1536 = vmatpush.msra.mxu0 0.0
        %1537 = vmatpush.msra.mxu0 0.0
        %1538 = vmatpush.msra.mxu0 %v1507
        %1539 = vmatpush.msra.mxu0 %v1506
        %1540 = vmatmul.f32.gmra.mxu0 %v1516
        %v1541 = vpop.f32.mrf.mxu0
        %v1542 = vadd.f32 0.0, %v1541
        %1543 = vmatmul.f32.gmra.mxu0 %v1518
        %v1544 = vpop.f32.mrf.mxu0
        %v1545 = vadd.f32 0.0, %v1544
        %1546 = vmatmul.f32.gmra.mxu0 %v1520
        %v1547 = vpop.f32.mrf.mxu0
        %v1548 = vadd.f32 0.0, %v1547
        %1549 = vmatmul.f32.gmra.mxu0 %v1522
        %v1550 = vpop.f32.mrf.mxu0
        %v1551 = vadd.f32 0.0, %v1550
        %1552 = vdwg.mxu0
        %v1553 = vadd.f32 %v1476, %v1542
        %v1554 = vadd.f32 %v1477, %v1545
        %v1555 = vadd.f32 %v1478, %v1548
        %v1556 = vadd.f32 %v1479, %v1551
        %1557 = vrot.lane.b32.xlu0 %v1006, 107
        %v1558 = vpop.permute.xlu0 %1557
        %1559 = vrot.lane.b32.xlu0 %v1009, 107
        %v1560 = vpop.permute.xlu0 %1559
        %1563 = vrot.lane.b32.xlu0 %v1006, 105
        %v1564 = vpop.permute.xlu0 %1563
        %1565 = vrot.lane.b32.xlu0 %v1009, 105
        %v1566 = vpop.permute.xlu0 %1565
        %1569 = vrot.lane.b32.xlu0 %v1006, 103
        %v1570 = vpop.permute.xlu0 %1569
        %1571 = vrot.lane.b32.xlu0 %v1009, 103
        %v1572 = vpop.permute.xlu0 %1571
        %1575 = vrot.lane.b32.xlu0 %v1006, 101
        %v1576 = vpop.permute.xlu0 %1575
        %1577 = vrot.lane.b32.xlu0 %v1009, 101
        %v1578 = vpop.permute.xlu0 %1577
        %v1581 = vsel %vm1043, %v1345, %v1351
        %v1582 = vsel %vm1043, %v1347, %v1353
        %v1583 = vsel %vm1046, %v1581, %v1558
        %v1584 = vsel %vm1046, %v1582, %v1560
        %v1585 = vsel %vm1049, %v1583, %v1564
        %v1586 = vsel %vm1049, %v1584, %v1566
        %v1587 = vsel %vm1052, %v1585, %v1570
        %v1588 = vsel %vm1052, %v1586, %v1572
        %v1589 = vsel %vm1055, %v1587, %v1576
        %v1590 = vsel %vm1055, %v1588, %v1578
        %1591 = vrot.lane.b32.xlu0 %v381, 16
        %v1592 = vpop.permute.xlu0 %1591
        %1593 = vrot.lane.b32.xlu0 %v383, 16
        %v1594 = vpop.permute.xlu0 %1593
        %1595 = vrot.lane.b32.xlu0 %v385, 16
        %v1596 = vpop.permute.xlu0 %1595
        %1597 = vrot.lane.b32.xlu0 %v387, 16
        %v1598 = vpop.permute.xlu0 %1597
        %v1599 = vsel %vm478, %v1592, 0
        %v1601 = vsel %vm478, %v1594, 0
        %v1603 = vsel %vm478, %v1596, 0
        %v1605 = vsel %vm478, %v1598, 0
        %1607 = vmatpush.msra.mxu0 0.0
        %1608 = vmatpush.msra.mxu0 0.0
        %1609 = vmatpush.msra.mxu0 0.0
        %1610 = vmatpush.msra.mxu0 0.0
        %1611 = vmatpush.msra.mxu0 0.0
        %1612 = vmatpush.msra.mxu0 0.0
        %1613 = vmatpush.msra.mxu0 0.0
        %1614 = vmatpush.msra.mxu0 0.0
        %1615 = vmatpush.msra.mxu0 0.0
        %1616 = vmatpush.msra.mxu0 0.0
        %1617 = vmatpush.msra.mxu0 0.0
        %1618 = vmatpush.msra.mxu0 0.0
        %1619 = vmatpush.msra.mxu0 0.0
        %1620 = vmatpush.msra.mxu0 0.0
        %1621 = vmatpush.msra.mxu0 %v1590
        %1622 = vmatpush.msra.mxu0 %v1589
        %1623 = vmatmul.f32.gmra.mxu0 %v1599
        %v1624 = vpop.f32.mrf.mxu0
        %v1625 = vadd.f32 0.0, %v1624
        %1626 = vmatmul.f32.gmra.mxu0 %v1601
        %v1627 = vpop.f32.mrf.mxu0
        %v1628 = vadd.f32 0.0, %v1627
        %1629 = vmatmul.f32.gmra.mxu0 %v1603
        %v1630 = vpop.f32.mrf.mxu0
        %v1631 = vadd.f32 0.0, %v1630
        %1632 = vmatmul.f32.gmra.mxu0 %v1605
        %v1633 = vpop.f32.mrf.mxu0
        %v1634 = vadd.f32 0.0, %v1633
        %1635 = vdwg.mxu0
        %v1636 = vadd.f32 %v1553, %v1625
        %v1637 = vadd.f32 %v1554, %v1628
        %v1638 = vadd.f32 %v1555, %v1631
        %v1639 = vadd.f32 %v1556, %v1634
        %1640 = vrot.lane.b32.xlu0 %v1006, 100
        %v1641 = vpop.permute.xlu0 %1640
        %1642 = vrot.lane.b32.xlu0 %v1009, 100
        %v1643 = vpop.permute.xlu0 %1642
        %v1646 = vsel %vm1043, %v1268, %v1416
        %v1647 = vsel %vm1043, %v1270, %v1418
        %v1648 = vsel %vm1046, %v1646, %v1481
        %v1649 = vsel %vm1046, %v1647, %v1483
        %v1650 = vsel %vm1049, %v1648, %v1487
        %v1651 = vsel %vm1049, %v1649, %v1489
        %v1652 = vsel %vm1052, %v1650, %v1493
        %v1653 = vsel %vm1052, %v1651, %v1495
        %v1654 = vsel %vm1055, %v1652, %v1641
        %v1655 = vsel %vm1055, %v1653, %v1643
        %v1657 = vsel %vm478, %v382, 0
        %v1660 = vsel %vm478, %v384, 0
        %v1663 = vsel %vm478, %v386, 0
        %v1666 = vsel %vm478, %v388, 0
        %1668 = vmatpush.msra.mxu0 0.0
        %1669 = vmatpush.msra.mxu0 0.0
        %1670 = vmatpush.msra.mxu0 0.0
        %1671 = vmatpush.msra.mxu0 0.0
        %1672 = vmatpush.msra.mxu0 0.0
        %1673 = vmatpush.msra.mxu0 0.0
        %1674 = vmatpush.msra.mxu0 0.0
        %1675 = vmatpush.msra.mxu0 0.0
        %1676 = vmatpush.msra.mxu0 0.0
        %1677 = vmatpush.msra.mxu0 0.0
        %1678 = vmatpush.msra.mxu0 0.0
        %1679 = vmatpush.msra.mxu0 0.0
        %1680 = vmatpush.msra.mxu0 0.0
        %1681 = vmatpush.msra.mxu0 0.0
        %1682 = vmatpush.msra.mxu0 %v1655
        %1683 = vmatpush.msra.mxu0 %v1654
        %1684 = vmatmul.f32.gmra.mxu0 %v1657
        %v1685 = vpop.f32.mrf.mxu0
        %v1686 = vadd.f32 0.0, %v1685
        %1687 = vmatmul.f32.gmra.mxu0 %v1660
        %v1688 = vpop.f32.mrf.mxu0
        %v1689 = vadd.f32 0.0, %v1688
        %1690 = vmatmul.f32.gmra.mxu0 %v1663
        %v1691 = vpop.f32.mrf.mxu0
        %v1692 = vadd.f32 0.0, %v1691
        %1693 = vmatmul.f32.gmra.mxu0 %v1666
        %v1694 = vpop.f32.mrf.mxu0
        %v1695 = vadd.f32 0.0, %v1694
        %1696 = vdwg.mxu0
        %v1697 = vadd.f32 %v1636, %v1686
        %v1698 = vadd.f32 %v1637, %v1689
        %v1699 = vadd.f32 %v1638, %v1692
        %v1700 = vadd.f32 %v1639, %v1695
        %1702 = vset.pattern.permute.xlu0 0
        %1703 = vperm.xlu0 %1702, %v389
        %v1704 = vpop.permute.xlu0 %1703
        %1707 = vset.pattern.permute.xlu0 0
        %1708 = vperm.xlu0 %1707, %v390
        %v1709 = vpop.permute.xlu0 %1708
        %1712 = vset.pattern.permute.xlu0 0
        %1713 = vperm.xlu0 %1712, %v391
        %v1714 = vpop.permute.xlu0 %1713
        %1717 = vset.pattern.permute.xlu0 0
        %1718 = vperm.xlu0 %1717, %v392
        %v1719 = vpop.permute.xlu0 %1718
        %v1721 = vadd.f32 %v1697, %v1704
        %v1722 = vadd.f32 %v1698, %v1709
        %v1723 = vadd.f32 %v1699, %v1714
        %v1724 = vadd.f32 %v1700, %v1719
        %s1725 = sld [smem:[#allocation2 + $0x1]]
        %s1726 = smax.f32 %s1725, 1e-06
        %v1727 = vstv %s1726
        %v1728 = vrcp.pop %v1727
        %v1729 = vmul.f32 %v1727, %v1728
        %v1730 = vsub.f32 1.0, %v1729
        %v1731 = vmul.f32 %v1728, %v1730
        %v1732 = vadd.f32 %v1728, %v1731
        %vm1733 = vweird.f32 %v1727
        %vm1734 = vweird.f32 %v1728
        %vm1735 = vmor %vm1733, %vm1734
        %v1736 = vsel %vm1735, %v1728, %v1732
        %v1737 = vand.u32 2147483647, %v1727
        %vm1738 = vcmp.eq.f32.partialorder %v1737, 8.507059e+37
        %v1739 = vand.u32 %v1727, 2147483648
        %v1740 = vor.u32 1.1754944e-38, %v1739
        %v1741 = vsel %vm1738, %v1740, %v1736
        %s1742 = vtos %v1741
        %s1743 = smul.f32 15.0, %s1742
        %v1744 = vrcp.pop 15.0
        %v1745 = vmul.f32 15.0, %v1744
        %v1746 = vsub.f32 1.0, %v1745
        %v1747 = vmul.f32 %v1744, %v1746
        %v1748 = vadd.f32 %v1744, %v1747
        %vm1749 = vweird.f32 %v1744
        %v1750 = vsel %vm1749, %v1744, %v1748
        %s1751 = vtos %v1750
        %s1752 = smul.f32 %s1726, %s1751
        %v1753 = vmax.f32 %v1721, 0.0
        %v1754 = vmax.f32 %v1722, 0.0
        %v1755 = vmax.f32 %v1723, 0.0
        %v1756 = vmax.f32 %v1724, 0.0
        %v1757 = vstv %s1726
        %v1758 = vmin.f32 %v1757, %v1753
        %v1759 = vmin.f32 %v1757, %v1754
        %v1760 = vmin.f32 %v1757, %v1755
        %v1761 = vmin.f32 %v1757, %v1756
        %v1762 = vstv %s1743
        %v1763 = vmul.f32 %v1758, %v1762
        %v1764 = vmul.f32 %v1759, %v1762
        %v1765 = vmul.f32 %v1760, %v1762
        %v1766 = vmul.f32 %v1761, %v1762
        %v1767 = vround.ne.pseudo %v1763
        %v1768 = vround.ne.pseudo %v1764
        %v1769 = vround.ne.pseudo %v1765
        %v1770 = vround.ne.pseudo %v1766
        %v1771 = vstv %s1752
        %v1772 = vmul.f32 %v1767, %v1771
        %v1773 = vmul.f32 %v1768, %v1771
        %v1774 = vmul.f32 %v1769, %v1771
        %v1775 = vmul.f32 %v1770, %v1771
        %1780 = vrot.lane.b32.xlu0 %v1772, 122
        %v1781 = vpop.permute.xlu0 %1780
        %1782 = vrot.lane.b32.xlu0 %v1773, 122
        %v1783 = vpop.permute.xlu0 %1782
        %1784 = vrot.lane.b32.xlu0 %v1774, 122
        %v1785 = vpop.permute.xlu0 %1784
        %1786 = vrot.lane.b32.xlu0 %v1775, 122
        %v1787 = vpop.permute.xlu0 %1786
        %v1792 = vmax.f32 %v1772, %v1781
        %v1793 = vmax.f32 %v1773, %v1783
        %v1794 = vmax.f32 %v1774, %v1785
        %v1795 = vmax.f32 %v1775, %v1787
        %1800 = vrot.lane.b32.xlu0 %v1792, 122
        %v1801 = vpop.permute.xlu0 %1800
        %1802 = vrot.lane.b32.xlu0 %v1793, 122
        %v1803 = vpop.permute.xlu0 %1802
        %1804 = vrot.lane.b32.xlu0 %v1794, 122
        %v1805 = vpop.permute.xlu0 %1804
        %1806 = vrot.lane.b32.xlu0 %v1795, 122
        %v1807 = vpop.permute.xlu0 %1806
        %1812 = vrot.lane.b32.xlu0 %v1792, 116
        %v1813 = vpop.permute.xlu0 %1812
        %1814 = vrot.lane.b32.xlu0 %v1793, 116
        %v1815 = vpop.permute.xlu0 %1814
        %1816 = vrot.lane.b32.xlu0 %v1794, 116
        %v1817 = vpop.permute.xlu0 %1816
        %1818 = vrot.lane.b32.xlu0 %v1795, 116
        %v1819 = vpop.permute.xlu0 %1818
        %v1824 = vsel %vm1043, %v1792, %v1801
        %v1825 = vsel %vm1043, %v1793, %v1803
        %v1826 = vsel %vm1043, %v1794, %v1805
        %v1827 = vsel %vm1043, %v1795, %v1807
        %v1828 = vsel %vm1046, %v1824, %v1813
        %v1829 = vsel %vm1046, %v1825, %v1815
        %v1830 = vsel %vm1046, %v1826, %v1817
        %v1831 = vsel %vm1046, %v1827, %v1819
        %1836 = vrot.lane.b32.xlu0 %v1828, 127
        %v1837 = vpop.permute.xlu0 %1836
        %1838 = vrot.lane.b32.xlu0 %v1829, 127
        %v1839 = vpop.permute.xlu0 %1838
        %1840 = vrot.lane.b32.xlu0 %v1830, 127
        %v1841 = vpop.permute.xlu0 %1840
        %1842 = vrot.lane.b32.xlu0 %v1831, 127
        %v1843 = vpop.permute.xlu0 %1842
        %v1848 = vmax.f32 %v1828, %v1837
        %v1849 = vmax.f32 %v1829, %v1839
        %v1850 = vmax.f32 %v1830, %v1841
        %v1851 = vmax.f32 %v1831, %v1843
        %vm1852 = vcmask 138240
        %v1854 = vsel %vm1852, %v1848, 0
        %v1857 = vsel %vm1852, %v1849, 0
        %v1860 = vsel %vm1852, %v1850, 0
        %v1863 = vsel %vm1852, %v1851, 0
        %vm1865 = vcmask 1040384
        %v1867 = vsel %vm1865, %v419, 0
        %1869 = vmatpush.msra.mxu0 0.0
        %1870 = vmatpush.msra.mxu0 0.0
        %1871 = vmatpush.msra.mxu0 0.0
        %1872 = vmatpush.msra.mxu0 0.0
        %1873 = vmatpush.msra.mxu0 0.0
        %1874 = vmatpush.msra.mxu0 0.0
        %1875 = vmatpush.msra.mxu0 0.0
        %1876 = vmatpush.msra.mxu0 0.0
        %1877 = vmatpush.msra.mxu0 0.0
        %1878 = vmatpush.msra.mxu0 0.0
        %1879 = vmatpush.msra.mxu0 0.0
        %1880 = vmatpush.msra.mxu0 0.0
        %1881 = vmatpush.msra.mxu0 0.0
        %1882 = vmatpush.msra.mxu0 %v1867
        %1883 = vmatpush.msra.mxu0 %v418
        %1884 = vmatpush.msra.mxu0 %v417
        %1885 = vmatmul.f32.gmra.mxu0 %v1854
        %v1886 = vpop.f32.mrf.mxu0
        %v1887 = vadd.f32 0.0, %v1886
        %1888 = vmatmul.f32.gmra.mxu0 %v1857
        %v1889 = vpop.f32.mrf.mxu0
        %v1890 = vadd.f32 0.0, %v1889
        %1891 = vmatmul.f32.gmra.mxu0 %v1860
        %v1892 = vpop.f32.mrf.mxu0
        %v1893 = vadd.f32 0.0, %v1892
        %1894 = vmatmul.f32.gmra.mxu0 %v1863
        %v1895 = vpop.f32.mrf.mxu0
        %v1896 = vadd.f32 0.0, %v1895
        %1897 = vdwg.mxu0
        %v1899 = vsel %vm480, %v393, 0
        %v1902 = vsel %vm480, %v396, 0
        %1904 = vmatpush.msra.mxu0 0.0
        %1905 = vmatpush.msra.mxu0 0.0
        %1906 = vmatpush.msra.mxu0 0.0
        %1907 = vmatpush.msra.mxu0 0.0
        %1908 = vmatpush.msra.mxu0 0.0
        %1909 = vmatpush.msra.mxu0 0.0
        %1910 = vmatpush.msra.mxu0 0.0
        %1911 = vmatpush.msra.mxu0 0.0
        %1912 = vmatpush.msra.mxu0 0.0
        %1913 = vmatpush.msra.mxu0 0.0
        %1914 = vmatpush.msra.mxu0 0.0
        %1915 = vmatpush.msra.mxu0 0.0
        %1916 = vmatpush.msra.mxu0 %v1896
        %1917 = vmatpush.msra.mxu0 %v1893
        %1918 = vmatpush.msra.mxu0 %v1890
        %1919 = vmatpush.msra.mxu0 %v1887
        %1920 = vmatmul.f32.gmra.mxu0 %v1899
        %v1921 = vpop.f32.mrf.mxu0
        %v1922 = vadd.f32 0.0, %v1921
        %1923 = vmatmul.f32.gmra.mxu0 %v1902
        %v1924 = vpop.f32.mrf.mxu0
        %v1925 = vadd.f32 0.0, %v1924
        %1926 = vdwg.mxu0
        %v1927 = vadd.f32 %v399, %v1922
        %v1928 = vadd.f32 %v400, %v1925
        %1929 = vrot.lane.b32.xlu0 %v393, 96
        %v1930 = vpop.permute.xlu0 %1929
        %1931 = vrot.lane.b32.xlu0 %v396, 96
        %v1932 = vpop.permute.xlu0 %1931
        %1937 = vrot.lane.b32.xlu0 %v1887, 127
        %v1938 = vpop.permute.xlu0 %1937
        %1939 = vrot.lane.b32.xlu0 %v1890, 127
        %v1940 = vpop.permute.xlu0 %1939
        %1941 = vrot.lane.b32.xlu0 %v1893, 127
        %v1942 = vpop.permute.xlu0 %1941
        %1943 = vrot.lane.b32.xlu0 %v1896, 127
        %v1944 = vpop.permute.xlu0 %1943
        %v1949 = vsel %vm480, %v1930, 0
        %v1951 = vsel %vm480, %v1932, 0
        %1953 = vmatpush.msra.mxu0 0.0
        %1954 = vmatpush.msra.mxu0 0.0
        %1955 = vmatpush.msra.mxu0 0.0
        %1956 = vmatpush.msra.mxu0 0.0
        %1957 = vmatpush.msra.mxu0 0.0
        %1958 = vmatpush.msra.mxu0 0.0
        %1959 = vmatpush.msra.mxu0 0.0
        %1960 = vmatpush.msra.mxu0 0.0
        %1961 = vmatpush.msra.mxu0 0.0
        %1962 = vmatpush.msra.mxu0 0.0
        %1963 = vmatpush.msra.mxu0 0.0
        %1964 = vmatpush.msra.mxu0 0.0
        %1965 = vmatpush.msra.mxu0 %v1944
        %1966 = vmatpush.msra.mxu0 %v1942
        %1967 = vmatpush.msra.mxu0 %v1940
        %1968 = vmatpush.msra.mxu0 %v1938
        %1969 = vmatmul.f32.gmra.mxu0 %v1949
        %v1970 = vpop.f32.mrf.mxu0
        %v1971 = vadd.f32 0.0, %v1970
        %1972 = vmatmul.f32.gmra.mxu0 %v1951
        %v1973 = vpop.f32.mrf.mxu0
        %v1974 = vadd.f32 0.0, %v1973
        %1975 = vdwg.mxu0
        %v1976 = vadd.f32 %v1927, %v1971
        %v1977 = vadd.f32 %v1928, %v1974
        %1978 = vrot.lane.b32.xlu0 %v393, 64
        %v1979 = vpop.permute.xlu0 %1978
        %1980 = vrot.lane.b32.xlu0 %v396, 64
        %v1981 = vpop.permute.xlu0 %1980
        %1982 = vrot.lane.b32.xlu0 %v1887, 126
        %v1983 = vpop.permute.xlu0 %1982
        %1984 = vrot.lane.b32.xlu0 %v1890, 126
        %v1985 = vpop.permute.xlu0 %1984
        %1986 = vrot.lane.b32.xlu0 %v1893, 126
        %v1987 = vpop.permute.xlu0 %1986
        %1988 = vrot.lane.b32.xlu0 %v1896, 126
        %v1989 = vpop.permute.xlu0 %1988
        %v1994 = vsel %vm480, %v1979, 0
        %v1996 = vsel %vm480, %v1981, 0
        %1998 = vmatpush.msra.mxu0 0.0
        %1999 = vmatpush.msra.mxu0 0.0
        %2000 = vmatpush.msra.mxu0 0.0
        %2001 = vmatpush.msra.mxu0 0.0
        %2002 = vmatpush.msra.mxu0 0.0
        %2003 = vmatpush.msra.mxu0 0.0
        %2004 = vmatpush.msra.mxu0 0.0
        %2005 = vmatpush.msra.mxu0 0.0
        %2006 = vmatpush.msra.mxu0 0.0
        %2007 = vmatpush.msra.mxu0 0.0
        %2008 = vmatpush.msra.mxu0 0.0
        %2009 = vmatpush.msra.mxu0 0.0
        %2010 = vmatpush.msra.mxu0 %v1989
        %2011 = vmatpush.msra.mxu0 %v1987
        %2012 = vmatpush.msra.mxu0 %v1985
        %2013 = vmatpush.msra.mxu0 %v1983
        %2014 = vmatmul.f32.gmra.mxu0 %v1994
        %v2015 = vpop.f32.mrf.mxu0
        %v2016 = vadd.f32 0.0, %v2015
        %2017 = vmatmul.f32.gmra.mxu0 %v1996
        %v2018 = vpop.f32.mrf.mxu0
        %v2019 = vadd.f32 0.0, %v2018
        %2020 = vdwg.mxu0
        %v2021 = vadd.f32 %v1976, %v2016
        %v2022 = vadd.f32 %v1977, %v2019
        %2023 = vrot.lane.b32.xlu0 %v393, 32
        %v2024 = vpop.permute.xlu0 %2023
        %2025 = vrot.lane.b32.xlu0 %v396, 32
        %v2026 = vpop.permute.xlu0 %2025
        %2027 = vrot.lane.b32.xlu0 %v1887, 125
        %v2028 = vpop.permute.xlu0 %2027
        %2029 = vrot.lane.b32.xlu0 %v1890, 125
        %v2030 = vpop.permute.xlu0 %2029
        %2031 = vrot.lane.b32.xlu0 %v1893, 125
        %v2032 = vpop.permute.xlu0 %2031
        %2033 = vrot.lane.b32.xlu0 %v1896, 125
        %v2034 = vpop.permute.xlu0 %2033
        %v2039 = vsel %vm480, %v2024, 0
        %v2041 = vsel %vm480, %v2026, 0
        %2043 = vmatpush.msra.mxu0 0.0
        %2044 = vmatpush.msra.mxu0 0.0
        %2045 = vmatpush.msra.mxu0 0.0
        %2046 = vmatpush.msra.mxu0 0.0
        %2047 = vmatpush.msra.mxu0 0.0
        %2048 = vmatpush.msra.mxu0 0.0
        %2049 = vmatpush.msra.mxu0 0.0
        %2050 = vmatpush.msra.mxu0 0.0
        %2051 = vmatpush.msra.mxu0 0.0
        %2052 = vmatpush.msra.mxu0 0.0
        %2053 = vmatpush.msra.mxu0 0.0
        %2054 = vmatpush.msra.mxu0 0.0
        %2055 = vmatpush.msra.mxu0 %v2034
        %2056 = vmatpush.msra.mxu0 %v2032
        %2057 = vmatpush.msra.mxu0 %v2030
        %2058 = vmatpush.msra.mxu0 %v2028
        %2059 = vmatmul.f32.gmra.mxu0 %v2039
        %v2060 = vpop.f32.mrf.mxu0
        %v2061 = vadd.f32 0.0, %v2060
        %2062 = vmatmul.f32.gmra.mxu0 %v2041
        %v2063 = vpop.f32.mrf.mxu0
        %v2064 = vadd.f32 0.0, %v2063
        %2065 = vdwg.mxu0
        %v2066 = vadd.f32 %v2021, %v2061
        %v2067 = vadd.f32 %v2022, %v2064
        %2068 = vrot.lane.b32.xlu0 %v1887, 124
        %v2069 = vpop.permute.xlu0 %2068
        %2070 = vrot.lane.b32.xlu0 %v1890, 124
        %v2071 = vpop.permute.xlu0 %2070
        %2072 = vrot.lane.b32.xlu0 %v1893, 124
        %v2073 = vpop.permute.xlu0 %2072
        %2074 = vrot.lane.b32.xlu0 %v1896, 124
        %v2075 = vpop.permute.xlu0 %2074
        %v2081 = vsel %vm480, %v394, 0
        %v2084 = vsel %vm480, %v397, 0
        %2086 = vmatpush.msra.mxu0 0.0
        %2087 = vmatpush.msra.mxu0 0.0
        %2088 = vmatpush.msra.mxu0 0.0
        %2089 = vmatpush.msra.mxu0 0.0
        %2090 = vmatpush.msra.mxu0 0.0
        %2091 = vmatpush.msra.mxu0 0.0
        %2092 = vmatpush.msra.mxu0 0.0
        %2093 = vmatpush.msra.mxu0 0.0
        %2094 = vmatpush.msra.mxu0 0.0
        %2095 = vmatpush.msra.mxu0 0.0
        %2096 = vmatpush.msra.mxu0 0.0
        %2097 = vmatpush.msra.mxu0 0.0
        %2098 = vmatpush.msra.mxu0 %v2075
        %2099 = vmatpush.msra.mxu0 %v2073
        %2100 = vmatpush.msra.mxu0 %v2071
        %2101 = vmatpush.msra.mxu0 %v2069
        %2102 = vmatmul.f32.gmra.mxu0 %v2081
        %v2103 = vpop.f32.mrf.mxu0
        %v2104 = vadd.f32 0.0, %v2103
        %2105 = vmatmul.f32.gmra.mxu0 %v2084
        %v2106 = vpop.f32.mrf.mxu0
        %v2107 = vadd.f32 0.0, %v2106
        %2108 = vdwg.mxu0
        %v2109 = vadd.f32 %v2066, %v2104
        %v2110 = vadd.f32 %v2067, %v2107
        %2111 = vrot.lane.b32.xlu0 %v394, 96
        %v2112 = vpop.permute.xlu0 %2111
        %2113 = vrot.lane.b32.xlu0 %v397, 96
        %v2114 = vpop.permute.xlu0 %2113
        %2115 = vrot.lane.b32.xlu0 %v1887, 123
        %v2116 = vpop.permute.xlu0 %2115
        %2117 = vrot.lane.b32.xlu0 %v1890, 123
        %v2118 = vpop.permute.xlu0 %2117
        %2119 = vrot.lane.b32.xlu0 %v1893, 123
        %v2120 = vpop.permute.xlu0 %2119
        %2121 = vrot.lane.b32.xlu0 %v1896, 123
        %v2122 = vpop.permute.xlu0 %2121
        %v2127 = vsel %vm480, %v2112, 0
        %v2129 = vsel %vm480, %v2114, 0
        %2131 = vmatpush.msra.mxu0 0.0
        %2132 = vmatpush.msra.mxu0 0.0
        %2133 = vmatpush.msra.mxu0 0.0
        %2134 = vmatpush.msra.mxu0 0.0
        %2135 = vmatpush.msra.mxu0 0.0
        %2136 = vmatpush.msra.mxu0 0.0
        %2137 = vmatpush.msra.mxu0 0.0
        %2138 = vmatpush.msra.mxu0 0.0
        %2139 = vmatpush.msra.mxu0 0.0
        %2140 = vmatpush.msra.mxu0 0.0
        %2141 = vmatpush.msra.mxu0 0.0
        %2142 = vmatpush.msra.mxu0 0.0
        %2143 = vmatpush.msra.mxu0 %v2122
        %2144 = vmatpush.msra.mxu0 %v2120
        %2145 = vmatpush.msra.mxu0 %v2118
        %2146 = vmatpush.msra.mxu0 %v2116
        %2147 = vmatmul.f32.gmra.mxu0 %v2127
        %v2148 = vpop.f32.mrf.mxu0
        %v2149 = vadd.f32 0.0, %v2148
        %2150 = vmatmul.f32.gmra.mxu0 %v2129
        %v2151 = vpop.f32.mrf.mxu0
        %v2152 = vadd.f32 0.0, %v2151
        %2153 = vdwg.mxu0
        %v2154 = vadd.f32 %v2109, %v2149
        %v2155 = vadd.f32 %v2110, %v2152
        %2156 = vrot.lane.b32.xlu0 %v394, 64
        %v2157 = vpop.permute.xlu0 %2156
        %2158 = vrot.lane.b32.xlu0 %v397, 64
        %v2159 = vpop.permute.xlu0 %2158
        %2160 = vrot.lane.b32.xlu0 %v1887, 122
        %v2161 = vpop.permute.xlu0 %2160
        %2162 = vrot.lane.b32.xlu0 %v1890, 122
        %v2163 = vpop.permute.xlu0 %2162
        %2164 = vrot.lane.b32.xlu0 %v1893, 122
        %v2165 = vpop.permute.xlu0 %2164
        %2166 = vrot.lane.b32.xlu0 %v1896, 122
        %v2167 = vpop.permute.xlu0 %2166
        %v2172 = vsel %vm480, %v2157, 0
        %v2174 = vsel %vm480, %v2159, 0
        %2176 = vmatpush.msra.mxu0 0.0
        %2177 = vmatpush.msra.mxu0 0.0
        %2178 = vmatpush.msra.mxu0 0.0
        %2179 = vmatpush.msra.mxu0 0.0
        %2180 = vmatpush.msra.mxu0 0.0
        %2181 = vmatpush.msra.mxu0 0.0
        %2182 = vmatpush.msra.mxu0 0.0
        %2183 = vmatpush.msra.mxu0 0.0
        %2184 = vmatpush.msra.mxu0 0.0
        %2185 = vmatpush.msra.mxu0 0.0
        %2186 = vmatpush.msra.mxu0 0.0
        %2187 = vmatpush.msra.mxu0 0.0
        %2188 = vmatpush.msra.mxu0 %v2167
        %2189 = vmatpush.msra.mxu0 %v2165
        %2190 = vmatpush.msra.mxu0 %v2163
        %2191 = vmatpush.msra.mxu0 %v2161
        %2192 = vmatmul.f32.gmra.mxu0 %v2172
        %v2193 = vpop.f32.mrf.mxu0
        %v2194 = vadd.f32 0.0, %v2193
        %2195 = vmatmul.f32.gmra.mxu0 %v2174
        %v2196 = vpop.f32.mrf.mxu0
        %v2197 = vadd.f32 0.0, %v2196
        %2198 = vdwg.mxu0
        %v2199 = vadd.f32 %v2154, %v2194
        %v2200 = vadd.f32 %v2155, %v2197
        %2201 = vrot.lane.b32.xlu0 %v394, 32
        %v2202 = vpop.permute.xlu0 %2201
        %2203 = vrot.lane.b32.xlu0 %v397, 32
        %v2204 = vpop.permute.xlu0 %2203
        %2205 = vrot.lane.b32.xlu0 %v1887, 121
        %v2206 = vpop.permute.xlu0 %2205
        %2207 = vrot.lane.b32.xlu0 %v1890, 121
        %v2208 = vpop.permute.xlu0 %2207
        %2209 = vrot.lane.b32.xlu0 %v1893, 121
        %v2210 = vpop.permute.xlu0 %2209
        %2211 = vrot.lane.b32.xlu0 %v1896, 121
        %v2212 = vpop.permute.xlu0 %2211
        %v2217 = vsel %vm480, %v2202, 0
        %v2219 = vsel %vm480, %v2204, 0
        %2221 = vmatpush.msra.mxu0 0.0
        %2222 = vmatpush.msra.mxu0 0.0
        %2223 = vmatpush.msra.mxu0 0.0
        %2224 = vmatpush.msra.mxu0 0.0
        %2225 = vmatpush.msra.mxu0 0.0
        %2226 = vmatpush.msra.mxu0 0.0
        %2227 = vmatpush.msra.mxu0 0.0
        %2228 = vmatpush.msra.mxu0 0.0
        %2229 = vmatpush.msra.mxu0 0.0
        %2230 = vmatpush.msra.mxu0 0.0
        %2231 = vmatpush.msra.mxu0 0.0
        %2232 = vmatpush.msra.mxu0 0.0
        %2233 = vmatpush.msra.mxu0 %v2212
        %2234 = vmatpush.msra.mxu0 %v2210
        %2235 = vmatpush.msra.mxu0 %v2208
        %2236 = vmatpush.msra.mxu0 %v2206
        %2237 = vmatmul.f32.gmra.mxu0 %v2217
        %v2238 = vpop.f32.mrf.mxu0
        %v2239 = vadd.f32 0.0, %v2238
        %2240 = vmatmul.f32.gmra.mxu0 %v2219
        %v2241 = vpop.f32.mrf.mxu0
        %v2242 = vadd.f32 0.0, %v2241
        %2243 = vdwg.mxu0
        %v2244 = vadd.f32 %v2199, %v2239
        %v2245 = vadd.f32 %v2200, %v2242
        %2246 = vrot.lane.b32.xlu0 %v1887, 120
        %v2247 = vpop.permute.xlu0 %2246
        %2248 = vrot.lane.b32.xlu0 %v1890, 120
        %v2249 = vpop.permute.xlu0 %2248
        %2250 = vrot.lane.b32.xlu0 %v1893, 120
        %v2251 = vpop.permute.xlu0 %2250
        %2252 = vrot.lane.b32.xlu0 %v1896, 120
        %v2253 = vpop.permute.xlu0 %2252
        %v2259 = vsel %vm480, %v395, 0
        %v2262 = vsel %vm480, %v398, 0
        %2264 = vmatpush.msra.mxu0 0.0
        %2265 = vmatpush.msra.mxu0 0.0
        %2266 = vmatpush.msra.mxu0 0.0
        %2267 = vmatpush.msra.mxu0 0.0
        %2268 = vmatpush.msra.mxu0 0.0
        %2269 = vmatpush.msra.mxu0 0.0
        %2270 = vmatpush.msra.mxu0 0.0
        %2271 = vmatpush.msra.mxu0 0.0
        %2272 = vmatpush.msra.mxu0 0.0
        %2273 = vmatpush.msra.mxu0 0.0
        %2274 = vmatpush.msra.mxu0 0.0
        %2275 = vmatpush.msra.mxu0 0.0
        %2276 = vmatpush.msra.mxu0 %v2253
        %2277 = vmatpush.msra.mxu0 %v2251
        %2278 = vmatpush.msra.mxu0 %v2249
        %2279 = vmatpush.msra.mxu0 %v2247
        %2280 = vmatmul.f32.gmra.mxu0 %v2259
        %v2281 = vpop.f32.mrf.mxu0
        %v2282 = vadd.f32 0.0, %v2281
        %2283 = vmatmul.f32.gmra.mxu0 %v2262
        %v2284 = vpop.f32.mrf.mxu0
        %v2285 = vadd.f32 0.0, %v2284
        %2286 = vdwg.mxu0
        %v2287 = vadd.f32 %v2244, %v2282
        %v2288 = vadd.f32 %v2245, %v2285
        %vm2289 = vcmask 7168
        %2290 = vst.msk [vmem:[%s373] sm:$0xff] %vm2289, %v2287
        %vm2291 = vcmask 1024
        %2292 = vst.msk [vmem:[%s373 + $0x8] sm:$0x3] %vm2291, %v2288
        %p2293 = scmp.lt.s32.totalorder %s22, 1
        %s2294 = scalar_select %p2293, %s22, 1
        %s2295 = smul.addr %s2294, 2
        %s2296 = smul.addr %s2295, 8
        %s2297 = scalar_lea.vmem %s10, %s2296
        // Predicated region
        $region65: #{mnet_forward.1} parent=59 // pred_check
          %p2298 = pneg %p255
        $region66: #{mnet_forward.1} parent=59 // pred_check_branch
          %2300 = sbr.rel (%p2298) target = $region68
        $region67: #{mnet_forward.1} parent=59 // pred_region
          _
        $region68: #{mnet_forward.1} parent=59 // pred_fallthru
          _
      $region60: #{mnet_forward.1} parent=5 // pred_fallthru
        _
      %p2301 = scmp.le.s32.totalorder 2, %s17
      // Predicated region
      $region69: #{mnet_forward.1} parent=5 // pred_check
        %p2302 = pneg %p2301
      $region70: #{mnet_forward.1} parent=5 // pred_check_branch
        %2304 = sbr.rel (%p2302) target = $region72
      $region71: #{mnet_forward.1} parent=5 // pred_region
        %s2305 = ssub.s32 %s17, 2
        // Predicated region
        $region73: #{mnet_forward.1} parent=71 // pred_check
          %p2306 = pneg %p261
        $region74: #{mnet_forward.1} parent=71 // pred_check_branch
          %2308 = sbr.rel (%p2306) target = $region76
        $region75: #{mnet_forward.1} parent=71 // pred_region
          %p2309 = scmp.lt.s32.totalorder %s23, 1
          %s2310 = scalar_select %p2309, %s23, 1
          %s2311 = smul.addr %s2310, 2
          %s2312 = smul.addr %s2311, 8
          %s2313 = scalar_lea.vmem %s10, %s2312
        $region76: #{mnet_forward.1} parent=71 // pred_fallthru
          _
      $region72: #{mnet_forward.1} parent=5 // pred_fallthru
        _
    $region6: #{mnet_forward.1} parent=1 // loop_footer
      %s21 = sadd.s32 1, %s17
    $region7: #{mnet_forward.1} parent=1 // loop_footer_branch
      %16 = sbr.rel target = $region3
    $region8: #{mnet_forward.1} parent=1 // loop_exit
      _
    %2314 = vsyncpa [#allocation3], 1
    %s2315 = scalar_lea.sflag [#allocation3], 1
    %2316 = vsyncpa %s2315, 1

</llo_original>
